<compile_context>
chip_gen: v7x
topology: tpu7x:2x2x1
jax: 0.10.0
libtpu: 0.0.40
codegen_flags: <defaults>
</compile_context>

<pallas_src>
import functools

import jax
import jax.numpy as jnp
from jax import lax
from jax.experimental import pallas as pl
from jax.experimental.pallas import tpu as pltpu


# --------------------- fused transformer encoder layer --------------------- #

def _tf_layer_kernel(x_ref, wqkv_ref, bqkv_ref, wo_ref, bo_ref,
                     ln1_g_ref, ln1_b_ref, w1_ref, b1_ref, w2_ref, b2_ref,
                     ln2_g_ref, ln2_b_ref, o_ref, *, nheads, eps):
    x = x_ref[0]                                     # (S, H) f32
    S, H = x.shape
    Dh = H // nheads
    scale = 1.0 / (Dh ** 0.5)

    # Fused QKV projection (bf16 MXU inputs, f32 accumulation).
    qkv = jnp.dot(x.astype(jnp.bfloat16), wqkv_ref[...],
                  preferred_element_type=jnp.float32) + bqkv_ref[...]
    q = qkv[:, 0 * H:1 * H]
    k = qkv[:, 1 * H:2 * H]
    v = qkv[:, 2 * H:3 * H]

    # Per-head attention (static unroll, all 2-D math in VMEM/vregs).
    # out_proj is folded in per head: concat(h_0..h_7) @ Wo == sum_h h_h @ Wo[h*Dh:(h+1)*Dh].
    wo = wo_ref[...]                                 # (H, H) bf16
    proj = jnp.zeros((S, H), jnp.float32)
    for h in range(nheads):
        sl = slice(h * Dh, (h + 1) * Dh)
        qh, kh, vh = q[:, sl], k[:, sl], v[:, sl]
        s = lax.dot_general(qh, kh, (((1,), (1,)), ((), ())),
                            preferred_element_type=jnp.float32) * scale
        s = s - jnp.max(s, axis=-1, keepdims=True)
        p = jnp.exp(s)
        p = p * pl.reciprocal(jnp.sum(p, axis=-1, keepdims=True), approx=True)
        hv = jnp.dot(p, vh, preferred_element_type=jnp.float32)     # (S, Dh)
        proj = proj + jnp.dot(hv.astype(jnp.bfloat16), wo[sl, :],
                              preferred_element_type=jnp.float32)
    attn = proj + bo_ref[...]

    # Residual + LayerNorm 1 (post-norm), all in f32.
    y = x + attn
    mu = jnp.mean(y, axis=-1, keepdims=True)
    var = jnp.mean(jnp.square(y - mu), axis=-1, keepdims=True)
    y1 = (y - mu) * lax.rsqrt(var + eps) * ln1_g_ref[...] + ln1_b_ref[...]

    # FFN: ff1 + ReLU + ff2; [S, FFN] intermediate never leaves VMEM.
    hmid = jnp.dot(y1.astype(jnp.bfloat16), w1_ref[...],
                   preferred_element_type=jnp.float32) + b1_ref[...]
    hmid = jnp.maximum(hmid, 0.0)
    y2 = jnp.dot(hmid.astype(jnp.bfloat16), w2_ref[...],
                 preferred_element_type=jnp.float32) + b2_ref[...]

    # Residual + LayerNorm 2.
    z = y1 + y2
    mu2 = jnp.mean(z, axis=-1, keepdims=True)
    var2 = jnp.mean(jnp.square(z - mu2), axis=-1, keepdims=True)
    o_ref[0] = (z - mu2) * lax.rsqrt(var2 + eps) * ln2_g_ref[...] + ln2_b_ref[...]


def transformer_layer(x, p, nheads, eps=1e-5):
    B, S, H = x.shape
    FFN = p["ff1_w"].shape[0]
    bf = jnp.bfloat16
    f32 = jnp.float32

    wqkv = p["in_proj_w"].T.astype(bf)                       # (H, 3H)
    bqkv = p["in_proj_b"].reshape(1, 3 * H).astype(f32)
    wo = p["out_proj_w"].T.astype(bf)                        # (H, H)
    bo = p["out_proj_b"].reshape(1, H).astype(f32)
    w1 = p["ff1_w"].T.astype(bf)                             # (H, FFN)
    b1 = p["ff1_b"].reshape(1, FFN).astype(f32)
    w2 = p["ff2_w"].T.astype(bf)                             # (FFN, H)
    b2 = p["ff2_b"].reshape(1, H).astype(f32)
    g1 = p["ln1_g"].reshape(1, H).astype(f32)
    be1 = p["ln1_b"].reshape(1, H).astype(f32)
    g2 = p["ln2_g"].reshape(1, H).astype(f32)
    be2 = p["ln2_b"].reshape(1, H).astype(f32)

    def const(shape):
        nd = len(shape)
        return pl.BlockSpec(shape, lambda b: (0,) * nd)      # resident across grid

    kernel = functools.partial(_tf_layer_kernel, nheads=nheads, eps=eps)
    return pl.pallas_call(
        kernel,
        out_shape=jax.ShapeDtypeStruct((B, S, H), f32),
        grid=(B,),
        in_specs=[
            pl.BlockSpec((1, S, H), lambda b: (b, 0, 0)),    # x
            const((H, 3 * H)), const((1, 3 * H)),            # wqkv, bqkv
            const((H, H)), const((1, H)),                    # wo, bo
            const((1, H)), const((1, H)),                    # ln1 gamma, beta
            const((H, FFN)), const((1, FFN)),                # w1, b1
            const((FFN, H)), const((1, H)),                  # w2, b2
            const((1, H)), const((1, H)),                    # ln2 gamma, beta
        ],
        out_specs=pl.BlockSpec((1, S, H), lambda b: (b, 0, 0)),
        compiler_params=pltpu.CompilerParams(
            dimension_semantics=("parallel",)),              # 2 TCs on v7x
    )(x.astype(f32), wqkv, bqkv, wo, bo, g1, be1, w1, b1, w2, b2, g2, be2)


# ------------------------- fused LSTM direction scan ------------------------ #

def _lstm_seq_kernel(x_ref, seqlen_ref, wih_ref, whh_ref, bias_ref,
                     y_ref, h_ref, c_ref):
    t = pl.program_id(0)

    @pl.when(t == 0)
    def _():
        h_ref[...] = jnp.zeros_like(h_ref)
        c_ref[...] = jnp.zeros_like(c_ref)

    x_t = x_ref[0]                          # (B, Hin) f32
    h = h_ref[...]
    c = c_ref[...]
    xb = x_t.astype(jnp.bfloat16)
    hb = h.astype(jnp.bfloat16)

    # Gate-major weights: each gate is its own lane-aligned (B, H) tile, no
    # 32-lane slicing of a fused [B, 4H] gate tensor.
    gates = [jnp.dot(xb, wih_ref[k], preferred_element_type=jnp.float32)
             + jnp.dot(hb, whh_ref[k], preferred_element_type=jnp.float32)
             + bias_ref[k]
             for k in range(4)]
    i_g = jax.nn.sigmoid(gates[0])
    f_g = jax.nn.sigmoid(gates[1])
    g_g = jnp.tanh(gates[2])
    o_g = jax.nn.sigmoid(gates[3])

    c_new = f_g * c + i_g * g_g
    h_new = o_g * jnp.tanh(c_new)

    mask = t < seqlen_ref[...]              # (B, H) bool: valid timestep?
    h_ref[...] = jnp.where(mask, h_new, h)  # freeze state past seq_len
    c_ref[...] = jnp.where(mask, c_new, c)
    y_ref[0] = jnp.where(mask, h_new, 0.0)  # padded outputs are zero


def reverse_within_length(x, seq_len):
    """Reverse each sequence within its valid length (positions >= len untouched)."""
    B, S, _ = x.shape
    t = jnp.arange(S)
    idx = jnp.where(t[None, :] < seq_len[:, None],
                    seq_len[:, None] - 1 - t[None, :], t[None, :])
    idx = jnp.broadcast_to(idx[:, :, None], x.shape)
    return jnp.take_along_axis(x, idx, axis=1)


def lstm_direction(x, seq_len, W_ih, W_hh, b_ih, b_hh, reverse):
    """One direction of one LSTM layer with packed-sequence (length-mask) semantics.

    The whole time loop is a single pallas_call: grid=(S,) ('arbitrary'), h/c kept
    in VMEM scratch, gate-major weights resident in VMEM, x[t] / y[t] streamed.
    """
    B, S, Hin = x.shape
    Hh = W_hh.shape[1]
    if reverse:
        x = reverse_within_length(x, seq_len)

    bf = jnp.bfloat16
    wih_g = W_ih.reshape(4, Hh, Hin).transpose(0, 2, 1).astype(bf)   # (4, Hin, Hh)
    whh_g = W_hh.reshape(4, Hh, Hh).transpose(0, 2, 1).astype(bf)    # (4, Hh, Hh)
    bias_g = (b_ih + b_hh).reshape(4, 1, Hh).astype(jnp.float32)
    seqlen_b = jnp.broadcast_to(seq_len[:, None].astype(jnp.int32), (B, Hh))
    x_tbh = x.transpose(1, 0, 2).astype(jnp.float32)                 # (S, B, Hin)

    y = pl.pallas_call(
        _lstm_seq_kernel,
        out_shape=jax.ShapeDtypeStruct((S, B, Hh), jnp.float32),
        grid=(S,),
        in_specs=[
            pl.BlockSpec((1, B, Hin), lambda t: (t, 0, 0)),          # x[t] streamed
            pl.BlockSpec((B, Hh), lambda t: (0, 0)),                 # seq_len (resident)
            pl.BlockSpec((4, Hin, Hh), lambda t: (0, 0, 0)),         # W_ih (resident)
            pl.BlockSpec((4, Hh, Hh), lambda t: (0, 0, 0)),          # W_hh (resident)
            pl.BlockSpec((4, 1, Hh), lambda t: (0, 0, 0)),           # bias (resident)
        ],
        out_specs=pl.BlockSpec((1, B, Hh), lambda t: (t, 0, 0)),     # y[t] streamed
        scratch_shapes=[pltpu.VMEM((B, Hh), jnp.float32),            # h state
                        pltpu.VMEM((B, Hh), jnp.float32)],           # c state
        compiler_params=pltpu.CompilerParams(
            dimension_semantics=("arbitrary",)),                     # recurrent -> sequential
    )(x_tbh, seqlen_b, wih_g, whh_g, bias_g)

    out = y.transpose(1, 0, 2)                                       # (B, S, Hh)
    if reverse:
        out = reverse_within_length(out, seq_len)
    return out


def lstm(x, seq_len, lstm_params, n_layer, bidir):
    inp = x
    for layer in range(n_layer):
        dirs = [False, True] if bidir else [False]
        outs = []
        for d, rev in enumerate(dirs):
            p = lstm_params[layer][d]
            outs.append(lstm_direction(inp, seq_len, p["W_ih"], p["W_hh"],
                                       p["b_ih"], p["b_hh"], rev))
        inp = jnp.concatenate(outs, axis=-1)
    return inp


# ------------------------------ final classifier --------------------------- #

def _linear_kernel(x_ref, w_ref, b_ref, o_ref):
    o_ref[...] = jnp.dot(x_ref[...], w_ref[...],
                         preferred_element_type=jnp.float32) + b_ref[...]


def pallas_linear(x, w, b):
    """Small single-block fused linear (used only for the [B, 2H] -> n_class head)."""
    M, K = x.shape
    N = w.shape[1]
    return pl.pallas_call(
        _linear_kernel,
        out_shape=jax.ShapeDtypeStruct((M, N), jnp.float32),
        grid=(1,),
        in_specs=[pl.BlockSpec((M, K), lambda i: (0, 0)),
                  pl.BlockSpec((K, N), lambda i: (0, 0)),
                  pl.BlockSpec((1, N), lambda i: (0, 0))],
        out_specs=pl.BlockSpec((M, N), lambda i: (0, 0)),
    )(x.astype(jnp.float32), w.astype(jnp.float32),
      b.reshape(1, N).astype(jnp.float32))


# ---------------------------------- forward -------------------------------- #

def forward(params, x_ids, seq_len, *, nheads, n_tf_layers, n_layer, bidir):
    h = params["embedding"][x_ids].astype(jnp.float32)      # [B, S, H] (XLA gather)
    for l in range(n_tf_layers):
        h = transformer_layer(h, params["tf"][l], nheads)
    out = lstm(h, seq_len, params["lstm"], n_layer, bidir)  # [B, S, H*ndir]
    B = out.shape[0]
    last = out[jnp.arange(B), seq_len - 1, :]                # last valid timestep
    return pallas_linear(last, params["fc_w"].T, params["fc_b"])


# ------------------------- deterministic parameters ------------------------ #

def init_params(key, vocab, H, ffn, n_tf, n_lstm, n_class, bidir):
    keys = iter(jax.random.split(key, 256))

    def nrm(shape, scale=0.02):
        return (scale * jax.random.normal(next(keys), shape)).astype(jnp.float32)

    params = {"embedding": nrm((vocab, H), 0.1), "tf": [], "lstm": []}
    for _ in range(n_tf):
        params["tf"].append(dict(
            in_proj_w=nrm((3 * H, H)), in_proj_b=jnp.zeros((3 * H,), jnp.float32),
            out_proj_w=nrm((H, H)), out_proj_b=jnp.zeros((H,), jnp.float32),
            ln1_g=jnp.ones((H,), jnp.float32), ln1_b=jnp.zeros((H,), jnp.float32),
            ff1_w=nrm((ffn, H)), ff1_b=jnp.zeros((ffn,), jnp.float32),
            ff2_w=nrm((H, ffn)), ff2_b=jnp.zeros((H,), jnp.float32),
            ln2_g=jnp.ones((H,), jnp.float32), ln2_b=jnp.zeros((H,), jnp.float32),
        ))
    ndir = 2 if bidir else 1
    for layer in range(n_lstm):
        in_dim = H if layer == 0 else H * ndir
        params["lstm"].append([dict(
            W_ih=nrm((4 * H, in_dim), 0.1),
            W_hh=nrm((4 * H, H), 0.1),
            b_ih=jnp.zeros((4 * H,), jnp.float32),
            b_hh=jnp.zeros((4 * H,), jnp.float32),
        ) for _ in range(ndir)])
    params["fc_w"] = nrm((n_class, H * ndir), 0.1)
    params["fc_b"] = jnp.zeros((n_class,), jnp.float32)
    return params


# ---------------------------------- main ----------------------------------- #

if __name__ == "__main__":
    VOCAB, H, FFN, NHEADS = 50, 32, 2048, 8   # FFN=2048 = TransformerEncoderLayer default
    N_TF, N_LSTM, N_CLASS = 2, 1, 5
    B, S = 2, 8

    key = jax.random.PRNGKey(0)
    pkey, xkey = jax.random.split(key)
    params = init_params(pkey, VOCAB, H, FFN, N_TF, N_LSTM, N_CLASS, bidir=True)

    x_ids = jax.random.randint(xkey, (B, S), 0, VOCAB, dtype=jnp.int32)
    # pack_padded_sequence(enforce_sorted=True) requires descending lengths.
    seq_len = jnp.array([8, 5], dtype=jnp.int32)

    fwd = jax.jit(functools.partial(forward, nheads=NHEADS, n_tf_layers=N_TF,
                                    n_layer=N_LSTM, bidir=True))
    out = fwd(params, x_ids, seq_len)
    jax.block_until_ready(out)
    assert out.shape == (B, N_CLASS) and out.dtype == jnp.float32
    print("KERNEL_OK")
</pallas_src>

<mosaic_0001>
module attributes {stable_mosaic.version = 11 : i64} {
  func.func @_tf_layer_kernel(%arg0: i32, %arg1: memref<1x8x32xf32, #tpu.memory_space<vmem>>, %arg2: memref<32x96xbf16, #tpu.memory_space<vmem>>, %arg3: memref<1x96xf32, #tpu.memory_space<vmem>>, %arg4: memref<32x32xbf16, #tpu.memory_space<vmem>>, %arg5: memref<1x32xf32, #tpu.memory_space<vmem>>, %arg6: memref<1x32xf32, #tpu.memory_space<vmem>>, %arg7: memref<1x32xf32, #tpu.memory_space<vmem>>, %arg8: memref<32x2048xbf16, #tpu.memory_space<vmem>>, %arg9: memref<1x2048xf32, #tpu.memory_space<vmem>>, %arg10: memref<2048x32xbf16, #tpu.memory_space<vmem>>, %arg11: memref<1x32xf32, #tpu.memory_space<vmem>>, %arg12: memref<1x32xf32, #tpu.memory_space<vmem>>, %arg13: memref<1x32xf32, #tpu.memory_space<vmem>>, %arg14: memref<1x8x32xf32, #tpu.memory_space<vmem>>) attributes {dimension_semantics = [#tpu.dimension_semantics<parallel>], iteration_bounds = array<i64: 2>, scalar_prefetch = 0 : i64, scratch_operands = 0 : i64, tpu.core_type = #tpu.core_type<tc>, window_params = [{transform_indices = @transform_0, window_bounds = array<i64: 1, 8, 32>}, {pipeline_mode = #tpu.pipeline_mode<synchronous>, transform_indices = @transform_1, window_bounds = array<i64: 32, 96>}, {pipeline_mode = #tpu.pipeline_mode<synchronous>, transform_indices = @transform_2, window_bounds = array<i64: 1, 96>}, {pipeline_mode = #tpu.pipeline_mode<synchronous>, transform_indices = @transform_3, window_bounds = array<i64: 32, 32>}, {pipeline_mode = #tpu.pipeline_mode<synchronous>, transform_indices = @transform_4, window_bounds = array<i64: 1, 32>}, {pipeline_mode = #tpu.pipeline_mode<synchronous>, transform_indices = @transform_5, window_bounds = array<i64: 1, 32>}, {pipeline_mode = #tpu.pipeline_mode<synchronous>, transform_indices = @transform_6, window_bounds = array<i64: 1, 32>}, {pipeline_mode = #tpu.pipeline_mode<synchronous>, transform_indices = @transform_7, window_bounds = array<i64: 32, 2048>}, {pipeline_mode = #tpu.pipeline_mode<synchronous>, transform_indices = @transform_8, window_bounds = array<i64: 1, 2048>}, {pipeline_mode = #tpu.pipeline_mode<synchronous>, transform_indices = @transform_9, window_bounds = array<i64: 2048, 32>}, {pipeline_mode = #tpu.pipeline_mode<synchronous>, transform_indices = @transform_10, window_bounds = array<i64: 1, 32>}, {pipeline_mode = #tpu.pipeline_mode<synchronous>, transform_indices = @transform_11, window_bounds = array<i64: 1, 32>}, {pipeline_mode = #tpu.pipeline_mode<synchronous>, transform_indices = @transform_12, window_bounds = array<i64: 1, 32>}, {transform_indices = @transform_13, window_bounds = array<i64: 1, 8, 32>}]} {
    %c0 = arith.constant 0 : index
    %c0_0 = arith.constant 0 : index
    %c0_1 = arith.constant 0 : index
    %0 = vector.load %arg1[%c0, %c0_0, %c0_1] : memref<1x8x32xf32, #tpu.memory_space<vmem>>, vector<1x8x32xf32>
    %1 = vector.shape_cast %0 : vector<1x8x32xf32> to vector<8x32xf32>
    %2 = arith.truncf %1 : vector<8x32xf32> to vector<8x32xbf16>
    %c0_2 = arith.constant 0 : index
    %c0_3 = arith.constant 0 : index
    %3 = vector.load %arg2[%c0_2, %c0_3] : memref<32x96xbf16, #tpu.memory_space<vmem>>, vector<32x96xbf16>
    %cst = arith.constant dense<0.000000e+00> : vector<8x96xf32>
    %4 = tpu.matmul %2, %3, %cst {dimension_numbers = #tpu.dot_dimension_numbers<[1], [0], [0], [1], [0, 0, 1, 1], [], []>} : vector<8x32xbf16>, vector<32x96xbf16>, vector<8x96xf32> -> vector<8x96xf32>
    %c0_4 = arith.constant 0 : index
    %c0_5 = arith.constant 0 : index
    %5 = vector.load %arg3[%c0_4, %c0_5] : memref<1x96xf32, #tpu.memory_space<vmem>>, vector<1x96xf32>
    %6 = vector.broadcast %5 : vector<1x96xf32> to vector<8x96xf32>
    %7 = arith.addf %4, %6 : vector<8x96xf32>
    %8 = vector.extract_strided_slice %7 {offsets = [0, 0], sizes = [8, 32], strides = [1, 1]} : vector<8x96xf32> to vector<8x32xf32>
    %9 = vector.extract_strided_slice %7 {offsets = [0, 32], sizes = [8, 32], strides = [1, 1]} : vector<8x96xf32> to vector<8x32xf32>
    %10 = vector.extract_strided_slice %7 {offsets = [0, 64], sizes = [8, 32], strides = [1, 1]} : vector<8x96xf32> to vector<8x32xf32>
    %c0_6 = arith.constant 0 : index
    %c0_7 = arith.constant 0 : index
    %11 = vector.load %arg4[%c0_6, %c0_7] : memref<32x32xbf16, #tpu.memory_space<vmem>>, vector<32x32xbf16>
    %cst_8 = arith.constant 0.000000e+00 : f32
    %12 = vector.broadcast %cst_8 : f32 to vector<8x32xf32>
    %13 = vector.extract_strided_slice %8 {offsets = [0, 0], sizes = [8, 4], strides = [1, 1]} : vector<8x32xf32> to vector<8x4xf32>
    %14 = vector.extract_strided_slice %9 {offsets = [0, 0], sizes = [8, 4], strides = [1, 1]} : vector<8x32xf32> to vector<8x4xf32>
    %15 = vector.extract_strided_slice %10 {offsets = [0, 0], sizes = [8, 4], strides = [1, 1]} : vector<8x32xf32> to vector<8x4xf32>
    %cst_9 = arith.constant dense<0.000000e+00> : vector<8x8xf32>
    %16 = tpu.matmul %13, %14, %cst_9 {dimension_numbers = #tpu.dot_dimension_numbers<[1], [1], [0], [0], [0, 0, 1, 0], [], []>} : vector<8x4xf32>, vector<8x4xf32>, vector<8x8xf32> -> vector<8x8xf32>
    %cst_10 = arith.constant 5.000000e-01 : f32
    %17 = vector.broadcast %cst_10 : f32 to vector<8x8xf32>
    %18 = arith.mulf %16, %17 : vector<8x8xf32>
    %cst_11 = arith.constant dense<0xFF800000> : vector<8xf32>
    %19 = vector.multi_reduction <maximumf>, %18, %cst_11 [1] : vector<8x8xf32> to vector<8xf32>
    %20 = vector.shape_cast %19 : vector<8xf32> to vector<8x1xf32>
    %21 = vector.broadcast %20 : vector<8x1xf32> to vector<8x8xf32>
    %22 = arith.subf %18, %21 : vector<8x8xf32>
    %23 = math.exp %22 : vector<8x8xf32>
    %cst_12 = arith.constant dense<0.000000e+00> : vector<8xf32>
    %24 = vector.multi_reduction <add>, %23, %cst_12 [1] : vector<8x8xf32> to vector<8xf32>
    %25 = vector.shape_cast %24 : vector<8xf32> to vector<8x1xf32>
    %26 = tpu.reciprocal %25 {approx = true} : vector<8x1xf32> -> vector<8x1xf32>
    %27 = vector.broadcast %26 : vector<8x1xf32> to vector<8x8xf32>
    %28 = arith.mulf %23, %27 : vector<8x8xf32>
    %cst_13 = arith.constant dense<0.000000e+00> : vector<8x4xf32>
    %29 = tpu.matmul %28, %15, %cst_13 {dimension_numbers = #tpu.dot_dimension_numbers<[1], [0], [0], [1], [0, 0, 1, 1], [], []>} : vector<8x8xf32>, vector<8x4xf32>, vector<8x4xf32> -> vector<8x4xf32>
    %30 = arith.truncf %29 : vector<8x4xf32> to vector<8x4xbf16>
    %31 = vector.extract_strided_slice %11 {offsets = [0, 0], sizes = [4, 32], strides = [1, 1]} : vector<32x32xbf16> to vector<4x32xbf16>
    %cst_14 = arith.constant dense<0.000000e+00> : vector<8x32xf32>
    %32 = tpu.matmul %30, %31, %cst_14 {dimension_numbers = #tpu.dot_dimension_numbers<[1], [0], [0], [1], [0, 0, 1, 1], [], []>} : vector<8x4xbf16>, vector<4x32xbf16>, vector<8x32xf32> -> vector<8x32xf32>
    %33 = arith.addf %12, %32 : vector<8x32xf32>
    %34 = vector.extract_strided_slice %8 {offsets = [0, 4], sizes = [8, 4], strides = [1, 1]} : vector<8x32xf32> to vector<8x4xf32>
    %35 = vector.extract_strided_slice %9 {offsets = [0, 4], sizes = [8, 4], strides = [1, 1]} : vector<8x32xf32> to vector<8x4xf32>
    %36 = vector.extract_strided_slice %10 {offsets = [0, 4], sizes = [8, 4], strides = [1, 1]} : vector<8x32xf32> to vector<8x4xf32>
    %cst_15 = arith.constant dense<0.000000e+00> : vector<8x8xf32>
    %37 = tpu.matmul %34, %35, %cst_15 {dimension_numbers = #tpu.dot_dimension_numbers<[1], [1], [0], [0], [0, 0, 1, 0], [], []>} : vector<8x4xf32>, vector<8x4xf32>, vector<8x8xf32> -> vector<8x8xf32>
    %cst_16 = arith.constant 5.000000e-01 : f32
    %38 = vector.broadcast %cst_16 : f32 to vector<8x8xf32>
    %39 = arith.mulf %37, %38 : vector<8x8xf32>
    %cst_17 = arith.constant dense<0xFF800000> : vector<8xf32>
    %40 = vector.multi_reduction <maximumf>, %39, %cst_17 [1] : vector<8x8xf32> to vector<8xf32>
    %41 = vector.shape_cast %40 : vector<8xf32> to vector<8x1xf32>
    %42 = vector.broadcast %41 : vector<8x1xf32> to vector<8x8xf32>
    %43 = arith.subf %39, %42 : vector<8x8xf32>
    %44 = math.exp %43 : vector<8x8xf32>
    %cst_18 = arith.constant dense<0.000000e+00> : vector<8xf32>
    %45 = vector.multi_reduction <add>, %44, %cst_18 [1] : vector<8x8xf32> to vector<8xf32>
    %46 = vector.shape_cast %45 : vector<8xf32> to vector<8x1xf32>
    %47 = tpu.reciprocal %46 {approx = true} : vector<8x1xf32> -> vector<8x1xf32>
    %48 = vector.broadcast %47 : vector<8x1xf32> to vector<8x8xf32>
    %49 = arith.mulf %44, %48 : vector<8x8xf32>
    %cst_19 = arith.constant dense<0.000000e+00> : vector<8x4xf32>
    %50 = tpu.matmul %49, %36, %cst_19 {dimension_numbers = #tpu.dot_dimension_numbers<[1], [0], [0], [1], [0, 0, 1, 1], [], []>} : vector<8x8xf32>, vector<8x4xf32>, vector<8x4xf32> -> vector<8x4xf32>
    %51 = arith.truncf %50 : vector<8x4xf32> to vector<8x4xbf16>
    %52 = vector.extract_strided_slice %11 {offsets = [4, 0], sizes = [4, 32], strides = [1, 1]} : vector<32x32xbf16> to vector<4x32xbf16>
    %cst_20 = arith.constant dense<0.000000e+00> : vector<8x32xf32>
    %53 = tpu.matmul %51, %52, %cst_20 {dimension_numbers = #tpu.dot_dimension_numbers<[1], [0], [0], [1], [0, 0, 1, 1], [], []>} : vector<8x4xbf16>, vector<4x32xbf16>, vector<8x32xf32> -> vector<8x32xf32>
    %54 = arith.addf %33, %53 : vector<8x32xf32>
    %55 = vector.extract_strided_slice %8 {offsets = [0, 8], sizes = [8, 4], strides = [1, 1]} : vector<8x32xf32> to vector<8x4xf32>
    %56 = vector.extract_strided_slice %9 {offsets = [0, 8], sizes = [8, 4], strides = [1, 1]} : vector<8x32xf32> to vector<8x4xf32>
    %57 = vector.extract_strided_slice %10 {offsets = [0, 8], sizes = [8, 4], strides = [1, 1]} : vector<8x32xf32> to vector<8x4xf32>
    %cst_21 = arith.constant dense<0.000000e+00> : vector<8x8xf32>
    %58 = tpu.matmul %55, %56, %cst_21 {dimension_numbers = #tpu.dot_dimension_numbers<[1], [1], [0], [0], [0, 0, 1, 0], [], []>} : vector<8x4xf32>, vector<8x4xf32>, vector<8x8xf32> -> vector<8x8xf32>
    %cst_22 = arith.constant 5.000000e-01 : f32
    %59 = vector.broadcast %cst_22 : f32 to vector<8x8xf32>
    %60 = arith.mulf %58, %59 : vector<8x8xf32>
    %cst_23 = arith.constant dense<0xFF800000> : vector<8xf32>
    %61 = vector.multi_reduction <maximumf>, %60, %cst_23 [1] : vector<8x8xf32> to vector<8xf32>
    %62 = vector.shape_cast %61 : vector<8xf32> to vector<8x1xf32>
    %63 = vector.broadcast %62 : vector<8x1xf32> to vector<8x8xf32>
    %64 = arith.subf %60, %63 : vector<8x8xf32>
    %65 = math.exp %64 : vector<8x8xf32>
    %cst_24 = arith.constant dense<0.000000e+00> : vector<8xf32>
    %66 = vector.multi_reduction <add>, %65, %cst_24 [1] : vector<8x8xf32> to vector<8xf32>
    %67 = vector.shape_cast %66 : vector<8xf32> to vector<8x1xf32>
    %68 = tpu.reciprocal %67 {approx = true} : vector<8x1xf32> -> vector<8x1xf32>
    %69 = vector.broadcast %68 : vector<8x1xf32> to vector<8x8xf32>
    %70 = arith.mulf %65, %69 : vector<8x8xf32>
    %cst_25 = arith.constant dense<0.000000e+00> : vector<8x4xf32>
    %71 = tpu.matmul %70, %57, %cst_25 {dimension_numbers = #tpu.dot_dimension_numbers<[1], [0], [0], [1], [0, 0, 1, 1], [], []>} : vector<8x8xf32>, vector<8x4xf32>, vector<8x4xf32> -> vector<8x4xf32>
    %72 = arith.truncf %71 : vector<8x4xf32> to vector<8x4xbf16>
    %73 = vector.extract_strided_slice %11 {offsets = [8, 0], sizes = [4, 32], strides = [1, 1]} : vector<32x32xbf16> to vector<4x32xbf16>
    %cst_26 = arith.constant dense<0.000000e+00> : vector<8x32xf32>
    %74 = tpu.matmul %72, %73, %cst_26 {dimension_numbers = #tpu.dot_dimension_numbers<[1], [0], [0], [1], [0, 0, 1, 1], [], []>} : vector<8x4xbf16>, vector<4x32xbf16>, vector<8x32xf32> -> vector<8x32xf32>
    %75 = arith.addf %54, %74 : vector<8x32xf32>
    %76 = vector.extract_strided_slice %8 {offsets = [0, 12], sizes = [8, 4], strides = [1, 1]} : vector<8x32xf32> to vector<8x4xf32>
    %77 = vector.extract_strided_slice %9 {offsets = [0, 12], sizes = [8, 4], strides = [1, 1]} : vector<8x32xf32> to vector<8x4xf32>
    %78 = vector.extract_strided_slice %10 {offsets = [0, 12], sizes = [8, 4], strides = [1, 1]} : vector<8x32xf32> to vector<8x4xf32>
    %cst_27 = arith.constant dense<0.000000e+00> : vector<8x8xf32>
    %79 = tpu.matmul %76, %77, %cst_27 {dimension_numbers = #tpu.dot_dimension_numbers<[1], [1], [0], [0], [0, 0, 1, 0], [], []>} : vector<8x4xf32>, vector<8x4xf32>, vector<8x8xf32> -> vector<8x8xf32>
    %cst_28 = arith.constant 5.000000e-01 : f32
    %80 = vector.broadcast %cst_28 : f32 to vector<8x8xf32>
    %81 = arith.mulf %79, %80 : vector<8x8xf32>
    %cst_29 = arith.constant dense<0xFF800000> : vector<8xf32>
    %82 = vector.multi_reduction <maximumf>, %81, %cst_29 [1] : vector<8x8xf32> to vector<8xf32>
    %83 = vector.shape_cast %82 : vector<8xf32> to vector<8x1xf32>
    %84 = vector.broadcast %83 : vector<8x1xf32> to vector<8x8xf32>
    %85 = arith.subf %81, %84 : vector<8x8xf32>
    %86 = math.exp %85 : vector<8x8xf32>
    %cst_30 = arith.constant dense<0.000000e+00> : vector<8xf32>
    %87 = vector.multi_reduction <add>, %86, %cst_30 [1] : vector<8x8xf32> to vector<8xf32>
    %88 = vector.shape_cast %87 : vector<8xf32> to vector<8x1xf32>
    %89 = tpu.reciprocal %88 {approx = true} : vector<8x1xf32> -> vector<8x1xf32>
    %90 = vector.broadcast %89 : vector<8x1xf32> to vector<8x8xf32>
    %91 = arith.mulf %86, %90 : vector<8x8xf32>
    %cst_31 = arith.constant dense<0.000000e+00> : vector<8x4xf32>
    %92 = tpu.matmul %91, %78, %cst_31 {dimension_numbers = #tpu.dot_dimension_numbers<[1], [0], [0], [1], [0, 0, 1, 1], [], []>} : vector<8x8xf32>, vector<8x4xf32>, vector<8x4xf32> -> vector<8x4xf32>
    %93 = arith.truncf %92 : vector<8x4xf32> to vector<8x4xbf16>
    %94 = vector.extract_strided_slice %11 {offsets = [12, 0], sizes = [4, 32], strides = [1, 1]} : vector<32x32xbf16> to vector<4x32xbf16>
    %cst_32 = arith.constant dense<0.000000e+00> : vector<8x32xf32>
    %95 = tpu.matmul %93, %94, %cst_32 {dimension_numbers = #tpu.dot_dimension_numbers<[1], [0], [0], [1], [0, 0, 1, 1], [], []>} : vector<8x4xbf16>, vector<4x32xbf16>, vector<8x32xf32> -> vector<8x32xf32>
    %96 = arith.addf %75, %95 : vector<8x32xf32>
    %97 = vector.extract_strided_slice %8 {offsets = [0, 16], sizes = [8, 4], strides = [1, 1]} : vector<8x32xf32> to vector<8x4xf32>
    %98 = vector.extract_strided_slice %9 {offsets = [0, 16], sizes = [8, 4], strides = [1, 1]} : vector<8x32xf32> to vector<8x4xf32>
    %99 = vector.extract_strided_slice %10 {offsets = [0, 16], sizes = [8, 4], strides = [1, 1]} : vector<8x32xf32> to vector<8x4xf32>
    %cst_33 = arith.constant dense<0.000000e+00> : vector<8x8xf32>
    %100 = tpu.matmul %97, %98, %cst_33 {dimension_numbers = #tpu.dot_dimension_numbers<[1], [1], [0], [0], [0, 0, 1, 0], [], []>} : vector<8x4xf32>, vector<8x4xf32>, vector<8x8xf32> -> vector<8x8xf32>
    %cst_34 = arith.constant 5.000000e-01 : f32
    %101 = vector.broadcast %cst_34 : f32 to vector<8x8xf32>
    %102 = arith.mulf %100, %101 : vector<8x8xf32>
    %cst_35 = arith.constant dense<0xFF800000> : vector<8xf32>
    %103 = vector.multi_reduction <maximumf>, %102, %cst_35 [1] : vector<8x8xf32> to vector<8xf32>
    %104 = vector.shape_cast %103 : vector<8xf32> to vector<8x1xf32>
    %105 = vector.broadcast %104 : vector<8x1xf32> to vector<8x8xf32>
    %106 = arith.subf %102, %105 : vector<8x8xf32>
    %107 = math.exp %106 : vector<8x8xf32>
    %cst_36 = arith.constant dense<0.000000e+00> : vector<8xf32>
    %108 = vector.multi_reduction <add>, %107, %cst_36 [1] : vector<8x8xf32> to vector<8xf32>
    %109 = vector.shape_cast %108 : vector<8xf32> to vector<8x1xf32>
    %110 = tpu.reciprocal %109 {approx = true} : vector<8x1xf32> -> vector<8x1xf32>
    %111 = vector.broadcast %110 : vector<8x1xf32> to vector<8x8xf32>
    %112 = arith.mulf %107, %111 : vector<8x8xf32>
    %cst_37 = arith.constant dense<0.000000e+00> : vector<8x4xf32>
    %113 = tpu.matmul %112, %99, %cst_37 {dimension_numbers = #tpu.dot_dimension_numbers<[1], [0], [0], [1], [0, 0, 1, 1], [], []>} : vector<8x8xf32>, vector<8x4xf32>, vector<8x4xf32> -> vector<8x4xf32>
    %114 = arith.truncf %113 : vector<8x4xf32> to vector<8x4xbf16>
    %115 = vector.extract_strided_slice %11 {offsets = [16, 0], sizes = [4, 32], strides = [1, 1]} : vector<32x32xbf16> to vector<4x32xbf16>
    %cst_38 = arith.constant dense<0.000000e+00> : vector<8x32xf32>
    %116 = tpu.matmul %114, %115, %cst_38 {dimension_numbers = #tpu.dot_dimension_numbers<[1], [0], [0], [1], [0, 0, 1, 1], [], []>} : vector<8x4xbf16>, vector<4x32xbf16>, vector<8x32xf32> -> vector<8x32xf32>
    %117 = arith.addf %96, %116 : vector<8x32xf32>
    %118 = vector.extract_strided_slice %8 {offsets = [0, 20], sizes = [8, 4], strides = [1, 1]} : vector<8x32xf32> to vector<8x4xf32>
    %119 = vector.extract_strided_slice %9 {offsets = [0, 20], sizes = [8, 4], strides = [1, 1]} : vector<8x32xf32> to vector<8x4xf32>
    %120 = vector.extract_strided_slice %10 {offsets = [0, 20], sizes = [8, 4], strides = [1, 1]} : vector<8x32xf32> to vector<8x4xf32>
    %cst_39 = arith.constant dense<0.000000e+00> : vector<8x8xf32>
    %121 = tpu.matmul %118, %119, %cst_39 {dimension_numbers = #tpu.dot_dimension_numbers<[1], [1], [0], [0], [0, 0, 1, 0], [], []>} : vector<8x4xf32>, vector<8x4xf32>, vector<8x8xf32> -> vector<8x8xf32>
    %cst_40 = arith.constant 5.000000e-01 : f32
    %122 = vector.broadcast %cst_40 : f32 to vector<8x8xf32>
    %123 = arith.mulf %121, %122 : vector<8x8xf32>
    %cst_41 = arith.constant dense<0xFF800000> : vector<8xf32>
    %124 = vector.multi_reduction <maximumf>, %123, %cst_41 [1] : vector<8x8xf32> to vector<8xf32>
    %125 = vector.shape_cast %124 : vector<8xf32> to vector<8x1xf32>
    %126 = vector.broadcast %125 : vector<8x1xf32> to vector<8x8xf32>
    %127 = arith.subf %123, %126 : vector<8x8xf32>
    %128 = math.exp %127 : vector<8x8xf32>
    %cst_42 = arith.constant dense<0.000000e+00> : vector<8xf32>
    %129 = vector.multi_reduction <add>, %128, %cst_42 [1] : vector<8x8xf32> to vector<8xf32>
    %130 = vector.shape_cast %129 : vector<8xf32> to vector<8x1xf32>
    %131 = tpu.reciprocal %130 {approx = true} : vector<8x1xf32> -> vector<8x1xf32>
    %132 = vector.broadcast %131 : vector<8x1xf32> to vector<8x8xf32>
    %133 = arith.mulf %128, %132 : vector<8x8xf32>
    %cst_43 = arith.constant dense<0.000000e+00> : vector<8x4xf32>
    %134 = tpu.matmul %133, %120, %cst_43 {dimension_numbers = #tpu.dot_dimension_numbers<[1], [0], [0], [1], [0, 0, 1, 1], [], []>} : vector<8x8xf32>, vector<8x4xf32>, vector<8x4xf32> -> vector<8x4xf32>
    %135 = arith.truncf %134 : vector<8x4xf32> to vector<8x4xbf16>
    %136 = vector.extract_strided_slice %11 {offsets = [20, 0], sizes = [4, 32], strides = [1, 1]} : vector<32x32xbf16> to vector<4x32xbf16>
    %cst_44 = arith.constant dense<0.000000e+00> : vector<8x32xf32>
    %137 = tpu.matmul %135, %136, %cst_44 {dimension_numbers = #tpu.dot_dimension_numbers<[1], [0], [0], [1], [0, 0, 1, 1], [], []>} : vector<8x4xbf16>, vector<4x32xbf16>, vector<8x32xf32> -> vector<8x32xf32>
    %138 = arith.addf %117, %137 : vector<8x32xf32>
    %139 = vector.extract_strided_slice %8 {offsets = [0, 24], sizes = [8, 4], strides = [1, 1]} : vector<8x32xf32> to vector<8x4xf32>
    %140 = vector.extract_strided_slice %9 {offsets = [0, 24], sizes = [8, 4], strides = [1, 1]} : vector<8x32xf32> to vector<8x4xf32>
    %141 = vector.extract_strided_slice %10 {offsets = [0, 24], sizes = [8, 4], strides = [1, 1]} : vector<8x32xf32> to vector<8x4xf32>
    %cst_45 = arith.constant dense<0.000000e+00> : vector<8x8xf32>
    %142 = tpu.matmul %139, %140, %cst_45 {dimension_numbers = #tpu.dot_dimension_numbers<[1], [1], [0], [0], [0, 0, 1, 0], [], []>} : vector<8x4xf32>, vector<8x4xf32>, vector<8x8xf32> -> vector<8x8xf32>
    %cst_46 = arith.constant 5.000000e-01 : f32
    %143 = vector.broadcast %cst_46 : f32 to vector<8x8xf32>
    %144 = arith.mulf %142, %143 : vector<8x8xf32>
    %cst_47 = arith.constant dense<0xFF800000> : vector<8xf32>
    %145 = vector.multi_reduction <maximumf>, %144, %cst_47 [1] : vector<8x8xf32> to vector<8xf32>
    %146 = vector.shape_cast %145 : vector<8xf32> to vector<8x1xf32>
    %147 = vector.broadcast %146 : vector<8x1xf32> to vector<8x8xf32>
    %148 = arith.subf %144, %147 : vector<8x8xf32>
    %149 = math.exp %148 : vector<8x8xf32>
    %cst_48 = arith.constant dense<0.000000e+00> : vector<8xf32>
    %150 = vector.multi_reduction <add>, %149, %cst_48 [1] : vector<8x8xf32> to vector<8xf32>
    %151 = vector.shape_cast %150 : vector<8xf32> to vector<8x1xf32>
    %152 = tpu.reciprocal %151 {approx = true} : vector<8x1xf32> -> vector<8x1xf32>
    %153 = vector.broadcast %152 : vector<8x1xf32> to vector<8x8xf32>
    %154 = arith.mulf %149, %153 : vector<8x8xf32>
    %cst_49 = arith.constant dense<0.000000e+00> : vector<8x4xf32>
    %155 = tpu.matmul %154, %141, %cst_49 {dimension_numbers = #tpu.dot_dimension_numbers<[1], [0], [0], [1], [0, 0, 1, 1], [], []>} : vector<8x8xf32>, vector<8x4xf32>, vector<8x4xf32> -> vector<8x4xf32>
    %156 = arith.truncf %155 : vector<8x4xf32> to vector<8x4xbf16>
    %157 = vector.extract_strided_slice %11 {offsets = [24, 0], sizes = [4, 32], strides = [1, 1]} : vector<32x32xbf16> to vector<4x32xbf16>
    %cst_50 = arith.constant dense<0.000000e+00> : vector<8x32xf32>
    %158 = tpu.matmul %156, %157, %cst_50 {dimension_numbers = #tpu.dot_dimension_numbers<[1], [0], [0], [1], [0, 0, 1, 1], [], []>} : vector<8x4xbf16>, vector<4x32xbf16>, vector<8x32xf32> -> vector<8x32xf32>
    %159 = arith.addf %138, %158 : vector<8x32xf32>
    %160 = vector.extract_strided_slice %8 {offsets = [0, 28], sizes = [8, 4], strides = [1, 1]} : vector<8x32xf32> to vector<8x4xf32>
    %161 = vector.extract_strided_slice %9 {offsets = [0, 28], sizes = [8, 4], strides = [1, 1]} : vector<8x32xf32> to vector<8x4xf32>
    %162 = vector.extract_strided_slice %10 {offsets = [0, 28], sizes = [8, 4], strides = [1, 1]} : vector<8x32xf32> to vector<8x4xf32>
    %cst_51 = arith.constant dense<0.000000e+00> : vector<8x8xf32>
    %163 = tpu.matmul %160, %161, %cst_51 {dimension_numbers = #tpu.dot_dimension_numbers<[1], [1], [0], [0], [0, 0, 1, 0], [], []>} : vector<8x4xf32>, vector<8x4xf32>, vector<8x8xf32> -> vector<8x8xf32>
    %cst_52 = arith.constant 5.000000e-01 : f32
    %164 = vector.broadcast %cst_52 : f32 to vector<8x8xf32>
    %165 = arith.mulf %163, %164 : vector<8x8xf32>
    %cst_53 = arith.constant dense<0xFF800000> : vector<8xf32>
    %166 = vector.multi_reduction <maximumf>, %165, %cst_53 [1] : vector<8x8xf32> to vector<8xf32>
    %167 = vector.shape_cast %166 : vector<8xf32> to vector<8x1xf32>
    %168 = vector.broadcast %167 : vector<8x1xf32> to vector<8x8xf32>
    %169 = arith.subf %165, %168 : vector<8x8xf32>
    %170 = math.exp %169 : vector<8x8xf32>
    %cst_54 = arith.constant dense<0.000000e+00> : vector<8xf32>
    %171 = vector.multi_reduction <add>, %170, %cst_54 [1] : vector<8x8xf32> to vector<8xf32>
    %172 = vector.shape_cast %171 : vector<8xf32> to vector<8x1xf32>
    %173 = tpu.reciprocal %172 {approx = true} : vector<8x1xf32> -> vector<8x1xf32>
    %174 = vector.broadcast %173 : vector<8x1xf32> to vector<8x8xf32>
    %175 = arith.mulf %170, %174 : vector<8x8xf32>
    %cst_55 = arith.constant dense<0.000000e+00> : vector<8x4xf32>
    %176 = tpu.matmul %175, %162, %cst_55 {dimension_numbers = #tpu.dot_dimension_numbers<[1], [0], [0], [1], [0, 0, 1, 1], [], []>} : vector<8x8xf32>, vector<8x4xf32>, vector<8x4xf32> -> vector<8x4xf32>
    %177 = arith.truncf %176 : vector<8x4xf32> to vector<8x4xbf16>
    %178 = vector.extract_strided_slice %11 {offsets = [28, 0], sizes = [4, 32], strides = [1, 1]} : vector<32x32xbf16> to vector<4x32xbf16>
    %cst_56 = arith.constant dense<0.000000e+00> : vector<8x32xf32>
    %179 = tpu.matmul %177, %178, %cst_56 {dimension_numbers = #tpu.dot_dimension_numbers<[1], [0], [0], [1], [0, 0, 1, 1], [], []>} : vector<8x4xbf16>, vector<4x32xbf16>, vector<8x32xf32> -> vector<8x32xf32>
    %180 = arith.addf %159, %179 : vector<8x32xf32>
    %c0_57 = arith.constant 0 : index
    %c0_58 = arith.constant 0 : index
    %181 = vector.load %arg5[%c0_57, %c0_58] : memref<1x32xf32, #tpu.memory_space<vmem>>, vector<1x32xf32>
    %182 = vector.broadcast %181 : vector<1x32xf32> to vector<8x32xf32>
    %183 = arith.addf %180, %182 : vector<8x32xf32>
    %184 = arith.addf %1, %183 : vector<8x32xf32>
    %cst_59 = arith.constant dense<0.000000e+00> : vector<8xf32>
    %185 = vector.multi_reduction <add>, %184, %cst_59 [1] : vector<8x32xf32> to vector<8xf32>
    %186 = vector.shape_cast %185 : vector<8xf32> to vector<8x1xf32>
    %cst_60 = arith.constant 3.200000e+01 : f32
    %187 = vector.broadcast %cst_60 : f32 to vector<8x1xf32>
    %188 = arith.divf %186, %187 : vector<8x1xf32>
    %189 = vector.broadcast %188 : vector<8x1xf32> to vector<8x32xf32>
    %190 = arith.subf %184, %189 : vector<8x32xf32>
    %191 = arith.mulf %190, %190 : vector<8x32xf32>
    %cst_61 = arith.constant dense<0.000000e+00> : vector<8xf32>
    %192 = vector.multi_reduction <add>, %191, %cst_61 [1] : vector<8x32xf32> to vector<8xf32>
    %193 = vector.shape_cast %192 : vector<8xf32> to vector<8x1xf32>
    %cst_62 = arith.constant 3.200000e+01 : f32
    %194 = vector.broadcast %cst_62 : f32 to vector<8x1xf32>
    %195 = arith.divf %193, %194 : vector<8x1xf32>
    %196 = vector.broadcast %188 : vector<8x1xf32> to vector<8x32xf32>
    %197 = arith.subf %184, %196 : vector<8x32xf32>
    %cst_63 = arith.constant 9.99999974E-6 : f32
    %198 = vector.broadcast %cst_63 : f32 to vector<8x1xf32>
    %199 = arith.addf %195, %198 : vector<8x1xf32>
    %200 = math.rsqrt %199 : vector<8x1xf32>
    %201 = vector.broadcast %200 : vector<8x1xf32> to vector<8x32xf32>
    %202 = arith.mulf %197, %201 : vector<8x32xf32>
    %c0_64 = arith.constant 0 : index
    %c0_65 = arith.constant 0 : index
    %203 = vector.load %arg6[%c0_64, %c0_65] : memref<1x32xf32, #tpu.memory_space<vmem>>, vector<1x32xf32>
    %204 = vector.broadcast %203 : vector<1x32xf32> to vector<8x32xf32>
    %205 = arith.mulf %202, %204 : vector<8x32xf32>
    %c0_66 = arith.constant 0 : index
    %c0_67 = arith.constant 0 : index
    %206 = vector.load %arg7[%c0_66, %c0_67] : memref<1x32xf32, #tpu.memory_space<vmem>>, vector<1x32xf32>
    %207 = vector.broadcast %206 : vector<1x32xf32> to vector<8x32xf32>
    %208 = arith.addf %205, %207 : vector<8x32xf32>
    %209 = arith.truncf %208 : vector<8x32xf32> to vector<8x32xbf16>
    %c0_68 = arith.constant 0 : index
    %c0_69 = arith.constant 0 : index
    %210 = vector.load %arg8[%c0_68, %c0_69] : memref<32x2048xbf16, #tpu.memory_space<vmem>>, vector<32x2048xbf16>
    %cst_70 = arith.constant dense<0.000000e+00> : vector<8x2048xf32>
    %211 = tpu.matmul %209, %210, %cst_70 {dimension_numbers = #tpu.dot_dimension_numbers<[1], [0], [0], [1], [0, 0, 1, 1], [], []>} : vector<8x32xbf16>, vector<32x2048xbf16>, vector<8x2048xf32> -> vector<8x2048xf32>
    %c0_71 = arith.constant 0 : index
    %c0_72 = arith.constant 0 : index
    %212 = vector.load %arg9[%c0_71, %c0_72] : memref<1x2048xf32, #tpu.memory_space<vmem>>, vector<1x2048xf32>
    %213 = vector.broadcast %212 : vector<1x2048xf32> to vector<8x2048xf32>
    %214 = arith.addf %211, %213 : vector<8x2048xf32>
    %cst_73 = arith.constant 0.000000e+00 : f32
    %215 = vector.broadcast %cst_73 : f32 to vector<8x2048xf32>
    %216 = arith.maximumf %214, %215 : vector<8x2048xf32>
    %217 = arith.truncf %216 : vector<8x2048xf32> to vector<8x2048xbf16>
    %c0_74 = arith.constant 0 : index
    %c0_75 = arith.constant 0 : index
    %218 = vector.load %arg10[%c0_74, %c0_75] : memref<2048x32xbf16, #tpu.memory_space<vmem>>, vector<2048x32xbf16>
    %cst_76 = arith.constant dense<0.000000e+00> : vector<8x32xf32>
    %219 = tpu.matmul %217, %218, %cst_76 {dimension_numbers = #tpu.dot_dimension_numbers<[1], [0], [0], [1], [0, 0, 1, 1], [], []>} : vector<8x2048xbf16>, vector<2048x32xbf16>, vector<8x32xf32> -> vector<8x32xf32>
    %c0_77 = arith.constant 0 : index
    %c0_78 = arith.constant 0 : index
    %220 = vector.load %arg11[%c0_77, %c0_78] : memref<1x32xf32, #tpu.memory_space<vmem>>, vector<1x32xf32>
    %221 = vector.broadcast %220 : vector<1x32xf32> to vector<8x32xf32>
    %222 = arith.addf %219, %221 : vector<8x32xf32>
    %223 = arith.addf %208, %222 : vector<8x32xf32>
    %cst_79 = arith.constant dense<0.000000e+00> : vector<8xf32>
    %224 = vector.multi_reduction <add>, %223, %cst_79 [1] : vector<8x32xf32> to vector<8xf32>
    %225 = vector.shape_cast %224 : vector<8xf32> to vector<8x1xf32>
    %cst_80 = arith.constant 3.200000e+01 : f32
    %226 = vector.broadcast %cst_80 : f32 to vector<8x1xf32>
    %227 = arith.divf %225, %226 : vector<8x1xf32>
    %228 = vector.broadcast %227 : vector<8x1xf32> to vector<8x32xf32>
    %229 = arith.subf %223, %228 : vector<8x32xf32>
    %230 = arith.mulf %229, %229 : vector<8x32xf32>
    %cst_81 = arith.constant dense<0.000000e+00> : vector<8xf32>
    %231 = vector.multi_reduction <add>, %230, %cst_81 [1] : vector<8x32xf32> to vector<8xf32>
    %232 = vector.shape_cast %231 : vector<8xf32> to vector<8x1xf32>
    %cst_82 = arith.constant 3.200000e+01 : f32
    %233 = vector.broadcast %cst_82 : f32 to vector<8x1xf32>
    %234 = arith.divf %232, %233 : vector<8x1xf32>
    %235 = vector.broadcast %227 : vector<8x1xf32> to vector<8x32xf32>
    %236 = arith.subf %223, %235 : vector<8x32xf32>
    %cst_83 = arith.constant 9.99999974E-6 : f32
    %237 = vector.broadcast %cst_83 : f32 to vector<8x1xf32>
    %238 = arith.addf %234, %237 : vector<8x1xf32>
    %239 = math.rsqrt %238 : vector<8x1xf32>
    %240 = vector.broadcast %239 : vector<8x1xf32> to vector<8x32xf32>
    %241 = arith.mulf %236, %240 : vector<8x32xf32>
    %c0_84 = arith.constant 0 : index
    %c0_85 = arith.constant 0 : index
    %242 = vector.load %arg12[%c0_84, %c0_85] : memref<1x32xf32, #tpu.memory_space<vmem>>, vector<1x32xf32>
    %243 = vector.broadcast %242 : vector<1x32xf32> to vector<8x32xf32>
    %244 = arith.mulf %241, %243 : vector<8x32xf32>
    %c0_86 = arith.constant 0 : index
    %c0_87 = arith.constant 0 : index
    %245 = vector.load %arg13[%c0_86, %c0_87] : memref<1x32xf32, #tpu.memory_space<vmem>>, vector<1x32xf32>
    %246 = vector.broadcast %245 : vector<1x32xf32> to vector<8x32xf32>
    %247 = arith.addf %244, %246 : vector<8x32xf32>
    %c0_88 = arith.constant 0 : index
    %c0_89 = arith.constant 0 : index
    %c0_90 = arith.constant 0 : index
    %248 = vector.load %arg14[%c0_88, %c0_89, %c0_90] : memref<1x8x32xf32, #tpu.memory_space<vmem>>, vector<1x8x32xf32>
    %249 = vector.shape_cast %248 : vector<1x8x32xf32> to vector<8x32xf32>
    %250 = vector.shape_cast %247 : vector<8x32xf32> to vector<1x8x32xf32>
    tpu.vector_store %arg14[%c0_88, %c0_89, %c0_90], %250 {strides = array<i32>} : memref<1x8x32xf32, #tpu.memory_space<vmem>>, vector<1x8x32xf32>,
    return
  }
  func.func @transform_0(%arg0: i32) -> (i32, i32, i32) {
    %c0_i32 = arith.constant 0 : i32
    %c0_i32_0 = arith.constant 0 : i32
    %c0_i32_1 = arith.constant 0 : i32
    return %arg0, %c0_i32, %c0_i32_0 : i32, i32, i32
  }
  func.func @transform_1(%arg0: i32) -> (i32, i32) {
    %c0_i32 = arith.constant 0 : i32
    %c0_i32_0 = arith.constant 0 : i32
    %c0_i32_1 = arith.constant 0 : i32
    return %c0_i32, %c0_i32_0 : i32, i32
  }
  func.func @transform_2(%arg0: i32) -> (i32, i32) {
    %c0_i32 = arith.constant 0 : i32
    %c0_i32_0 = arith.constant 0 : i32
    %c0_i32_1 = arith.constant 0 : i32
    return %c0_i32, %c0_i32_0 : i32, i32
  }
  func.func @transform_3(%arg0: i32) -> (i32, i32) {
    %c0_i32 = arith.constant 0 : i32
    %c0_i32_0 = arith.constant 0 : i32
    %c0_i32_1 = arith.constant 0 : i32
    return %c0_i32, %c0_i32_0 : i32, i32
  }
  func.func @transform_4(%arg0: i32) -> (i32, i32) {
    %c0_i32 = arith.constant 0 : i32
    %c0_i32_0 = arith.constant 0 : i32
    %c0_i32_1 = arith.constant 0 : i32
    return %c0_i32, %c0_i32_0 : i32, i32
  }
  func.func @transform_5(%arg0: i32) -> (i32, i32) {
    %c0_i32 = arith.constant 0 : i32
    %c0_i32_0 = arith.constant 0 : i32
    %c0_i32_1 = arith.constant 0 : i32
    return %c0_i32, %c0_i32_0 : i32, i32
  }
  func.func @transform_6(%arg0: i32) -> (i32, i32) {
    %c0_i32 = arith.constant 0 : i32
    %c0_i32_0 = arith.constant 0 : i32
    %c0_i32_1 = arith.constant 0 : i32
    return %c0_i32, %c0_i32_0 : i32, i32
  }
  func.func @transform_7(%arg0: i32) -> (i32, i32) {
    %c0_i32 = arith.constant 0 : i32
    %c0_i32_0 = arith.constant 0 : i32
    %c0_i32_1 = arith.constant 0 : i32
    return %c0_i32, %c0_i32_0 : i32, i32
  }
  func.func @transform_8(%arg0: i32) -> (i32, i32) {
    %c0_i32 = arith.constant 0 : i32
    %c0_i32_0 = arith.constant 0 : i32
    %c0_i32_1 = arith.constant 0 : i32
    return %c0_i32, %c0_i32_0 : i32, i32
  }
  func.func @transform_9(%arg0: i32) -> (i32, i32) {
    %c0_i32 = arith.constant 0 : i32
    %c0_i32_0 = arith.constant 0 : i32
    %c0_i32_1 = arith.constant 0 : i32
    return %c0_i32, %c0_i32_0 : i32, i32
  }
  func.func @transform_10(%arg0: i32) -> (i32, i32) {
    %c0_i32 = arith.constant 0 : i32
    %c0_i32_0 = arith.constant 0 : i32
    %c0_i32_1 = arith.constant 0 : i32
    return %c0_i32, %c0_i32_0 : i32, i32
  }
  func.func @transform_11(%arg0: i32) -> (i32, i32) {
    %c0_i32 = arith.constant 0 : i32
    %c0_i32_0 = arith.constant 0 : i32
    %c0_i32_1 = arith.constant 0 : i32
    return %c0_i32, %c0_i32_0 : i32, i32
  }
  func.func @transform_12(%arg0: i32) -> (i32, i32) {
    %c0_i32 = arith.constant 0 : i32
    %c0_i32_0 = arith.constant 0 : i32
    %c0_i32_1 = arith.constant 0 : i32
    return %c0_i32, %c0_i32_0 : i32, i32
  }
  func.func @transform_13(%arg0: i32) -> (i32, i32, i32) {
    %c0_i32 = arith.constant 0 : i32
    %c0_i32_0 = arith.constant 0 : i32
    %c0_i32_1 = arith.constant 0 : i32
    return %arg0, %c0_i32, %c0_i32_0 : i32, i32, i32
  }
}

module attributes {stable_mosaic.version = 11 : i64} {
  func.func @_lstm_seq_kernel(%arg0: i32, %arg1: memref<1x2x32xf32, #tpu.memory_space<vmem>>, %arg2: memref<2x32xi32, #tpu.memory_space<vmem>>, %arg3: memref<4x32x32xbf16, #tpu.memory_space<vmem>>, %arg4: memref<4x32x32xbf16, #tpu.memory_space<vmem>>, %arg5: memref<4x1x32xf32, #tpu.memory_space<vmem>>, %arg6: memref<1x2x32xf32, #tpu.memory_space<vmem>>, %arg7: memref<2x32xf32, #tpu.memory_space<vmem>>, %arg8: memref<2x32xf32, #tpu.memory_space<vmem>>) attributes {dimension_semantics = [#tpu.dimension_semantics<arbitrary>], iteration_bounds = array<i64: 8>, scalar_prefetch = 0 : i64, scratch_operands = 2 : i64, tpu.core_type = #tpu.core_type<tc>, window_params = [{transform_indices = @transform_0, window_bounds = array<i64: 1, 2, 32>}, {pipeline_mode = #tpu.pipeline_mode<synchronous>, transform_indices = @transform_1, window_bounds = array<i64: 2, 32>}, {pipeline_mode = #tpu.pipeline_mode<synchronous>, transform_indices = @transform_2, window_bounds = array<i64: 4, 32, 32>}, {pipeline_mode = #tpu.pipeline_mode<synchronous>, transform_indices = @transform_3, window_bounds = array<i64: 4, 32, 32>}, {pipeline_mode = #tpu.pipeline_mode<synchronous>, transform_indices = @transform_4, window_bounds = array<i64: 4, 1, 32>}, {transform_indices = @transform_5, window_bounds = array<i64: 1, 2, 32>}]} {
    %c0_i32 = arith.constant 0 : i32
    %0 = arith.cmpi eq, %arg0, %c0_i32 : i32
    %1 = arith.extui %0 : i1 to i32
    %c0_i32_0 = arith.constant 0 : i32
    %2 = arith.cmpi ne, %1, %c0_i32_0 : i32
    scf.if %2 {
      %cst_60 = arith.constant 0.000000e+00 : f32
      %86 = vector.broadcast %cst_60 : f32 to vector<2x32xf32>
      %c0_61 = arith.constant 0 : index
      %c0_62 = arith.constant 0 : index
      %87 = vector.load %arg7[%c0_61, %c0_62] : memref<2x32xf32, #tpu.memory_space<vmem>>, vector<2x32xf32>
      tpu.vector_store %arg7[%c0_61, %c0_62], %86 {strides = array<i32>} : memref<2x32xf32, #tpu.memory_space<vmem>>, vector<2x32xf32>,
      %cst_63 = arith.constant 0.000000e+00 : f32
      %88 = vector.broadcast %cst_63 : f32 to vector<2x32xf32>
      %c0_64 = arith.constant 0 : index
      %c0_65 = arith.constant 0 : index
      %89 = vector.load %arg8[%c0_64, %c0_65] : memref<2x32xf32, #tpu.memory_space<vmem>>, vector<2x32xf32>
      tpu.vector_store %arg8[%c0_64, %c0_65], %88 {strides = array<i32>} : memref<2x32xf32, #tpu.memory_space<vmem>>, vector<2x32xf32>,
    } else {
    }
    %c0 = arith.constant 0 : index
    %c0_1 = arith.constant 0 : index
    %c0_2 = arith.constant 0 : index
    %3 = vector.load %arg1[%c0, %c0_1, %c0_2] : memref<1x2x32xf32, #tpu.memory_space<vmem>>, vector<1x2x32xf32>
    %4 = vector.shape_cast %3 : vector<1x2x32xf32> to vector<2x32xf32>
    %c0_3 = arith.constant 0 : index
    %c0_4 = arith.constant 0 : index
    %5 = vector.load %arg7[%c0_3, %c0_4] : memref<2x32xf32, #tpu.memory_space<vmem>>, vector<2x32xf32>
    %c0_5 = arith.constant 0 : index
    %c0_6 = arith.constant 0 : index
    %6 = vector.load %arg8[%c0_5, %c0_6] : memref<2x32xf32, #tpu.memory_space<vmem>>, vector<2x32xf32>
    %7 = arith.truncf %4 : vector<2x32xf32> to vector<2x32xbf16>
    %8 = arith.truncf %5 : vector<2x32xf32> to vector<2x32xbf16>
    %c0_7 = arith.constant 0 : index
    %c0_8 = arith.constant 0 : index
    %c0_9 = arith.constant 0 : index
    %9 = vector.load %arg3[%c0_7, %c0_8, %c0_9] : memref<4x32x32xbf16, #tpu.memory_space<vmem>>, vector<1x32x32xbf16>
    %10 = vector.shape_cast %9 : vector<1x32x32xbf16> to vector<32x32xbf16>
    %cst = arith.constant dense<0.000000e+00> : vector<2x32xf32>
    %11 = tpu.matmul %7, %10, %cst {dimension_numbers = #tpu.dot_dimension_numbers<[1], [0], [0], [1], [0, 0, 1, 1], [], []>} : vector<2x32xbf16>, vector<32x32xbf16>, vector<2x32xf32> -> vector<2x32xf32>
    %c0_10 = arith.constant 0 : index
    %c0_11 = arith.constant 0 : index
    %c0_12 = arith.constant 0 : index
    %12 = vector.load %arg4[%c0_10, %c0_11, %c0_12] : memref<4x32x32xbf16, #tpu.memory_space<vmem>>, vector<1x32x32xbf16>
    %13 = vector.shape_cast %12 : vector<1x32x32xbf16> to vector<32x32xbf16>
    %cst_13 = arith.constant dense<0.000000e+00> : vector<2x32xf32>
    %14 = tpu.matmul %8, %13, %cst_13 {dimension_numbers = #tpu.dot_dimension_numbers<[1], [0], [0], [1], [0, 0, 1, 1], [], []>} : vector<2x32xbf16>, vector<32x32xbf16>, vector<2x32xf32> -> vector<2x32xf32>
    %15 = arith.addf %11, %14 : vector<2x32xf32>
    %c0_14 = arith.constant 0 : index
    %c0_15 = arith.constant 0 : index
    %c0_16 = arith.constant 0 : index
    %16 = vector.load %arg5[%c0_14, %c0_15, %c0_16] : memref<4x1x32xf32, #tpu.memory_space<vmem>>, vector<1x1x32xf32>
    %17 = vector.shape_cast %16 : vector<1x1x32xf32> to vector<1x32xf32>
    %18 = vector.broadcast %17 : vector<1x32xf32> to vector<2x32xf32>
    %19 = arith.addf %15, %18 : vector<2x32xf32>
    %c1 = arith.constant 1 : index
    %c0_17 = arith.constant 0 : index
    %c0_18 = arith.constant 0 : index
    %20 = vector.load %arg3[%c1, %c0_17, %c0_18] : memref<4x32x32xbf16, #tpu.memory_space<vmem>>, vector<1x32x32xbf16>
    %21 = vector.shape_cast %20 : vector<1x32x32xbf16> to vector<32x32xbf16>
    %cst_19 = arith.constant dense<0.000000e+00> : vector<2x32xf32>
    %22 = tpu.matmul %7, %21, %cst_19 {dimension_numbers = #tpu.dot_dimension_numbers<[1], [0], [0], [1], [0, 0, 1, 1], [], []>} : vector<2x32xbf16>, vector<32x32xbf16>, vector<2x32xf32> -> vector<2x32xf32>
    %c1_20 = arith.constant 1 : index
    %c0_21 = arith.constant 0 : index
    %c0_22 = arith.constant 0 : index
    %23 = vector.load %arg4[%c1_20, %c0_21, %c0_22] : memref<4x32x32xbf16, #tpu.memory_space<vmem>>, vector<1x32x32xbf16>
    %24 = vector.shape_cast %23 : vector<1x32x32xbf16> to vector<32x32xbf16>
    %cst_23 = arith.constant dense<0.000000e+00> : vector<2x32xf32>
    %25 = tpu.matmul %8, %24, %cst_23 {dimension_numbers = #tpu.dot_dimension_numbers<[1], [0], [0], [1], [0, 0, 1, 1], [], []>} : vector<2x32xbf16>, vector<32x32xbf16>, vector<2x32xf32> -> vector<2x32xf32>
    %26 = arith.addf %22, %25 : vector<2x32xf32>
    %c1_24 = arith.constant 1 : index
    %c0_25 = arith.constant 0 : index
    %c0_26 = arith.constant 0 : index
    %27 = vector.load %arg5[%c1_24, %c0_25, %c0_26] : memref<4x1x32xf32, #tpu.memory_space<vmem>>, vector<1x1x32xf32>
    %28 = vector.shape_cast %27 : vector<1x1x32xf32> to vector<1x32xf32>
    %29 = vector.broadcast %28 : vector<1x32xf32> to vector<2x32xf32>
    %30 = arith.addf %26, %29 : vector<2x32xf32>
    %c2 = arith.constant 2 : index
    %c0_27 = arith.constant 0 : index
    %c0_28 = arith.constant 0 : index
    %31 = vector.load %arg3[%c2, %c0_27, %c0_28] : memref<4x32x32xbf16, #tpu.memory_space<vmem>>, vector<1x32x32xbf16>
    %32 = vector.shape_cast %31 : vector<1x32x32xbf16> to vector<32x32xbf16>
    %cst_29 = arith.constant dense<0.000000e+00> : vector<2x32xf32>
    %33 = tpu.matmul %7, %32, %cst_29 {dimension_numbers = #tpu.dot_dimension_numbers<[1], [0], [0], [1], [0, 0, 1, 1], [], []>} : vector<2x32xbf16>, vector<32x32xbf16>, vector<2x32xf32> -> vector<2x32xf32>
    %c2_30 = arith.constant 2 : index
    %c0_31 = arith.constant 0 : index
    %c0_32 = arith.constant 0 : index
    %34 = vector.load %arg4[%c2_30, %c0_31, %c0_32] : memref<4x32x32xbf16, #tpu.memory_space<vmem>>, vector<1x32x32xbf16>
    %35 = vector.shape_cast %34 : vector<1x32x32xbf16> to vector<32x32xbf16>
    %cst_33 = arith.constant dense<0.000000e+00> : vector<2x32xf32>
    %36 = tpu.matmul %8, %35, %cst_33 {dimension_numbers = #tpu.dot_dimension_numbers<[1], [0], [0], [1], [0, 0, 1, 1], [], []>} : vector<2x32xbf16>, vector<32x32xbf16>, vector<2x32xf32> -> vector<2x32xf32>
    %37 = arith.addf %33, %36 : vector<2x32xf32>
    %c2_34 = arith.constant 2 : index
    %c0_35 = arith.constant 0 : index
    %c0_36 = arith.constant 0 : index
    %38 = vector.load %arg5[%c2_34, %c0_35, %c0_36] : memref<4x1x32xf32, #tpu.memory_space<vmem>>, vector<1x1x32xf32>
    %39 = vector.shape_cast %38 : vector<1x1x32xf32> to vector<1x32xf32>
    %40 = vector.broadcast %39 : vector<1x32xf32> to vector<2x32xf32>
    %41 = arith.addf %37, %40 : vector<2x32xf32>
    %c3 = arith.constant 3 : index
    %c0_37 = arith.constant 0 : index
    %c0_38 = arith.constant 0 : index
    %42 = vector.load %arg3[%c3, %c0_37, %c0_38] : memref<4x32x32xbf16, #tpu.memory_space<vmem>>, vector<1x32x32xbf16>
    %43 = vector.shape_cast %42 : vector<1x32x32xbf16> to vector<32x32xbf16>
    %cst_39 = arith.constant dense<0.000000e+00> : vector<2x32xf32>
    %44 = tpu.matmul %7, %43, %cst_39 {dimension_numbers = #tpu.dot_dimension_numbers<[1], [0], [0], [1], [0, 0, 1, 1], [], []>} : vector<2x32xbf16>, vector<32x32xbf16>, vector<2x32xf32> -> vector<2x32xf32>
    %c3_40 = arith.constant 3 : index
    %c0_41 = arith.constant 0 : index
    %c0_42 = arith.constant 0 : index
    %45 = vector.load %arg4[%c3_40, %c0_41, %c0_42] : memref<4x32x32xbf16, #tpu.memory_space<vmem>>, vector<1x32x32xbf16>
    %46 = vector.shape_cast %45 : vector<1x32x32xbf16> to vector<32x32xbf16>
    %cst_43 = arith.constant dense<0.000000e+00> : vector<2x32xf32>
    %47 = tpu.matmul %8, %46, %cst_43 {dimension_numbers = #tpu.dot_dimension_numbers<[1], [0], [0], [1], [0, 0, 1, 1], [], []>} : vector<2x32xbf16>, vector<32x32xbf16>, vector<2x32xf32> -> vector<2x32xf32>
    %48 = arith.addf %44, %47 : vector<2x32xf32>
    %c3_44 = arith.constant 3 : index
    %c0_45 = arith.constant 0 : index
    %c0_46 = arith.constant 0 : index
    %49 = vector.load %arg5[%c3_44, %c0_45, %c0_46] : memref<4x1x32xf32, #tpu.memory_space<vmem>>, vector<1x1x32xf32>
    %50 = vector.shape_cast %49 : vector<1x1x32xf32> to vector<1x32xf32>
    %51 = vector.broadcast %50 : vector<1x32xf32> to vector<2x32xf32>
    %52 = arith.addf %48, %51 : vector<2x32xf32>
    %53 = arith.negf %19 : vector<2x32xf32>
    %54 = math.exp %53 : vector<2x32xf32>
    %cst_47 = arith.constant 1.000000e+00 : f32
    %55 = vector.broadcast %cst_47 : f32 to vector<2x32xf32>
    %56 = arith.addf %55, %54 : vector<2x32xf32>
    %57 = arith.divf %55, %56 : vector<2x32xf32>
    %58 = arith.negf %30 : vector<2x32xf32>
    %59 = math.exp %58 : vector<2x32xf32>
    %cst_48 = arith.constant 1.000000e+00 : f32
    %60 = vector.broadcast %cst_48 : f32 to vector<2x32xf32>
    %61 = arith.addf %60, %59 : vector<2x32xf32>
    %62 = arith.divf %60, %61 : vector<2x32xf32>
    %63 = math.tanh %41 : vector<2x32xf32>
    %64 = arith.negf %52 : vector<2x32xf32>
    %65 = math.exp %64 : vector<2x32xf32>
    %cst_49 = arith.constant 1.000000e+00 : f32
    %66 = vector.broadcast %cst_49 : f32 to vector<2x32xf32>
    %67 = arith.addf %66, %65 : vector<2x32xf32>
    %68 = arith.divf %66, %67 : vector<2x32xf32>
    %69 = arith.mulf %62, %6 : vector<2x32xf32>
    %70 = arith.mulf %57, %63 : vector<2x32xf32>
    %71 = arith.addf %69, %70 : vector<2x32xf32>
    %72 = math.tanh %71 : vector<2x32xf32>
    %73 = arith.mulf %68, %72 : vector<2x32xf32>
    %c0_50 = arith.constant 0 : index
    %c0_51 = arith.constant 0 : index
    %74 = vector.load %arg2[%c0_50, %c0_51] : memref<2x32xi32, #tpu.memory_space<vmem>>, vector<2x32xi32>
    %75 = vector.broadcast %arg0 : i32 to vector<2x32xi32>
    %76 = arith.cmpi slt, %75, %74 : vector<2x32xi32>
    %77 = arith.select %76, %73, %5 : vector<2x32xi1>, vector<2x32xf32>
    %c0_52 = arith.constant 0 : index
    %c0_53 = arith.constant 0 : index
    %78 = vector.load %arg7[%c0_52, %c0_53] : memref<2x32xf32, #tpu.memory_space<vmem>>, vector<2x32xf32>
    tpu.vector_store %arg7[%c0_52, %c0_53], %77 {strides = array<i32>} : memref<2x32xf32, #tpu.memory_space<vmem>>, vector<2x32xf32>,
    %79 = arith.select %76, %71, %6 : vector<2x32xi1>, vector<2x32xf32>
    %c0_54 = arith.constant 0 : index
    %c0_55 = arith.constant 0 : index
    %80 = vector.load %arg8[%c0_54, %c0_55] : memref<2x32xf32, #tpu.memory_space<vmem>>, vector<2x32xf32>
    tpu.vector_store %arg8[%c0_54, %c0_55], %79 {strides = array<i32>} : memref<2x32xf32, #tpu.memory_space<vmem>>, vector<2x32xf32>,
    %cst_56 = arith.constant 0.000000e+00 : f32
    %81 = vector.broadcast %cst_56 : f32 to vector<2x32xf32>
    %82 = arith.select %76, %73, %81 : vector<2x32xi1>, vector<2x32xf32>
    %c0_57 = arith.constant 0 : index
    %c0_58 = arith.constant 0 : index
    %c0_59 = arith.constant 0 : index
    %83 = vector.load %arg6[%c0_57, %c0_58, %c0_59] : memref<1x2x32xf32, #tpu.memory_space<vmem>>, vector<1x2x32xf32>
    %84 = vector.shape_cast %83 : vector<1x2x32xf32> to vector<2x32xf32>
    %85 = vector.shape_cast %82 : vector<2x32xf32> to vector<1x2x32xf32>
    tpu.vector_store %arg6[%c0_57, %c0_58, %c0_59], %85 {strides = array<i32>} : memref<1x2x32xf32, #tpu.memory_space<vmem>>, vector<1x2x32xf32>,
    return
  }
  func.func @transform_0(%arg0: i32) -> (i32, i32, i32) {
    %c0_i32 = arith.constant 0 : i32
    %c0_i32_0 = arith.constant 0 : i32
    %c0_i32_1 = arith.constant 0 : i32
    return %arg0, %c0_i32, %c0_i32_0 : i32, i32, i32
  }
  func.func @transform_1(%arg0: i32) -> (i32, i32) {
    %c0_i32 = arith.constant 0 : i32
    %c0_i32_0 = arith.constant 0 : i32
    %c0_i32_1 = arith.constant 0 : i32
    return %c0_i32, %c0_i32_0 : i32, i32
  }
  func.func @transform_2(%arg0: i32) -> (i32, i32, i32) {
    %c0_i32 = arith.constant 0 : i32
    %c0_i32_0 = arith.constant 0 : i32
    %c0_i32_1 = arith.constant 0 : i32
    %c0_i32_2 = arith.constant 0 : i32
    return %c0_i32, %c0_i32_0, %c0_i32_1 : i32, i32, i32
  }
  func.func @transform_3(%arg0: i32) -> (i32, i32, i32) {
    %c0_i32 = arith.constant 0 : i32
    %c0_i32_0 = arith.constant 0 : i32
    %c0_i32_1 = arith.constant 0 : i32
    %c0_i32_2 = arith.constant 0 : i32
    return %c0_i32, %c0_i32_0, %c0_i32_1 : i32, i32, i32
  }
  func.func @transform_4(%arg0: i32) -> (i32, i32, i32) {
    %c0_i32 = arith.constant 0 : i32
    %c0_i32_0 = arith.constant 0 : i32
    %c0_i32_1 = arith.constant 0 : i32
    %c0_i32_2 = arith.constant 0 : i32
    return %c0_i32, %c0_i32_0, %c0_i32_1 : i32, i32, i32
  }
  func.func @transform_5(%arg0: i32) -> (i32, i32, i32) {
    %c0_i32 = arith.constant 0 : i32
    %c0_i32_0 = arith.constant 0 : i32
    %c0_i32_1 = arith.constant 0 : i32
    return %arg0, %c0_i32, %c0_i32_0 : i32, i32, i32
  }
}

module attributes {stable_mosaic.version = 11 : i64} {
  func.func @_linear_kernel(%arg0: i32, %arg1: memref<2x64xf32, #tpu.memory_space<vmem>>, %arg2: memref<64x5xf32, #tpu.memory_space<vmem>>, %arg3: memref<1x5xf32, #tpu.memory_space<vmem>>, %arg4: memref<2x5xf32, #tpu.memory_space<vmem>>) attributes {dimension_semantics = [#tpu.dimension_semantics<arbitrary>], iteration_bounds = array<i64: 1>, scalar_prefetch = 0 : i64, scratch_operands = 0 : i64, tpu.core_type = #tpu.core_type<tc>, window_params = [{pipeline_mode = #tpu.pipeline_mode<synchronous>, transform_indices = @transform_0, window_bounds = array<i64: 2, 64>}, {pipeline_mode = #tpu.pipeline_mode<synchronous>, transform_indices = @transform_1, window_bounds = array<i64: 64, 5>}, {pipeline_mode = #tpu.pipeline_mode<synchronous>, transform_indices = @transform_2, window_bounds = array<i64: 1, 5>}, {pipeline_mode = #tpu.pipeline_mode<synchronous>, transform_indices = @transform_3, window_bounds = array<i64: 2, 5>}]} {
    %c0 = arith.constant 0 : index
    %c0_0 = arith.constant 0 : index
    %0 = vector.load %arg1[%c0, %c0_0] : memref<2x64xf32, #tpu.memory_space<vmem>>, vector<2x64xf32>
    %c0_1 = arith.constant 0 : index
    %c0_2 = arith.constant 0 : index
    %1 = vector.load %arg2[%c0_1, %c0_2] : memref<64x5xf32, #tpu.memory_space<vmem>>, vector<64x5xf32>
    %cst = arith.constant dense<0.000000e+00> : vector<2x5xf32>
    %2 = tpu.matmul %0, %1, %cst {dimension_numbers = #tpu.dot_dimension_numbers<[1], [0], [0], [1], [0, 0, 1, 1], [], []>} : vector<2x64xf32>, vector<64x5xf32>, vector<2x5xf32> -> vector<2x5xf32>
    %c0_3 = arith.constant 0 : index
    %c0_4 = arith.constant 0 : index
    %3 = vector.load %arg3[%c0_3, %c0_4] : memref<1x5xf32, #tpu.memory_space<vmem>>, vector<1x5xf32>
    %4 = vector.broadcast %3 : vector<1x5xf32> to vector<2x5xf32>
    %5 = arith.addf %2, %4 : vector<2x5xf32>
    %c0_5 = arith.constant 0 : index
    %c0_6 = arith.constant 0 : index
    %6 = vector.load %arg4[%c0_5, %c0_6] : memref<2x5xf32, #tpu.memory_space<vmem>>, vector<2x5xf32>
    tpu.vector_store %arg4[%c0_5, %c0_6], %5 {strides = array<i32>} : memref<2x5xf32, #tpu.memory_space<vmem>>, vector<2x5xf32>,
    return
  }
  func.func @transform_0(%arg0: i32) -> (i32, i32) {
    %c0_i32 = arith.constant 0 : i32
    %c0_i32_0 = arith.constant 0 : i32
    %c0_i32_1 = arith.constant 0 : i32
    return %c0_i32, %c0_i32_0 : i32, i32
  }
  func.func @transform_1(%arg0: i32) -> (i32, i32) {
    %c0_i32 = arith.constant 0 : i32
    %c0_i32_0 = arith.constant 0 : i32
    %c0_i32_1 = arith.constant 0 : i32
    return %c0_i32, %c0_i32_0 : i32, i32
  }
  func.func @transform_2(%arg0: i32) -> (i32, i32) {
    %c0_i32 = arith.constant 0 : i32
    %c0_i32_0 = arith.constant 0 : i32
    %c0_i32_1 = arith.constant 0 : i32
    return %c0_i32, %c0_i32_0 : i32, i32
  }
  func.func @transform_3(%arg0: i32) -> (i32, i32) {
    %c0_i32 = arith.constant 0 : i32
    %c0_i32_0 = arith.constant 0 : i32
    %c0_i32_1 = arith.constant 0 : i32
    return %c0_i32, %c0_i32_0 : i32, i32
  }
}

</mosaic_0001>

<llo_original>
// kernel: forward.8
$region0: #{forward.8}
  #allocation0 [shape = 'u32[]', space=smem, size = 0x4, offset = 0x4, fixed_abs, tag = 'smem constant byte address 0x4 - core index']
  #allocation1 [shape = 'u32[144,128]{1,0:T(1,128)}', space=vmem, size = 0x12000, scoped, tag = 'internal scratch']
  #allocation2 [shape = 'f32[2,32]{1,0:T(2,128)}', space=vmem, size = 0x400, scoped, tag = 'scratch operand']
  #allocation3 [shape = 'f32[2,32]{1,0:T(2,128)}', space=vmem, size = 0x400, scoped, tag = 'scratch operand']
  %s0 = inlined_call_operand.vmem [shape: f32[8,2,32], index: 0, kind: input, shape index: {}]
  %s1 = inlined_call_operand.vmem [shape: s32[2,32], index: 1, kind: input, shape index: {}]
  %s2 = inlined_call_operand.vmem [shape: bf16[4,32,32], index: 2, kind: input, shape index: {}]
  %s3 = inlined_call_operand.vmem [shape: bf16[4,32,32], index: 3, kind: input, shape index: {}]
  %s4 = inlined_call_operand.vmem [shape: f32[4,1,32], index: 4, kind: input, shape index: {}]
  %s5 = inlined_call_operand.vmem [shape: f32[8,2,32], index: 5, kind: output, shape index: {}]
  %s6 = sld [smem:[#allocation0]]
  $region57: #{forward.8} parent=0
    _
  %s8 = ssub.s32 1, %s6
  %s9 = scalar_select 0, %s8, %s6
  loop: start=0, step=1, limit=10
  $region2: #{forward.8} parent=0 // loop_pre_header
    _
  $region3: #{forward.8} parent=0 // loop_header
    %s11 = sphi 0, %s15
    %p12 = scmp.ge.s32.totalorder %s11, 10
    %s21 = sphi 0, %s23
    %s24 = sphi 0, %s21
    %s25 = sphi 0, %s24
    %s41 = sphi 0, %s25
    %s45 = sphi 0, %s45
    %s47 = sphi 0, %s45
    %s48 = sphi 0, %s47
    %s62 = sphi 0, %s48
    %s66 = sphi 0, %s66
    %s68 = sphi 0, %s66
    %s69 = sphi 0, %s68
    %s83 = sphi 0, %s69
    %s87 = sphi 0, %s87
    %s89 = sphi 0, %s87
    %s90 = sphi 0, %s89
    %s104 = sphi 0, %s90
    %s108 = sphi 0, %s108
    %s110 = sphi 0, %s108
    %s111 = sphi 0, %s110
    %s125 = sphi 0, %s111
    %s131 = sphi 0, %s133
    %s134 = sphi 0, %s131
    %s135 = sphi 0, %s134
    %s151 = sphi 0, %s135
  $region4: #{forward.8} parent=0 // loop_header_branch
    %14 = sbr.rel (%p12) target = $region8
  $region5: #{forward.8} parent=0 // loop_body
    %s16 = ssub.s32 %s11, 1
    %s17 = ssub.s32 %s11, 2
    %s18 = sadd.s32 %s11, 1
    %s19 = ssub.s32 %s11, %s18
    %p20 = scmp.eq.s32.totalorder %s19, 0
    %s22 = sadd.s32 %s21, 1
    %s23 = scalar_select %p20, %s21, %s22
    %p26 = pneg %p20
    %p27 = scmp.eq.s32.totalorder %s11, 7
    %p28 = por %p26, %p27
    %p29 = scmp.ne.s32.totalorder %s21, %s24
    %p30 = scmp.eq.s32.totalorder %s11, 0
    %p31 = por %p29, %p30
    %p32 = scmp.ne.s32.totalorder %s21, %s24
    %p33 = scmp.eq.s32.totalorder %s16, 7
    %p34 = por %p32, %p33
    %p35 = scmp.ne.s32.totalorder %s24, %s25
    %p36 = scmp.eq.s32.totalorder %s16, 0
    %p37 = por %p35, %p36
    %p38 = scmp.ne.s32.totalorder %s24, %s25
    %p39 = scmp.eq.s32.totalorder %s17, 7
    %p40 = por %p38, %p39
    %p42 = scmp.ne.s32.totalorder %s25, %s41
    %p43 = scmp.eq.s32.totalorder %s17, 0
    %p44 = por %p42, %p43
    %s46 = sadd.s32 %s45, 1
    %p49 = scmp.eq.s32.totalorder %s11, 7
    %p50 = scmp.ne.s32.totalorder %s45, %s47
    %p51 = scmp.eq.s32.totalorder %s11, 0
    %p52 = por %p50, %p51
    %p53 = scmp.ne.s32.totalorder %s45, %s47
    %p54 = scmp.eq.s32.totalorder %s16, 7
    %p55 = por %p53, %p54
    %p56 = scmp.ne.s32.totalorder %s47, %s48
    %p57 = scmp.eq.s32.totalorder %s16, 0
    %p58 = por %p56, %p57
    %p59 = scmp.ne.s32.totalorder %s47, %s48
    %p60 = scmp.eq.s32.totalorder %s17, 7
    %p61 = por %p59, %p60
    %p63 = scmp.ne.s32.totalorder %s48, %s62
    %p64 = scmp.eq.s32.totalorder %s17, 0
    %p65 = por %p63, %p64
    %s67 = sadd.s32 %s66, 1
    %p70 = scmp.eq.s32.totalorder %s11, 7
    %p71 = scmp.ne.s32.totalorder %s66, %s68
    %p72 = scmp.eq.s32.totalorder %s11, 0
    %p73 = por %p71, %p72
    %p74 = scmp.ne.s32.totalorder %s66, %s68
    %p75 = scmp.eq.s32.totalorder %s16, 7
    %p76 = por %p74, %p75
    %p77 = scmp.ne.s32.totalorder %s68, %s69
    %p78 = scmp.eq.s32.totalorder %s16, 0
    %p79 = por %p77, %p78
    %p80 = scmp.ne.s32.totalorder %s68, %s69
    %p81 = scmp.eq.s32.totalorder %s17, 7
    %p82 = por %p80, %p81
    %p84 = scmp.ne.s32.totalorder %s69, %s83
    %p85 = scmp.eq.s32.totalorder %s17, 0
    %p86 = por %p84, %p85
    %s88 = sadd.s32 %s87, 1
    %p91 = scmp.eq.s32.totalorder %s11, 7
    %p92 = scmp.ne.s32.totalorder %s87, %s89
    %p93 = scmp.eq.s32.totalorder %s11, 0
    %p94 = por %p92, %p93
    %p95 = scmp.ne.s32.totalorder %s87, %s89
    %p96 = scmp.eq.s32.totalorder %s16, 7
    %p97 = por %p95, %p96
    %p98 = scmp.ne.s32.totalorder %s89, %s90
    %p99 = scmp.eq.s32.totalorder %s16, 0
    %p100 = por %p98, %p99
    %p101 = scmp.ne.s32.totalorder %s89, %s90
    %p102 = scmp.eq.s32.totalorder %s17, 7
    %p103 = por %p101, %p102
    %p105 = scmp.ne.s32.totalorder %s90, %s104
    %p106 = scmp.eq.s32.totalorder %s17, 0
    %p107 = por %p105, %p106
    %s109 = sadd.s32 %s108, 1
    %p112 = scmp.eq.s32.totalorder %s11, 7
    %p113 = scmp.ne.s32.totalorder %s108, %s110
    %p114 = scmp.eq.s32.totalorder %s11, 0
    %p115 = por %p113, %p114
    %p116 = scmp.ne.s32.totalorder %s108, %s110
    %p117 = scmp.eq.s32.totalorder %s16, 7
    %p118 = por %p116, %p117
    %p119 = scmp.ne.s32.totalorder %s110, %s111
    %p120 = scmp.eq.s32.totalorder %s16, 0
    %p121 = por %p119, %p120
    %p122 = scmp.ne.s32.totalorder %s110, %s111
    %p123 = scmp.eq.s32.totalorder %s17, 7
    %p124 = por %p122, %p123
    %p126 = scmp.ne.s32.totalorder %s111, %s125
    %p127 = scmp.eq.s32.totalorder %s17, 0
    %p128 = por %p126, %p127
    %s129 = ssub.s32 %s11, %s18
    %p130 = scmp.eq.s32.totalorder %s129, 0
    %s132 = sadd.s32 %s131, 1
    %s133 = scalar_select %p130, %s131, %s132
    %p136 = pneg %p130
    %p137 = scmp.eq.s32.totalorder %s11, 7
    %p138 = por %p136, %p137
    %p139 = scmp.ne.s32.totalorder %s131, %s134
    %p140 = scmp.eq.s32.totalorder %s11, 0
    %p141 = por %p139, %p140
    %p142 = scmp.ne.s32.totalorder %s131, %s134
    %p143 = scmp.eq.s32.totalorder %s16, 7
    %p144 = por %p142, %p143
    %p145 = scmp.ne.s32.totalorder %s134, %s135
    %p146 = scmp.eq.s32.totalorder %s16, 0
    %p147 = por %p145, %p146
    %p148 = scmp.ne.s32.totalorder %s134, %s135
    %p149 = scmp.eq.s32.totalorder %s17, 7
    %p150 = por %p148, %p149
    %p152 = scmp.ne.s32.totalorder %s135, %s151
    %p153 = scmp.eq.s32.totalorder %s17, 0
    %p154 = por %p152, %p153
    %p155 = scmp.le.s32.totalorder 1, %s11
    %p156 = scmp.lt.s32.totalorder %s11, 9
    %p157 = pnand %p155, %p156
    %p158 = pneg %p157
    // Predicated region
    $region9: #{forward.8} parent=5 // pred_check
      _
    $region10: #{forward.8} parent=5 // pred_check_branch
      %160 = sbr.rel (%p157) target = $region12
    $region11: #{forward.8} parent=5 // pred_region
      %s161 = ssub.s32 %s11, 1
      // Predicated region
      $region13: #{forward.8} parent=11 // pred_check
        %p162 = pneg %p58
      $region14: #{forward.8} parent=11 // pred_check_branch
        %164 = sbr.rel (%p162) target = $region16
      $region15: #{forward.8} parent=11 // pred_region
        _
      $region16: #{forward.8} parent=11 // pred_fallthru
        _
      // Predicated region
      $region17: #{forward.8} parent=11 // pred_check
        %p165 = pneg %p79
      $region18: #{forward.8} parent=11 // pred_check_branch
        %167 = sbr.rel (%p165) target = $region20
      $region19: #{forward.8} parent=11 // pred_region
        _
      $region20: #{forward.8} parent=11 // pred_fallthru
        _
      // Predicated region
      $region21: #{forward.8} parent=11 // pred_check
        %p168 = pneg %p100
      $region22: #{forward.8} parent=11 // pred_check_branch
        %170 = sbr.rel (%p168) target = $region24
      $region23: #{forward.8} parent=11 // pred_region
        _
      $region24: #{forward.8} parent=11 // pred_fallthru
        _
      // Predicated region
      $region25: #{forward.8} parent=11 // pred_check
        %p171 = pneg %p121
      $region26: #{forward.8} parent=11 // pred_check_branch
        %173 = sbr.rel (%p171) target = $region28
      $region27: #{forward.8} parent=11 // pred_region
        _
      $region28: #{forward.8} parent=11 // pred_fallthru
        _
    $region12: #{forward.8} parent=5 // pred_fallthru
      _
    %p174 = scmp.lt.s32.totalorder %s11, 8
    // Predicated region
    $region29: #{forward.8} parent=5 // pred_check
      %p175 = pneg %p174
    $region30: #{forward.8} parent=5 // pred_check_branch
      %177 = sbr.rel (%p175) target = $region32
    $region31: #{forward.8} parent=5 // pred_region
      // Predicated region
      $region33: #{forward.8} parent=31 // pred_check
        %p178 = pneg %p31
      $region34: #{forward.8} parent=31 // pred_check_branch
        %180 = sbr.rel (%p178) target = $region36
      $region35: #{forward.8} parent=31 // pred_region
        %p181 = scmp.lt.s32.totalorder %s11, 7
        %s182 = scalar_select %p181, %s11, 7
        %s183 = smul.addr %s182, 2
        %s184 = scalar_lea.vmem %s0, %s183
      $region36: #{forward.8} parent=31 // pred_fallthru
        _
    $region32: #{forward.8} parent=5 // pred_fallthru
      _
    %p185 = scmp.le.s32.totalorder 1, %s11
    %p186 = scmp.lt.s32.totalorder %s11, 9
    %p187 = pnand %p185, %p186
    %p188 = pneg %p187
    // Predicated region
    $region37: #{forward.8} parent=5 // pred_check
      _
    $region38: #{forward.8} parent=5 // pred_check_branch
      %190 = sbr.rel (%p187) target = $region40
    $region39: #{forward.8} parent=5 // pred_region
      %s191 = ssub.s32 %s11, 1
      %p192 = scmp.lt.s32.totalorder %s16, 7
      %s193 = scalar_select %p192, %s16, 7
      %s194 = smul.addr %s193, 2
      %s195 = scalar_lea.vmem %s0, %s194
      %p196 = pneg %p37
      %p197 = pneg %p34
      %p198 = pneg %p58
      %p199 = pneg %p55
      %p200 = pneg %p79
      %p201 = pneg %p76
      %p202 = pneg %p100
      %p203 = pneg %p97
      %p204 = pneg %p121
      %p205 = pneg %p118
      %p206 = pneg %p147
      %p207 = pneg %p144
      %p208 = scmp.lt.s32.totalorder %s16, 7
      %s209 = scalar_select %p208, %s16, 7
      %s210 = smul.addr %s209, 2
      %s211 = scalar_lea.vmem %s5, %s210
      %p212 = scmp.lt.s32.totalorder %s16, 7
      %s213 = scalar_select %p212, %s16, 7
      %s214 = smul.addr %s213, 2
      %s215 = scalar_lea.vmem %s0, %s214
      %p216 = scmp.lt.s32.totalorder %s16, 7
      %s217 = scalar_select %p216, %s16, 7
      %s218 = smul.addr %s217, 2
      %s219 = scalar_lea.vmem %s5, %s218
      %p221 = scmp.eq.s32.totalorder %s16, 0
      // Predicated region
      $region41: #{forward.8} parent=39 // pred_check
        %p222 = pneg %p221
      $region42: #{forward.8} parent=39 // pred_check_branch
        %224 = sbr.rel (%p222) target = $region44
      $region43: #{forward.8} parent=39 // pred_region
        %vm225 = vcmask 254976
        %226 = vst.msk [vmem:[#allocation2] sm:$0x3] %vm225, 0.0
        %227 = vst.msk [vmem:[#allocation3] sm:$0x3] %vm225, 0.0
      $region44: #{forward.8} parent=39 // pred_fallthru
        _
      %v228 = vld [vmem:[%s215] sm:$0x3]
      %v229 = vld [vmem:[#allocation2] sm:$0x3]
      %v230 = vld [vmem:[#allocation3] sm:$0x3]
      %v231 = vpack.c.bf16 %v228, %v228
      %v232 = vpack.c.bf16 %v229, %v229
      %v233 = vld [vmem:[%s2] sm:$0xf]
      %v234 = vld [vmem:[%s2 + $0x4] sm:$0xf]
      %v235 = vld [vmem:[%s2 + $0x8] sm:$0xf]
      %v236 = vld [vmem:[%s2 + $0xc] sm:$0xf]
      %v237 = vld [vmem:[%s3] sm:$0xf]
      %v238 = vld [vmem:[%s3 + $0x4] sm:$0xf]
      %v239 = vld [vmem:[%s3 + $0x8] sm:$0xf]
      %v240 = vld [vmem:[%s3 + $0xc] sm:$0xf]
      %v245 = vunpack.c.l.b16 %v237
      %v246 = vunpack.c.l.b16 %v238
      %v247 = vunpack.c.l.b16 %v239
      %v248 = vunpack.c.l.b16 %v240
      %v249 = vpack.c.b16 %v246, %v245
      %v250 = vpack.c.b16 %v248, %v247
      %vm253 = vcmask 261120
      %v255 = vsel %vm253, %v232, 0
      %257 = vmatprep.subr.bf16.mxu0 0
      %258 = vmatpush1.bf16.msra.mxu0 %v249
      %259 = vmatprep.subr.bf16.mxu0 0
      %260 = vmatpush1.bf16.msra.mxu0 %v250
      %261 = vmatprep.subr.bf16.mxu0 0
      %262 = vmatpush1.bf16.msra.mxu0 0
      %263 = vmatprep.subr.bf16.mxu0 0
      %264 = vmatpush1.bf16.msra.mxu0 0
      %265 = vmatprep.subr.bf16.mxu0 0
      %266 = vmatpush1.bf16.msra.mxu0 0
      %267 = vmatprep.subr.bf16.mxu0 0
      %268 = vmatpush1.bf16.msra.mxu0 0
      %269 = vmatprep.subr.bf16.mxu0 0
      %270 = vmatpush1.bf16.msra.mxu0 0
      %271 = vmatprep.subr.bf16.mxu0 0
      %272 = vmatpush1.bf16.msra.mxu0 0
      %273 = vmatprep.subr.bf16.mxu0 0
      %274 = vmatpush1.bf16.msra.mxu0 0
      %275 = vmatprep.subr.bf16.mxu0 0
      %276 = vmatpush1.bf16.msra.mxu0 0
      %277 = vmatprep.subr.bf16.mxu0 0
      %278 = vmatpush1.bf16.msra.mxu0 0
      %279 = vmatprep.subr.bf16.mxu0 0
      %280 = vmatpush1.bf16.msra.mxu0 0
      %281 = vmatprep.subr.bf16.mxu0 0
      %282 = vmatpush1.bf16.msra.mxu0 0
      %283 = vmatprep.subr.bf16.mxu0 0
      %284 = vmatpush1.bf16.msra.mxu0 0
      %285 = vmatprep.subr.bf16.mxu0 0
      %286 = vmatpush1.bf16.msra.mxu0 0
      %287 = vmatprep.subr.bf16.mxu0 0
      %288 = vmatpush1.bf16.msra.mxu0 0
      %289 = vmatprep.mubr.bf16.mxu0 0
      %290 = vmatmul.mubr.bf16.gmra.mrb[0].mxu0 %v255
      %v291 = vpop.f32.mrb[0].mxu0
      %v292 = vadd.f32 0.0, %v291
      %v293 = vpop.f32.mrb[0].mxu0
      %v294 = vpop.f32.mrb[0].mxu0
      %v295 = vpop.f32.mrb[0].mxu0
      %296 = vdwg.mxu0
      %v301 = vunpack.c.l.b16 %v233
      %v302 = vunpack.c.l.b16 %v234
      %v303 = vunpack.c.l.b16 %v235
      %v304 = vunpack.c.l.b16 %v236
      %v305 = vpack.c.b16 %v302, %v301
      %v306 = vpack.c.b16 %v304, %v303
      %v310 = vsel %vm253, %v231, 0
      %312 = vmatprep.subr.bf16.mxu0 0
      %313 = vmatpush1.bf16.msra.mxu0 %v305
      %314 = vmatprep.subr.bf16.mxu0 0
      %315 = vmatpush1.bf16.msra.mxu0 %v306
      %316 = vmatprep.subr.bf16.mxu0 0
      %317 = vmatpush1.bf16.msra.mxu0 0
      %318 = vmatprep.subr.bf16.mxu0 0
      %319 = vmatpush1.bf16.msra.mxu0 0
      %320 = vmatprep.subr.bf16.mxu0 0
      %321 = vmatpush1.bf16.msra.mxu0 0
      %322 = vmatprep.subr.bf16.mxu0 0
      %323 = vmatpush1.bf16.msra.mxu0 0
      %324 = vmatprep.subr.bf16.mxu0 0
      %325 = vmatpush1.bf16.msra.mxu0 0
      %326 = vmatprep.subr.bf16.mxu0 0
      %327 = vmatpush1.bf16.msra.mxu0 0
      %328 = vmatprep.subr.bf16.mxu0 0
      %329 = vmatpush1.bf16.msra.mxu0 0
      %330 = vmatprep.subr.bf16.mxu0 0
      %331 = vmatpush1.bf16.msra.mxu0 0
      %332 = vmatprep.subr.bf16.mxu0 0
      %333 = vmatpush1.bf16.msra.mxu0 0
      %334 = vmatprep.subr.bf16.mxu0 0
      %335 = vmatpush1.bf16.msra.mxu0 0
      %336 = vmatprep.subr.bf16.mxu0 0
      %337 = vmatpush1.bf16.msra.mxu0 0
      %338 = vmatprep.subr.bf16.mxu0 0
      %339 = vmatpush1.bf16.msra.mxu0 0
      %340 = vmatprep.subr.bf16.mxu0 0
      %341 = vmatpush1.bf16.msra.mxu0 0
      %342 = vmatprep.subr.bf16.mxu0 0
      %343 = vmatpush1.bf16.msra.mxu0 0
      %344 = vmatprep.mubr.bf16.mxu0 0
      %345 = vmatmul.mubr.bf16.gmra.mrb[0].mxu0 %v310
      %v346 = vpop.f32.mrb[0].mxu0
      %v347 = vadd.f32 %v292, %v346
      %v348 = vpop.f32.mrb[0].mxu0
      %v349 = vpop.f32.mrb[0].mxu0
      %v350 = vpop.f32.mrb[0].mxu0
      %351 = vdwg.mxu0
      %v352 = vld [vmem:[%s4] sm:$0x1]
      %v354 = vlaneseq
      %v355 = vshrl.u32 %v354, 7
      %v356 = vsub.s32 0, %v355
      %v357 = vrot.slane %v352, %v356
      %v359 = vadd.f32 %v347, %v357
      %s360 = scalar_lea.vmem %s2, 16
      %v361 = vld [vmem:[%s360] sm:$0xf]
      %v362 = vld [vmem:[%s360 + $0x4] sm:$0xf]
      %v363 = vld [vmem:[%s360 + $0x8] sm:$0xf]
      %v364 = vld [vmem:[%s360 + $0xc] sm:$0xf]
      %s365 = scalar_lea.vmem %s3, 16
      %v366 = vld [vmem:[%s365] sm:$0xf]
      %v367 = vld [vmem:[%s365 + $0x4] sm:$0xf]
      %v368 = vld [vmem:[%s365 + $0x8] sm:$0xf]
      %v369 = vld [vmem:[%s365 + $0xc] sm:$0xf]
      %v374 = vunpack.c.l.b16 %v366
      %v375 = vunpack.c.l.b16 %v367
      %v376 = vunpack.c.l.b16 %v368
      %v377 = vunpack.c.l.b16 %v369
      %v378 = vpack.c.b16 %v375, %v374
      %v379 = vpack.c.b16 %v377, %v376
      %382 = vmatprep.subr.bf16.mxu0 0
      %383 = vmatpush1.bf16.msra.mxu0 %v378
      %384 = vmatprep.subr.bf16.mxu0 0
      %385 = vmatpush1.bf16.msra.mxu0 %v379
      %386 = vmatprep.subr.bf16.mxu0 0
      %387 = vmatpush1.bf16.msra.mxu0 0
      %388 = vmatprep.subr.bf16.mxu0 0
      %389 = vmatpush1.bf16.msra.mxu0 0
      %390 = vmatprep.subr.bf16.mxu0 0
      %391 = vmatpush1.bf16.msra.mxu0 0
      %392 = vmatprep.subr.bf16.mxu0 0
      %393 = vmatpush1.bf16.msra.mxu0 0
      %394 = vmatprep.subr.bf16.mxu0 0
      %395 = vmatpush1.bf16.msra.mxu0 0
      %396 = vmatprep.subr.bf16.mxu0 0
      %397 = vmatpush1.bf16.msra.mxu0 0
      %398 = vmatprep.subr.bf16.mxu0 0
      %399 = vmatpush1.bf16.msra.mxu0 0
      %400 = vmatprep.subr.bf16.mxu0 0
      %401 = vmatpush1.bf16.msra.mxu0 0
      %402 = vmatprep.subr.bf16.mxu0 0
      %403 = vmatpush1.bf16.msra.mxu0 0
      %404 = vmatprep.subr.bf16.mxu0 0
      %405 = vmatpush1.bf16.msra.mxu0 0
      %406 = vmatprep.subr.bf16.mxu0 0
      %407 = vmatpush1.bf16.msra.mxu0 0
      %408 = vmatprep.subr.bf16.mxu0 0
      %409 = vmatpush1.bf16.msra.mxu0 0
      %410 = vmatprep.subr.bf16.mxu0 0
      %411 = vmatpush1.bf16.msra.mxu0 0
      %412 = vmatprep.subr.bf16.mxu0 0
      %413 = vmatpush1.bf16.msra.mxu0 0
      %414 = vmatprep.mubr.bf16.mxu0 0
      %415 = vmatmul.mubr.bf16.gmra.mrb[0].mxu0 %v255
      %v416 = vpop.f32.mrb[0].mxu0
      %v417 = vadd.f32 0.0, %v416
      %v418 = vpop.f32.mrb[0].mxu0
      %v419 = vpop.f32.mrb[0].mxu0
      %v420 = vpop.f32.mrb[0].mxu0
      %421 = vdwg.mxu0
      %v426 = vunpack.c.l.b16 %v361
      %v427 = vunpack.c.l.b16 %v362
      %v428 = vunpack.c.l.b16 %v363
      %v429 = vunpack.c.l.b16 %v364
      %v430 = vpack.c.b16 %v427, %v426
      %v431 = vpack.c.b16 %v429, %v428
      %434 = vmatprep.subr.bf16.mxu0 0
      %435 = vmatpush1.bf16.msra.mxu0 %v430
      %436 = vmatprep.subr.bf16.mxu0 0
      %437 = vmatpush1.bf16.msra.mxu0 %v431
      %438 = vmatprep.subr.bf16.mxu0 0
      %439 = vmatpush1.bf16.msra.mxu0 0
      %440 = vmatprep.subr.bf16.mxu0 0
      %441 = vmatpush1.bf16.msra.mxu0 0
      %442 = vmatprep.subr.bf16.mxu0 0
      %443 = vmatpush1.bf16.msra.mxu0 0
      %444 = vmatprep.subr.bf16.mxu0 0
      %445 = vmatpush1.bf16.msra.mxu0 0
      %446 = vmatprep.subr.bf16.mxu0 0
      %447 = vmatpush1.bf16.msra.mxu0 0
      %448 = vmatprep.subr.bf16.mxu0 0
      %449 = vmatpush1.bf16.msra.mxu0 0
      %450 = vmatprep.subr.bf16.mxu0 0
      %451 = vmatpush1.bf16.msra.mxu0 0
      %452 = vmatprep.subr.bf16.mxu0 0
      %453 = vmatpush1.bf16.msra.mxu0 0
      %454 = vmatprep.subr.bf16.mxu0 0
      %455 = vmatpush1.bf16.msra.mxu0 0
      %456 = vmatprep.subr.bf16.mxu0 0
      %457 = vmatpush1.bf16.msra.mxu0 0
      %458 = vmatprep.subr.bf16.mxu0 0
      %459 = vmatpush1.bf16.msra.mxu0 0
      %460 = vmatprep.subr.bf16.mxu0 0
      %461 = vmatpush1.bf16.msra.mxu0 0
      %462 = vmatprep.subr.bf16.mxu0 0
      %463 = vmatpush1.bf16.msra.mxu0 0
      %464 = vmatprep.subr.bf16.mxu0 0
      %465 = vmatpush1.bf16.msra.mxu0 0
      %466 = vmatprep.mubr.bf16.mxu0 0
      %467 = vmatmul.mubr.bf16.gmra.mrb[0].mxu0 %v310
      %v468 = vpop.f32.mrb[0].mxu0
      %v469 = vadd.f32 %v417, %v468
      %v470 = vpop.f32.mrb[0].mxu0
      %v471 = vpop.f32.mrb[0].mxu0
      %v472 = vpop.f32.mrb[0].mxu0
      %473 = vdwg.mxu0
      %s474 = scalar_lea.vmem %s4, 1
      %v475 = vld [vmem:[%s474] sm:$0x1]
      %v477 = vlaneseq
      %v478 = vshrl.u32 %v477, 7
      %v479 = vsub.s32 0, %v478
      %v480 = vrot.slane %v475, %v479
      %v482 = vadd.f32 %v469, %v480
      %s483 = scalar_lea.vmem %s2, 32
      %v484 = vld [vmem:[%s483] sm:$0xf]
      %v485 = vld [vmem:[%s483 + $0x4] sm:$0xf]
      %v486 = vld [vmem:[%s483 + $0x8] sm:$0xf]
      %v487 = vld [vmem:[%s483 + $0xc] sm:$0xf]
      %s488 = scalar_lea.vmem %s3, 32
      %v489 = vld [vmem:[%s488] sm:$0xf]
      %v490 = vld [vmem:[%s488 + $0x4] sm:$0xf]
      %v491 = vld [vmem:[%s488 + $0x8] sm:$0xf]
      %v492 = vld [vmem:[%s488 + $0xc] sm:$0xf]
      %v497 = vunpack.c.l.b16 %v489
      %v498 = vunpack.c.l.b16 %v490
      %v499 = vunpack.c.l.b16 %v491
      %v500 = vunpack.c.l.b16 %v492
      %v501 = vpack.c.b16 %v498, %v497
      %v502 = vpack.c.b16 %v500, %v499
      %505 = vmatprep.subr.bf16.mxu0 0
      %506 = vmatpush1.bf16.msra.mxu0 %v501
      %507 = vmatprep.subr.bf16.mxu0 0
      %508 = vmatpush1.bf16.msra.mxu0 %v502
      %509 = vmatprep.subr.bf16.mxu0 0
      %510 = vmatpush1.bf16.msra.mxu0 0
      %511 = vmatprep.subr.bf16.mxu0 0
      %512 = vmatpush1.bf16.msra.mxu0 0
      %513 = vmatprep.subr.bf16.mxu0 0
      %514 = vmatpush1.bf16.msra.mxu0 0
      %515 = vmatprep.subr.bf16.mxu0 0
      %516 = vmatpush1.bf16.msra.mxu0 0
      %517 = vmatprep.subr.bf16.mxu0 0
      %518 = vmatpush1.bf16.msra.mxu0 0
      %519 = vmatprep.subr.bf16.mxu0 0
      %520 = vmatpush1.bf16.msra.mxu0 0
      %521 = vmatprep.subr.bf16.mxu0 0
      %522 = vmatpush1.bf16.msra.mxu0 0
      %523 = vmatprep.subr.bf16.mxu0 0
      %524 = vmatpush1.bf16.msra.mxu0 0
      %525 = vmatprep.subr.bf16.mxu0 0
      %526 = vmatpush1.bf16.msra.mxu0 0
      %527 = vmatprep.subr.bf16.mxu0 0
      %528 = vmatpush1.bf16.msra.mxu0 0
      %529 = vmatprep.subr.bf16.mxu0 0
      %530 = vmatpush1.bf16.msra.mxu0 0
      %531 = vmatprep.subr.bf16.mxu0 0
      %532 = vmatpush1.bf16.msra.mxu0 0
      %533 = vmatprep.subr.bf16.mxu0 0
      %534 = vmatpush1.bf16.msra.mxu0 0
      %535 = vmatprep.subr.bf16.mxu0 0
      %536 = vmatpush1.bf16.msra.mxu0 0
      %537 = vmatprep.mubr.bf16.mxu0 0
      %538 = vmatmul.mubr.bf16.gmra.mrb[0].mxu0 %v255
      %v539 = vpop.f32.mrb[0].mxu0
      %v540 = vadd.f32 0.0, %v539
      %v541 = vpop.f32.mrb[0].mxu0
      %v542 = vpop.f32.mrb[0].mxu0
      %v543 = vpop.f32.mrb[0].mxu0
      %544 = vdwg.mxu0
      %v549 = vunpack.c.l.b16 %v484
      %v550 = vunpack.c.l.b16 %v485
      %v551 = vunpack.c.l.b16 %v486
      %v552 = vunpack.c.l.b16 %v487
      %v553 = vpack.c.b16 %v550, %v549
      %v554 = vpack.c.b16 %v552, %v551
      %557 = vmatprep.subr.bf16.mxu0 0
      %558 = vmatpush1.bf16.msra.mxu0 %v553
      %559 = vmatprep.subr.bf16.mxu0 0
      %560 = vmatpush1.bf16.msra.mxu0 %v554
      %561 = vmatprep.subr.bf16.mxu0 0
      %562 = vmatpush1.bf16.msra.mxu0 0
      %563 = vmatprep.subr.bf16.mxu0 0
      %564 = vmatpush1.bf16.msra.mxu0 0
      %565 = vmatprep.subr.bf16.mxu0 0
      %566 = vmatpush1.bf16.msra.mxu0 0
      %567 = vmatprep.subr.bf16.mxu0 0
      %568 = vmatpush1.bf16.msra.mxu0 0
      %569 = vmatprep.subr.bf16.mxu0 0
      %570 = vmatpush1.bf16.msra.mxu0 0
      %571 = vmatprep.subr.bf16.mxu0 0
      %572 = vmatpush1.bf16.msra.mxu0 0
      %573 = vmatprep.subr.bf16.mxu0 0
      %574 = vmatpush1.bf16.msra.mxu0 0
      %575 = vmatprep.subr.bf16.mxu0 0
      %576 = vmatpush1.bf16.msra.mxu0 0
      %577 = vmatprep.subr.bf16.mxu0 0
      %578 = vmatpush1.bf16.msra.mxu0 0
      %579 = vmatprep.subr.bf16.mxu0 0
      %580 = vmatpush1.bf16.msra.mxu0 0
      %581 = vmatprep.subr.bf16.mxu0 0
      %582 = vmatpush1.bf16.msra.mxu0 0
      %583 = vmatprep.subr.bf16.mxu0 0
      %584 = vmatpush1.bf16.msra.mxu0 0
      %585 = vmatprep.subr.bf16.mxu0 0
      %586 = vmatpush1.bf16.msra.mxu0 0
      %587 = vmatprep.subr.bf16.mxu0 0
      %588 = vmatpush1.bf16.msra.mxu0 0
      %589 = vmatprep.mubr.bf16.mxu0 0
      %590 = vmatmul.mubr.bf16.gmra.mrb[0].mxu0 %v310
      %v591 = vpop.f32.mrb[0].mxu0
      %v592 = vadd.f32 %v540, %v591
      %v593 = vpop.f32.mrb[0].mxu0
      %v594 = vpop.f32.mrb[0].mxu0
      %v595 = vpop.f32.mrb[0].mxu0
      %596 = vdwg.mxu0
      %s597 = scalar_lea.vmem %s4, 2
      %v598 = vld [vmem:[%s597] sm:$0x1]
      %v600 = vlaneseq
      %v601 = vshrl.u32 %v600, 7
      %v602 = vsub.s32 0, %v601
      %v603 = vrot.slane %v598, %v602
      %v605 = vadd.f32 %v592, %v603
      %s606 = scalar_lea.vmem %s2, 48
      %v607 = vld [vmem:[%s606] sm:$0xf]
      %v608 = vld [vmem:[%s606 + $0x4] sm:$0xf]
      %v609 = vld [vmem:[%s606 + $0x8] sm:$0xf]
      %v610 = vld [vmem:[%s606 + $0xc] sm:$0xf]
      %s611 = scalar_lea.vmem %s3, 48
      %v612 = vld [vmem:[%s611] sm:$0xf]
      %v613 = vld [vmem:[%s611 + $0x4] sm:$0xf]
      %v614 = vld [vmem:[%s611 + $0x8] sm:$0xf]
      %v615 = vld [vmem:[%s611 + $0xc] sm:$0xf]
      %v620 = vunpack.c.l.b16 %v612
      %v621 = vunpack.c.l.b16 %v613
      %v622 = vunpack.c.l.b16 %v614
      %v623 = vunpack.c.l.b16 %v615
      %v624 = vpack.c.b16 %v621, %v620
      %v625 = vpack.c.b16 %v623, %v622
      %628 = vmatprep.subr.bf16.mxu0 0
      %629 = vmatpush1.bf16.msra.mxu0 %v624
      %630 = vmatprep.subr.bf16.mxu0 0
      %631 = vmatpush1.bf16.msra.mxu0 %v625
      %632 = vmatprep.subr.bf16.mxu0 0
      %633 = vmatpush1.bf16.msra.mxu0 0
      %634 = vmatprep.subr.bf16.mxu0 0
      %635 = vmatpush1.bf16.msra.mxu0 0
      %636 = vmatprep.subr.bf16.mxu0 0
      %637 = vmatpush1.bf16.msra.mxu0 0
      %638 = vmatprep.subr.bf16.mxu0 0
      %639 = vmatpush1.bf16.msra.mxu0 0
      %640 = vmatprep.subr.bf16.mxu0 0
      %641 = vmatpush1.bf16.msra.mxu0 0
      %642 = vmatprep.subr.bf16.mxu0 0
      %643 = vmatpush1.bf16.msra.mxu0 0
      %644 = vmatprep.subr.bf16.mxu0 0
      %645 = vmatpush1.bf16.msra.mxu0 0
      %646 = vmatprep.subr.bf16.mxu0 0
      %647 = vmatpush1.bf16.msra.mxu0 0
      %648 = vmatprep.subr.bf16.mxu0 0
      %649 = vmatpush1.bf16.msra.mxu0 0
      %650 = vmatprep.subr.bf16.mxu0 0
      %651 = vmatpush1.bf16.msra.mxu0 0
      %652 = vmatprep.subr.bf16.mxu0 0
      %653 = vmatpush1.bf16.msra.mxu0 0
      %654 = vmatprep.subr.bf16.mxu0 0
      %655 = vmatpush1.bf16.msra.mxu0 0
      %656 = vmatprep.subr.bf16.mxu0 0
      %657 = vmatpush1.bf16.msra.mxu0 0
      %658 = vmatprep.subr.bf16.mxu0 0
      %659 = vmatpush1.bf16.msra.mxu0 0
      %660 = vmatprep.mubr.bf16.mxu0 0
      %661 = vmatmul.mubr.bf16.gmra.mrb[0].mxu0 %v255
      %v662 = vpop.f32.mrb[0].mxu0
      %v663 = vadd.f32 0.0, %v662
      %v664 = vpop.f32.mrb[0].mxu0
      %v665 = vpop.f32.mrb[0].mxu0
      %v666 = vpop.f32.mrb[0].mxu0
      %667 = vdwg.mxu0
      %v672 = vunpack.c.l.b16 %v607
      %v673 = vunpack.c.l.b16 %v608
      %v674 = vunpack.c.l.b16 %v609
      %v675 = vunpack.c.l.b16 %v610
      %v676 = vpack.c.b16 %v673, %v672
      %v677 = vpack.c.b16 %v675, %v674
      %680 = vmatprep.subr.bf16.mxu0 0
      %681 = vmatpush1.bf16.msra.mxu0 %v676
      %682 = vmatprep.subr.bf16.mxu0 0
      %683 = vmatpush1.bf16.msra.mxu0 %v677
      %684 = vmatprep.subr.bf16.mxu0 0
      %685 = vmatpush1.bf16.msra.mxu0 0
      %686 = vmatprep.subr.bf16.mxu0 0
      %687 = vmatpush1.bf16.msra.mxu0 0
      %688 = vmatprep.subr.bf16.mxu0 0
      %689 = vmatpush1.bf16.msra.mxu0 0
      %690 = vmatprep.subr.bf16.mxu0 0
      %691 = vmatpush1.bf16.msra.mxu0 0
      %692 = vmatprep.subr.bf16.mxu0 0
      %693 = vmatpush1.bf16.msra.mxu0 0
      %694 = vmatprep.subr.bf16.mxu0 0
      %695 = vmatpush1.bf16.msra.mxu0 0
      %696 = vmatprep.subr.bf16.mxu0 0
      %697 = vmatpush1.bf16.msra.mxu0 0
      %698 = vmatprep.subr.bf16.mxu0 0
      %699 = vmatpush1.bf16.msra.mxu0 0
      %700 = vmatprep.subr.bf16.mxu0 0
      %701 = vmatpush1.bf16.msra.mxu0 0
      %702 = vmatprep.subr.bf16.mxu0 0
      %703 = vmatpush1.bf16.msra.mxu0 0
      %704 = vmatprep.subr.bf16.mxu0 0
      %705 = vmatpush1.bf16.msra.mxu0 0
      %706 = vmatprep.subr.bf16.mxu0 0
      %707 = vmatpush1.bf16.msra.mxu0 0
      %708 = vmatprep.subr.bf16.mxu0 0
      %709 = vmatpush1.bf16.msra.mxu0 0
      %710 = vmatprep.subr.bf16.mxu0 0
      %711 = vmatpush1.bf16.msra.mxu0 0
      %712 = vmatprep.mubr.bf16.mxu0 0
      %713 = vmatmul.mubr.bf16.gmra.mrb[0].mxu0 %v310
      %v714 = vpop.f32.mrb[0].mxu0
      %v715 = vadd.f32 %v663, %v714
      %v716 = vpop.f32.mrb[0].mxu0
      %v717 = vpop.f32.mrb[0].mxu0
      %v718 = vpop.f32.mrb[0].mxu0
      %719 = vdwg.mxu0
      %s720 = scalar_lea.vmem %s4, 3
      %v721 = vld [vmem:[%s720] sm:$0x1]
      %v723 = vlaneseq
      %v724 = vshrl.u32 %v723, 7
      %v725 = vsub.s32 0, %v724
      %v726 = vrot.slane %v721, %v725
      %v728 = vadd.f32 %v715, %v726
      %v729 = vxor.u32 %v359, 2147483648
      %v730 = vmul.f32 %v729, 1.442695
      %v731 = vpow.pop %v730
      %v732 = vadd.f32 %v731, 1.0
      %v733 = vrcp.pop %v732
      %v734 = vmul.f32 1.0, %v733
      %v735 = vxor.u32 %v482, 2147483648
      %v736 = vmul.f32 %v735, 1.442695
      %v737 = vpow.pop %v736
      %v738 = vadd.f32 %v737, 1.0
      %v739 = vrcp.pop %v738
      %v740 = vmul.f32 1.0, %v739
      %v741 = vtanh.pop %v605
      %v742 = vxor.u32 %v728, 2147483648
      %v743 = vmul.f32 %v742, 1.442695
      %v744 = vpow.pop %v743
      %v745 = vadd.f32 %v744, 1.0
      %v746 = vrcp.pop %v745
      %v747 = vmul.f32 1.0, %v746
      %v748 = vmul.f32 %v740, %v230
      %v749 = vmul.f32 %v734, %v741
      %v750 = vadd.f32 %v748, %v749
      %v751 = vtanh.pop %v750
      %v752 = vmul.f32 %v747, %v751
      %v753 = vld [vmem:[%s1] sm:$0x3]
      %v754 = vstv %s16
      %vm755 = vcmp.lt.s32.totalorder %v754, %v753
      %v756 = vsel %vm755, %v752, %v229
      %vm757 = vcmask 254976
      %758 = vst.msk [vmem:[#allocation2] sm:$0x3] %vm757, %v756
      %v759 = vsel %vm755, %v750, %v230
      %760 = vst.msk [vmem:[#allocation3] sm:$0x3] %vm757, %v759
      %v761 = vsel %vm755, %v752, 0.0
      %762 = vst.msk [vmem:[%s219] sm:$0x3] %vm757, %v761
      %p763 = scmp.lt.s32.totalorder %s16, 7
      %s764 = scalar_select %p763, %s16, 7
      %s765 = smul.addr %s764, 2
      %s766 = scalar_lea.vmem %s5, %s765
      // Predicated region
      $region45: #{forward.8} parent=39 // pred_check
        %p767 = pneg %p144
      $region46: #{forward.8} parent=39 // pred_check_branch
        %769 = sbr.rel (%p767) target = $region48
      $region47: #{forward.8} parent=39 // pred_region
        _
      $region48: #{forward.8} parent=39 // pred_fallthru
        _
    $region40: #{forward.8} parent=5 // pred_fallthru
      _
    %p770 = scmp.le.s32.totalorder 2, %s11
    // Predicated region
    $region49: #{forward.8} parent=5 // pred_check
      %p771 = pneg %p770
    $region50: #{forward.8} parent=5 // pred_check_branch
      %773 = sbr.rel (%p771) target = $region52
    $region51: #{forward.8} parent=5 // pred_region
      %s774 = ssub.s32 %s11, 2
      // Predicated region
      $region53: #{forward.8} parent=51 // pred_check
        %p775 = pneg %p150
      $region54: #{forward.8} parent=51 // pred_check_branch
        %777 = sbr.rel (%p775) target = $region56
      $region55: #{forward.8} parent=51 // pred_region
        %p778 = scmp.lt.s32.totalorder %s17, 7
        %s779 = scalar_select %p778, %s17, 7
        %s780 = smul.addr %s779, 2
        %s781 = scalar_lea.vmem %s5, %s780
      $region56: #{forward.8} parent=51 // pred_fallthru
        _
    $region52: #{forward.8} parent=5 // pred_fallthru
      _
  $region6: #{forward.8} parent=0 // loop_footer
    %s15 = sadd.s32 1, %s11
  $region7: #{forward.8} parent=0 // loop_footer_branch
    %10 = sbr.rel target = $region3
  $region8: #{forward.8} parent=0 // loop_exit
    _

// kernel: forward.5
$region0: #{forward.5}
  #allocation0 [shape = 'u32[]', space=smem, size = 0x4, offset = 0x4, fixed_abs, tag = 'smem constant byte address 0x4 - core index']
  #allocation1 [shape = 'u32[144,128]{1,0:T(1,128)}', space=vmem, size = 0x12000, scoped, tag = 'internal scratch']
  %s0 = inlined_call_operand.vmem [shape: f32[2,8,32], index: 0, kind: input, shape index: {}]
  %s1 = inlined_call_operand.vmem [shape: bf16[32,96], index: 1, kind: input, shape index: {}]
  %s2 = inlined_call_operand.vmem [shape: f32[1,96], index: 2, kind: input, shape index: {}]
  %s3 = inlined_call_operand.vmem [shape: bf16[32,32], index: 3, kind: input, shape index: {}]
  %s4 = inlined_call_operand.vmem [shape: f32[1,32], index: 4, kind: input, shape index: {}]
  %s5 = inlined_call_operand.vmem [shape: f32[1,32], index: 5, kind: input, shape index: {}]
  %s6 = inlined_call_operand.vmem [shape: f32[1,32], index: 6, kind: input, shape index: {}]
  %s7 = inlined_call_operand.vmem [shape: bf16[32,2048], index: 7, kind: input, shape index: {}]
  %s8 = inlined_call_operand.vmem [shape: f32[1,2048], index: 8, kind: input, shape index: {}]
  %s9 = inlined_call_operand.vmem [shape: bf16[2048,32], index: 9, kind: input, shape index: {}]
  %s10 = inlined_call_operand.vmem [shape: f32[1,32], index: 10, kind: input, shape index: {}]
  %s11 = inlined_call_operand.vmem [shape: f32[1,32], index: 11, kind: input, shape index: {}]
  %s12 = inlined_call_operand.vmem [shape: f32[1,32], index: 12, kind: input, shape index: {}]
  %s13 = inlined_call_operand.vmem [shape: f32[2,8,32], index: 13, kind: output, shape index: {}]
  %s14 = sld [smem:[#allocation0]]
  $region85: #{forward.5} parent=0
    _
  %s16 = ssub.s32 1, %s14
  %s17 = scalar_select 0, %s16, %s14
  loop: start=0, step=1, limit=4
  $region2: #{forward.5} parent=0 // loop_pre_header
    _
  $region3: #{forward.5} parent=0 // loop_header
    %s19 = sphi 0, %s23
    %p20 = scmp.ge.s32.totalorder %s19, 4
    %s29 = sphi 0, %s31
    %s32 = sphi 0, %s29
    %s33 = sphi 0, %s32
    %s49 = sphi 0, %s33
    %s53 = sphi 0, %s53
    %s55 = sphi 0, %s53
    %s56 = sphi 0, %s55
    %s70 = sphi 0, %s56
    %s74 = sphi 0, %s74
    %s76 = sphi 0, %s74
    %s77 = sphi 0, %s76
    %s91 = sphi 0, %s77
    %s95 = sphi 0, %s95
    %s97 = sphi 0, %s95
    %s98 = sphi 0, %s97
    %s112 = sphi 0, %s98
    %s116 = sphi 0, %s116
    %s118 = sphi 0, %s116
    %s119 = sphi 0, %s118
    %s133 = sphi 0, %s119
    %s137 = sphi 0, %s137
    %s139 = sphi 0, %s137
    %s140 = sphi 0, %s139
    %s154 = sphi 0, %s140
    %s158 = sphi 0, %s158
    %s160 = sphi 0, %s158
    %s161 = sphi 0, %s160
    %s175 = sphi 0, %s161
    %s179 = sphi 0, %s179
    %s181 = sphi 0, %s179
    %s182 = sphi 0, %s181
    %s196 = sphi 0, %s182
    %s200 = sphi 0, %s200
    %s202 = sphi 0, %s200
    %s203 = sphi 0, %s202
    %s217 = sphi 0, %s203
    %s221 = sphi 0, %s221
    %s223 = sphi 0, %s221
    %s224 = sphi 0, %s223
    %s238 = sphi 0, %s224
    %s242 = sphi 0, %s242
    %s244 = sphi 0, %s242
    %s245 = sphi 0, %s244
    %s259 = sphi 0, %s245
    %s263 = sphi 0, %s263
    %s265 = sphi 0, %s263
    %s266 = sphi 0, %s265
    %s280 = sphi 0, %s266
    %s284 = sphi 0, %s284
    %s286 = sphi 0, %s284
    %s287 = sphi 0, %s286
    %s301 = sphi 0, %s287
    %s307 = sphi 0, %s309
    %s310 = sphi 0, %s307
    %s311 = sphi 0, %s310
    %s327 = sphi 0, %s311
  $region4: #{forward.5} parent=0 // loop_header_branch
    %22 = sbr.rel (%p20) target = $region8
  $region5: #{forward.5} parent=0 // loop_body
    %s24 = ssub.s32 %s19, 1
    %s25 = ssub.s32 %s19, 2
    %s26 = sadd.s32 %s19, 1
    %s27 = ssub.s32 %s19, %s26
    %p28 = scmp.eq.s32.totalorder %s27, 0
    %s30 = sadd.s32 %s29, 1
    %s31 = scalar_select %p28, %s29, %s30
    %p34 = pneg %p28
    %p35 = scmp.eq.s32.totalorder %s19, 1
    %p36 = por %p34, %p35
    %p37 = scmp.ne.s32.totalorder %s29, %s32
    %p38 = scmp.eq.s32.totalorder %s19, 0
    %p39 = por %p37, %p38
    %p40 = scmp.ne.s32.totalorder %s29, %s32
    %p41 = scmp.eq.s32.totalorder %s24, 1
    %p42 = por %p40, %p41
    %p43 = scmp.ne.s32.totalorder %s32, %s33
    %p44 = scmp.eq.s32.totalorder %s24, 0
    %p45 = por %p43, %p44
    %p46 = scmp.ne.s32.totalorder %s32, %s33
    %p47 = scmp.eq.s32.totalorder %s25, 1
    %p48 = por %p46, %p47
    %p50 = scmp.ne.s32.totalorder %s33, %s49
    %p51 = scmp.eq.s32.totalorder %s25, 0
    %p52 = por %p50, %p51
    %s54 = sadd.s32 %s53, 1
    %p57 = scmp.eq.s32.totalorder %s19, 1
    %p58 = scmp.ne.s32.totalorder %s53, %s55
    %p59 = scmp.eq.s32.totalorder %s19, 0
    %p60 = por %p58, %p59
    %p61 = scmp.ne.s32.totalorder %s53, %s55
    %p62 = scmp.eq.s32.totalorder %s24, 1
    %p63 = por %p61, %p62
    %p64 = scmp.ne.s32.totalorder %s55, %s56
    %p65 = scmp.eq.s32.totalorder %s24, 0
    %p66 = por %p64, %p65
    %p67 = scmp.ne.s32.totalorder %s55, %s56
    %p68 = scmp.eq.s32.totalorder %s25, 1
    %p69 = por %p67, %p68
    %p71 = scmp.ne.s32.totalorder %s56, %s70
    %p72 = scmp.eq.s32.totalorder %s25, 0
    %p73 = por %p71, %p72
    %s75 = sadd.s32 %s74, 1
    %p78 = scmp.eq.s32.totalorder %s19, 1
    %p79 = scmp.ne.s32.totalorder %s74, %s76
    %p80 = scmp.eq.s32.totalorder %s19, 0
    %p81 = por %p79, %p80
    %p82 = scmp.ne.s32.totalorder %s74, %s76
    %p83 = scmp.eq.s32.totalorder %s24, 1
    %p84 = por %p82, %p83
    %p85 = scmp.ne.s32.totalorder %s76, %s77
    %p86 = scmp.eq.s32.totalorder %s24, 0
    %p87 = por %p85, %p86
    %p88 = scmp.ne.s32.totalorder %s76, %s77
    %p89 = scmp.eq.s32.totalorder %s25, 1
    %p90 = por %p88, %p89
    %p92 = scmp.ne.s32.totalorder %s77, %s91
    %p93 = scmp.eq.s32.totalorder %s25, 0
    %p94 = por %p92, %p93
    %s96 = sadd.s32 %s95, 1
    %p99 = scmp.eq.s32.totalorder %s19, 1
    %p100 = scmp.ne.s32.totalorder %s95, %s97
    %p101 = scmp.eq.s32.totalorder %s19, 0
    %p102 = por %p100, %p101
    %p103 = scmp.ne.s32.totalorder %s95, %s97
    %p104 = scmp.eq.s32.totalorder %s24, 1
    %p105 = por %p103, %p104
    %p106 = scmp.ne.s32.totalorder %s97, %s98
    %p107 = scmp.eq.s32.totalorder %s24, 0
    %p108 = por %p106, %p107
    %p109 = scmp.ne.s32.totalorder %s97, %s98
    %p110 = scmp.eq.s32.totalorder %s25, 1
    %p111 = por %p109, %p110
    %p113 = scmp.ne.s32.totalorder %s98, %s112
    %p114 = scmp.eq.s32.totalorder %s25, 0
    %p115 = por %p113, %p114
    %s117 = sadd.s32 %s116, 1
    %p120 = scmp.eq.s32.totalorder %s19, 1
    %p121 = scmp.ne.s32.totalorder %s116, %s118
    %p122 = scmp.eq.s32.totalorder %s19, 0
    %p123 = por %p121, %p122
    %p124 = scmp.ne.s32.totalorder %s116, %s118
    %p125 = scmp.eq.s32.totalorder %s24, 1
    %p126 = por %p124, %p125
    %p127 = scmp.ne.s32.totalorder %s118, %s119
    %p128 = scmp.eq.s32.totalorder %s24, 0
    %p129 = por %p127, %p128
    %p130 = scmp.ne.s32.totalorder %s118, %s119
    %p131 = scmp.eq.s32.totalorder %s25, 1
    %p132 = por %p130, %p131
    %p134 = scmp.ne.s32.totalorder %s119, %s133
    %p135 = scmp.eq.s32.totalorder %s25, 0
    %p136 = por %p134, %p135
    %s138 = sadd.s32 %s137, 1
    %p141 = scmp.eq.s32.totalorder %s19, 1
    %p142 = scmp.ne.s32.totalorder %s137, %s139
    %p143 = scmp.eq.s32.totalorder %s19, 0
    %p144 = por %p142, %p143
    %p145 = scmp.ne.s32.totalorder %s137, %s139
    %p146 = scmp.eq.s32.totalorder %s24, 1
    %p147 = por %p145, %p146
    %p148 = scmp.ne.s32.totalorder %s139, %s140
    %p149 = scmp.eq.s32.totalorder %s24, 0
    %p150 = por %p148, %p149
    %p151 = scmp.ne.s32.totalorder %s139, %s140
    %p152 = scmp.eq.s32.totalorder %s25, 1
    %p153 = por %p151, %p152
    %p155 = scmp.ne.s32.totalorder %s140, %s154
    %p156 = scmp.eq.s32.totalorder %s25, 0
    %p157 = por %p155, %p156
    %s159 = sadd.s32 %s158, 1
    %p162 = scmp.eq.s32.totalorder %s19, 1
    %p163 = scmp.ne.s32.totalorder %s158, %s160
    %p164 = scmp.eq.s32.totalorder %s19, 0
    %p165 = por %p163, %p164
    %p166 = scmp.ne.s32.totalorder %s158, %s160
    %p167 = scmp.eq.s32.totalorder %s24, 1
    %p168 = por %p166, %p167
    %p169 = scmp.ne.s32.totalorder %s160, %s161
    %p170 = scmp.eq.s32.totalorder %s24, 0
    %p171 = por %p169, %p170
    %p172 = scmp.ne.s32.totalorder %s160, %s161
    %p173 = scmp.eq.s32.totalorder %s25, 1
    %p174 = por %p172, %p173
    %p176 = scmp.ne.s32.totalorder %s161, %s175
    %p177 = scmp.eq.s32.totalorder %s25, 0
    %p178 = por %p176, %p177
    %s180 = sadd.s32 %s179, 1
    %p183 = scmp.eq.s32.totalorder %s19, 1
    %p184 = scmp.ne.s32.totalorder %s179, %s181
    %p185 = scmp.eq.s32.totalorder %s19, 0
    %p186 = por %p184, %p185
    %p187 = scmp.ne.s32.totalorder %s179, %s181
    %p188 = scmp.eq.s32.totalorder %s24, 1
    %p189 = por %p187, %p188
    %p190 = scmp.ne.s32.totalorder %s181, %s182
    %p191 = scmp.eq.s32.totalorder %s24, 0
    %p192 = por %p190, %p191
    %p193 = scmp.ne.s32.totalorder %s181, %s182
    %p194 = scmp.eq.s32.totalorder %s25, 1
    %p195 = por %p193, %p194
    %p197 = scmp.ne.s32.totalorder %s182, %s196
    %p198 = scmp.eq.s32.totalorder %s25, 0
    %p199 = por %p197, %p198
    %s201 = sadd.s32 %s200, 1
    %p204 = scmp.eq.s32.totalorder %s19, 1
    %p205 = scmp.ne.s32.totalorder %s200, %s202
    %p206 = scmp.eq.s32.totalorder %s19, 0
    %p207 = por %p205, %p206
    %p208 = scmp.ne.s32.totalorder %s200, %s202
    %p209 = scmp.eq.s32.totalorder %s24, 1
    %p210 = por %p208, %p209
    %p211 = scmp.ne.s32.totalorder %s202, %s203
    %p212 = scmp.eq.s32.totalorder %s24, 0
    %p213 = por %p211, %p212
    %p214 = scmp.ne.s32.totalorder %s202, %s203
    %p215 = scmp.eq.s32.totalorder %s25, 1
    %p216 = por %p214, %p215
    %p218 = scmp.ne.s32.totalorder %s203, %s217
    %p219 = scmp.eq.s32.totalorder %s25, 0
    %p220 = por %p218, %p219
    %s222 = sadd.s32 %s221, 1
    %p225 = scmp.eq.s32.totalorder %s19, 1
    %p226 = scmp.ne.s32.totalorder %s221, %s223
    %p227 = scmp.eq.s32.totalorder %s19, 0
    %p228 = por %p226, %p227
    %p229 = scmp.ne.s32.totalorder %s221, %s223
    %p230 = scmp.eq.s32.totalorder %s24, 1
    %p231 = por %p229, %p230
    %p232 = scmp.ne.s32.totalorder %s223, %s224
    %p233 = scmp.eq.s32.totalorder %s24, 0
    %p234 = por %p232, %p233
    %p235 = scmp.ne.s32.totalorder %s223, %s224
    %p236 = scmp.eq.s32.totalorder %s25, 1
    %p237 = por %p235, %p236
    %p239 = scmp.ne.s32.totalorder %s224, %s238
    %p240 = scmp.eq.s32.totalorder %s25, 0
    %p241 = por %p239, %p240
    %s243 = sadd.s32 %s242, 1
    %p246 = scmp.eq.s32.totalorder %s19, 1
    %p247 = scmp.ne.s32.totalorder %s242, %s244
    %p248 = scmp.eq.s32.totalorder %s19, 0
    %p249 = por %p247, %p248
    %p250 = scmp.ne.s32.totalorder %s242, %s244
    %p251 = scmp.eq.s32.totalorder %s24, 1
    %p252 = por %p250, %p251
    %p253 = scmp.ne.s32.totalorder %s244, %s245
    %p254 = scmp.eq.s32.totalorder %s24, 0
    %p255 = por %p253, %p254
    %p256 = scmp.ne.s32.totalorder %s244, %s245
    %p257 = scmp.eq.s32.totalorder %s25, 1
    %p258 = por %p256, %p257
    %p260 = scmp.ne.s32.totalorder %s245, %s259
    %p261 = scmp.eq.s32.totalorder %s25, 0
    %p262 = por %p260, %p261
    %s264 = sadd.s32 %s263, 1
    %p267 = scmp.eq.s32.totalorder %s19, 1
    %p268 = scmp.ne.s32.totalorder %s263, %s265
    %p269 = scmp.eq.s32.totalorder %s19, 0
    %p270 = por %p268, %p269
    %p271 = scmp.ne.s32.totalorder %s263, %s265
    %p272 = scmp.eq.s32.totalorder %s24, 1
    %p273 = por %p271, %p272
    %p274 = scmp.ne.s32.totalorder %s265, %s266
    %p275 = scmp.eq.s32.totalorder %s24, 0
    %p276 = por %p274, %p275
    %p277 = scmp.ne.s32.totalorder %s265, %s266
    %p278 = scmp.eq.s32.totalorder %s25, 1
    %p279 = por %p277, %p278
    %p281 = scmp.ne.s32.totalorder %s266, %s280
    %p282 = scmp.eq.s32.totalorder %s25, 0
    %p283 = por %p281, %p282
    %s285 = sadd.s32 %s284, 1
    %p288 = scmp.eq.s32.totalorder %s19, 1
    %p289 = scmp.ne.s32.totalorder %s284, %s286
    %p290 = scmp.eq.s32.totalorder %s19, 0
    %p291 = por %p289, %p290
    %p292 = scmp.ne.s32.totalorder %s284, %s286
    %p293 = scmp.eq.s32.totalorder %s24, 1
    %p294 = por %p292, %p293
    %p295 = scmp.ne.s32.totalorder %s286, %s287
    %p296 = scmp.eq.s32.totalorder %s24, 0
    %p297 = por %p295, %p296
    %p298 = scmp.ne.s32.totalorder %s286, %s287
    %p299 = scmp.eq.s32.totalorder %s25, 1
    %p300 = por %p298, %p299
    %p302 = scmp.ne.s32.totalorder %s287, %s301
    %p303 = scmp.eq.s32.totalorder %s25, 0
    %p304 = por %p302, %p303
    %s305 = ssub.s32 %s19, %s26
    %p306 = scmp.eq.s32.totalorder %s305, 0
    %s308 = sadd.s32 %s307, 1
    %s309 = scalar_select %p306, %s307, %s308
    %p312 = pneg %p306
    %p313 = scmp.eq.s32.totalorder %s19, 1
    %p314 = por %p312, %p313
    %p315 = scmp.ne.s32.totalorder %s307, %s310
    %p316 = scmp.eq.s32.totalorder %s19, 0
    %p317 = por %p315, %p316
    %p318 = scmp.ne.s32.totalorder %s307, %s310
    %p319 = scmp.eq.s32.totalorder %s24, 1
    %p320 = por %p318, %p319
    %p321 = scmp.ne.s32.totalorder %s310, %s311
    %p322 = scmp.eq.s32.totalorder %s24, 0
    %p323 = por %p321, %p322
    %p324 = scmp.ne.s32.totalorder %s310, %s311
    %p325 = scmp.eq.s32.totalorder %s25, 1
    %p326 = por %p324, %p325
    %p328 = scmp.ne.s32.totalorder %s311, %s327
    %p329 = scmp.eq.s32.totalorder %s25, 0
    %p330 = por %p328, %p329
    %p331 = scmp.le.s32.totalorder 1, %s19
    %p332 = scmp.lt.s32.totalorder %s19, 3
    %p333 = pnand %p331, %p332
    %p334 = pneg %p333
    // Predicated region
    $region9: #{forward.5} parent=5 // pred_check
      _
    $region10: #{forward.5} parent=5 // pred_check_branch
      %336 = sbr.rel (%p333) target = $region12
    $region11: #{forward.5} parent=5 // pred_region
      %s337 = ssub.s32 %s19, 1
      // Predicated region
      $region13: #{forward.5} parent=11 // pred_check
        %p338 = pneg %p66
      $region14: #{forward.5} parent=11 // pred_check_branch
        %340 = sbr.rel (%p338) target = $region16
      $region15: #{forward.5} parent=11 // pred_region
        _
      $region16: #{forward.5} parent=11 // pred_fallthru
        _
      // Predicated region
      $region17: #{forward.5} parent=11 // pred_check
        %p341 = pneg %p87
      $region18: #{forward.5} parent=11 // pred_check_branch
        %343 = sbr.rel (%p341) target = $region20
      $region19: #{forward.5} parent=11 // pred_region
        _
      $region20: #{forward.5} parent=11 // pred_fallthru
        _
      // Predicated region
      $region21: #{forward.5} parent=11 // pred_check
        %p344 = pneg %p108
      $region22: #{forward.5} parent=11 // pred_check_branch
        %346 = sbr.rel (%p344) target = $region24
      $region23: #{forward.5} parent=11 // pred_region
        _
      $region24: #{forward.5} parent=11 // pred_fallthru
        _
      // Predicated region
      $region25: #{forward.5} parent=11 // pred_check
        %p347 = pneg %p129
      $region26: #{forward.5} parent=11 // pred_check_branch
        %349 = sbr.rel (%p347) target = $region28
      $region27: #{forward.5} parent=11 // pred_region
        _
      $region28: #{forward.5} parent=11 // pred_fallthru
        _
      // Predicated region
      $region29: #{forward.5} parent=11 // pred_check
        %p350 = pneg %p150
      $region30: #{forward.5} parent=11 // pred_check_branch
        %352 = sbr.rel (%p350) target = $region32
      $region31: #{forward.5} parent=11 // pred_region
        _
      $region32: #{forward.5} parent=11 // pred_fallthru
        _
      // Predicated region
      $region33: #{forward.5} parent=11 // pred_check
        %p353 = pneg %p171
      $region34: #{forward.5} parent=11 // pred_check_branch
        %355 = sbr.rel (%p353) target = $region36
      $region35: #{forward.5} parent=11 // pred_region
        _
      $region36: #{forward.5} parent=11 // pred_fallthru
        _
      // Predicated region
      $region37: #{forward.5} parent=11 // pred_check
        %p356 = pneg %p192
      $region38: #{forward.5} parent=11 // pred_check_branch
        %358 = sbr.rel (%p356) target = $region40
      $region39: #{forward.5} parent=11 // pred_region
        _
      $region40: #{forward.5} parent=11 // pred_fallthru
        _
      // Predicated region
      $region41: #{forward.5} parent=11 // pred_check
        %p359 = pneg %p213
      $region42: #{forward.5} parent=11 // pred_check_branch
        %361 = sbr.rel (%p359) target = $region44
      $region43: #{forward.5} parent=11 // pred_region
        _
      $region44: #{forward.5} parent=11 // pred_fallthru
        _
      // Predicated region
      $region45: #{forward.5} parent=11 // pred_check
        %p362 = pneg %p234
      $region46: #{forward.5} parent=11 // pred_check_branch
        %364 = sbr.rel (%p362) target = $region48
      $region47: #{forward.5} parent=11 // pred_region
        _
      $region48: #{forward.5} parent=11 // pred_fallthru
        _
      // Predicated region
      $region49: #{forward.5} parent=11 // pred_check
        %p365 = pneg %p255
      $region50: #{forward.5} parent=11 // pred_check_branch
        %367 = sbr.rel (%p365) target = $region52
      $region51: #{forward.5} parent=11 // pred_region
        _
      $region52: #{forward.5} parent=11 // pred_fallthru
        _
      // Predicated region
      $region53: #{forward.5} parent=11 // pred_check
        %p368 = pneg %p276
      $region54: #{forward.5} parent=11 // pred_check_branch
        %370 = sbr.rel (%p368) target = $region56
      $region55: #{forward.5} parent=11 // pred_region
        _
      $region56: #{forward.5} parent=11 // pred_fallthru
        _
      // Predicated region
      $region57: #{forward.5} parent=11 // pred_check
        %p371 = pneg %p297
      $region58: #{forward.5} parent=11 // pred_check_branch
        %373 = sbr.rel (%p371) target = $region60
      $region59: #{forward.5} parent=11 // pred_region
        _
      $region60: #{forward.5} parent=11 // pred_fallthru
        _
    $region12: #{forward.5} parent=5 // pred_fallthru
      _
    %p374 = scmp.lt.s32.totalorder %s19, 2
    // Predicated region
    $region61: #{forward.5} parent=5 // pred_check
      %p375 = pneg %p374
    $region62: #{forward.5} parent=5 // pred_check_branch
      %377 = sbr.rel (%p375) target = $region64
    $region63: #{forward.5} parent=5 // pred_region
      // Predicated region
      $region65: #{forward.5} parent=63 // pred_check
        %p378 = pneg %p39
      $region66: #{forward.5} parent=63 // pred_check_branch
        %380 = sbr.rel (%p378) target = $region68
      $region67: #{forward.5} parent=63 // pred_region
        %p381 = scmp.lt.s32.totalorder %s19, 1
        %s382 = scalar_select %p381, %s19, 1
        %s383 = smul.addr %s382, 8
        %s384 = scalar_lea.vmem %s0, %s383
      $region68: #{forward.5} parent=63 // pred_fallthru
        _
    $region64: #{forward.5} parent=5 // pred_fallthru
      _
    %p385 = scmp.le.s32.totalorder 1, %s19
    %p386 = scmp.lt.s32.totalorder %s19, 3
    %p387 = pnand %p385, %p386
    %p388 = pneg %p387
    // Predicated region
    $region69: #{forward.5} parent=5 // pred_check
      _
    $region70: #{forward.5} parent=5 // pred_check_branch
      %390 = sbr.rel (%p387) target = $region72
    $region71: #{forward.5} parent=5 // pred_region
      %s391 = ssub.s32 %s19, 1
      %p392 = scmp.lt.s32.totalorder %s24, 1
      %s393 = scalar_select %p392, %s24, 1
      %s394 = smul.addr %s393, 8
      %s395 = scalar_lea.vmem %s0, %s394
      %p396 = pneg %p45
      %p397 = pneg %p42
      %p398 = pneg %p66
      %p399 = pneg %p63
      %p400 = pneg %p87
      %p401 = pneg %p84
      %p402 = pneg %p108
      %p403 = pneg %p105
      %p404 = pneg %p129
      %p405 = pneg %p126
      %p406 = pneg %p150
      %p407 = pneg %p147
      %p408 = pneg %p171
      %p409 = pneg %p168
      %p410 = pneg %p192
      %p411 = pneg %p189
      %p412 = pneg %p213
      %p413 = pneg %p210
      %p414 = pneg %p234
      %p415 = pneg %p231
      %p416 = pneg %p255
      %p417 = pneg %p252
      %p418 = pneg %p276
      %p419 = pneg %p273
      %p420 = pneg %p297
      %p421 = pneg %p294
      %p422 = pneg %p323
      %p423 = pneg %p320
      %p424 = scmp.lt.s32.totalorder %s24, 1
      %s425 = scalar_select %p424, %s24, 1
      %s426 = smul.addr %s425, 8
      %s427 = scalar_lea.vmem %s13, %s426
      %p428 = scmp.lt.s32.totalorder %s24, 1
      %s429 = scalar_select %p428, %s24, 1
      %s430 = smul.addr %s429, 8
      %s431 = scalar_lea.vmem %s0, %s430
      %p432 = scmp.lt.s32.totalorder %s24, 1
      %s433 = scalar_select %p432, %s24, 1
      %s434 = smul.addr %s433, 8
      %s435 = scalar_lea.vmem %s13, %s434
      %v437 = vld [vmem:[%s431] sm:$0xff]
      %v438 = vpack.c.bf16 %v437, %v437
      %v439 = vld [vmem:[%s1] sm:$0xf]
      %v440 = vld [vmem:[%s1 + $0x4] sm:$0xf]
      %v441 = vld [vmem:[%s1 + $0x8] sm:$0xf]
      %v442 = vld [vmem:[%s1 + $0xc] sm:$0xf]
      %v443 = vld [vmem:[%s2] sm:$0x1]
      %v445 = vlaneseq
      %v446 = vshrl.u32 %v445, 7
      %v447 = vsub.s32 0, %v446
      %v448 = vrot.slane %v443, %v447
      %v454 = vunpack.c.l.b16 %v439
      %v455 = vunpack.c.l.b16 %v440
      %v456 = vunpack.c.l.b16 %v441
      %v457 = vunpack.c.l.b16 %v442
      %v458 = vpack.c.b16 %v455, %v454
      %v459 = vpack.c.b16 %v457, %v456
      %vm462 = vcmask 261120
      %v464 = vsel %vm462, %v438, 0
      %466 = vmatprep.subr.bf16.mxu0 0
      %467 = vmatpush1.bf16.msra.mxu0 %v458
      %468 = vmatprep.subr.bf16.mxu0 0
      %469 = vmatpush1.bf16.msra.mxu0 %v459
      %470 = vmatprep.subr.bf16.mxu0 0
      %471 = vmatpush1.bf16.msra.mxu0 0
      %472 = vmatprep.subr.bf16.mxu0 0
      %473 = vmatpush1.bf16.msra.mxu0 0
      %474 = vmatprep.subr.bf16.mxu0 0
      %475 = vmatpush1.bf16.msra.mxu0 0
      %476 = vmatprep.subr.bf16.mxu0 0
      %477 = vmatpush1.bf16.msra.mxu0 0
      %478 = vmatprep.subr.bf16.mxu0 0
      %479 = vmatpush1.bf16.msra.mxu0 0
      %480 = vmatprep.subr.bf16.mxu0 0
      %481 = vmatpush1.bf16.msra.mxu0 0
      %482 = vmatprep.subr.bf16.mxu0 0
      %483 = vmatpush1.bf16.msra.mxu0 0
      %484 = vmatprep.subr.bf16.mxu0 0
      %485 = vmatpush1.bf16.msra.mxu0 0
      %486 = vmatprep.subr.bf16.mxu0 0
      %487 = vmatpush1.bf16.msra.mxu0 0
      %488 = vmatprep.subr.bf16.mxu0 0
      %489 = vmatpush1.bf16.msra.mxu0 0
      %490 = vmatprep.subr.bf16.mxu0 0
      %491 = vmatpush1.bf16.msra.mxu0 0
      %492 = vmatprep.subr.bf16.mxu0 0
      %493 = vmatpush1.bf16.msra.mxu0 0
      %494 = vmatprep.subr.bf16.mxu0 0
      %495 = vmatpush1.bf16.msra.mxu0 0
      %496 = vmatprep.subr.bf16.mxu0 0
      %497 = vmatpush1.bf16.msra.mxu0 0
      %498 = vmatprep.mubr.bf16.mxu0 0
      %499 = vmatmul.mubr.bf16.gmra.mrb[0].mxu0 %v464
      %v500 = vpop.f32.mrb[0].mxu0
      %v501 = vadd.f32 %v448, %v500
      %v502 = vpop.f32.mrb[0].mxu0
      %v503 = vpop.f32.mrb[0].mxu0
      %v504 = vpop.f32.mrb[0].mxu0
      %505 = vdwg.mxu0
      %v506 = vld [vmem:[%s3] sm:$0xf]
      %v507 = vld [vmem:[%s3 + $0x4] sm:$0xf]
      %v508 = vld [vmem:[%s3 + $0x8] sm:$0xf]
      %v509 = vld [vmem:[%s3 + $0xc] sm:$0xf]
      %511 = vrot.lane.b32.xlu0 %v501, 96
      %v512 = vpop.permute.xlu0 %511
      %vm513 = vcmask 31744
      %v514 = vsel %vm513, %v501, 0
      %v516 = vsel %vm513, %v512, 0
      %518 = vmatprep.subr.mxu0 0.0
      %519 = vmatpush1.xpose.msra.mxu0 %v516
      %520 = vmatprep.subr.mxu0 0.0
      %521 = vmatpush1.xpose.msra.mxu0 0.0
      %522 = vmatprep.subr.mxu0 0.0
      %523 = vmatpush1.xpose.msra.mxu0 0.0
      %524 = vmatprep.subr.mxu0 0.0
      %525 = vmatpush1.xpose.msra.mxu0 0.0
      %526 = vmatprep.subr.mxu0 0.0
      %527 = vmatpush1.xpose.msra.mxu0 0.0
      %528 = vmatprep.subr.mxu0 0.0
      %529 = vmatpush1.xpose.msra.mxu0 0.0
      %530 = vmatprep.subr.mxu0 0.0
      %531 = vmatpush1.xpose.msra.mxu0 0.0
      %532 = vmatprep.subr.mxu0 0.0
      %533 = vmatpush1.xpose.msra.mxu0 0.0
      %534 = vmatprep.subr.mxu0 0.0
      %535 = vmatpush1.xpose.msra.mxu0 0.0
      %536 = vmatprep.subr.mxu0 0.0
      %537 = vmatpush1.xpose.msra.mxu0 0.0
      %538 = vmatprep.subr.mxu0 0.0
      %539 = vmatpush1.xpose.msra.mxu0 0.0
      %540 = vmatprep.subr.mxu0 0.0
      %541 = vmatpush1.xpose.msra.mxu0 0.0
      %542 = vmatprep.subr.mxu0 0.0
      %543 = vmatpush1.xpose.msra.mxu0 0.0
      %544 = vmatprep.subr.mxu0 0.0
      %545 = vmatpush1.xpose.msra.mxu0 0.0
      %546 = vmatprep.subr.mxu0 0.0
      %547 = vmatpush1.xpose.msra.mxu0 0.0
      %548 = vmatprep.subr.mxu0 0.0
      %549 = vmatpush1.xpose.msra.mxu0 0.0
      %550 = vmatprep.subr.mxu0 0.0
      %551 = vmatpush1.xpose.msra.mxu0 0.0
      %552 = vmatprep.subr.mxu0 0.0
      %553 = vmatpush1.xpose.msra.mxu0 0.0
      %554 = vmatprep.subr.mxu0 0.0
      %555 = vmatpush1.xpose.msra.mxu0 0.0
      %556 = vmatprep.subr.mxu0 0.0
      %557 = vmatpush1.xpose.msra.mxu0 0.0
      %558 = vmatprep.subr.mxu0 0.0
      %559 = vmatpush1.xpose.msra.mxu0 0.0
      %560 = vmatprep.subr.mxu0 0.0
      %561 = vmatpush1.xpose.msra.mxu0 0.0
      %562 = vmatprep.subr.mxu0 0.0
      %563 = vmatpush1.xpose.msra.mxu0 0.0
      %564 = vmatprep.subr.mxu0 0.0
      %565 = vmatpush1.xpose.msra.mxu0 0.0
      %566 = vmatprep.subr.mxu0 0.0
      %567 = vmatpush1.xpose.msra.mxu0 0.0
      %568 = vmatprep.subr.mxu0 0.0
      %569 = vmatpush1.xpose.msra.mxu0 0.0
      %570 = vmatprep.subr.mxu0 0.0
      %571 = vmatpush1.xpose.msra.mxu0 0.0
      %572 = vmatprep.subr.mxu0 0.0
      %573 = vmatpush1.xpose.msra.mxu0 0.0
      %574 = vmatprep.subr.mxu0 0.0
      %575 = vmatpush1.xpose.msra.mxu0 0.0
      %576 = vmatprep.subr.mxu0 0.0
      %577 = vmatpush1.xpose.msra.mxu0 0.0
      %578 = vmatprep.subr.mxu0 0.0
      %579 = vmatpush1.xpose.msra.mxu0 0.0
      %580 = vmatprep.subr.mxu0 0.0
      %581 = vmatpush1.xpose.msra.mxu0 0.0
      %582 = vmatprep.mubr.f32.mxu0 0.0
      %583 = vmatmul.mubr.f32.gmra.mrb[0].mxu0 %v514
      %v584 = vpop.f32.mrb[0].mxu0
      %v585 = vadd.f32 0.0, %v584
      %v586 = vpop.f32.mrb[0].mxu0
      %587 = vdwg.mxu0
      %v588 = vmul.f32 %v585, 0.5
      %vm589 = vcmask 64512
      %v590 = vsel %vm589, %v588, -inf
      %591 = vmax.xlane.f32.xlu0 %v590
      %v592 = vpop.xlane.xlu0 %591
      %v593 = vsub.f32 %v588, %v592
      %v594 = vmul.f32 %v593, 1.442695
      %v595 = vpow.pop %v594
      %v596 = vsel %vm589, %v595, 0.0
      %597 = vadd.xlane.f32.xlu0 %v596
      %v598 = vpop.xlane.xlu0 %597
      %v599 = vrcp.pop %v598
      %v600 = vmul.f32 %v595, %v599
      %601 = vrot.lane.b32.xlu0 %v501, 64
      %v602 = vpop.permute.xlu0 %601
      %v605 = vsel %vm589, %v600, 0
      %607 = vmatprep.subr.mxu0 0.0
      %608 = vmatpush1.msra.mxu0 %v602
      %609 = vmatprep.subr.mxu0 0.0
      %610 = vmatpush1.msra.mxu0 0.0
      %611 = vmatprep.subr.mxu0 0.0
      %612 = vmatpush1.msra.mxu0 0.0
      %613 = vmatprep.subr.mxu0 0.0
      %614 = vmatpush1.msra.mxu0 0.0
      %615 = vmatprep.subr.mxu0 0.0
      %616 = vmatpush1.msra.mxu0 0.0
      %617 = vmatprep.subr.mxu0 0.0
      %618 = vmatpush1.msra.mxu0 0.0
      %619 = vmatprep.subr.mxu0 0.0
      %620 = vmatpush1.msra.mxu0 0.0
      %621 = vmatprep.subr.mxu0 0.0
      %622 = vmatpush1.msra.mxu0 0.0
      %623 = vmatprep.subr.mxu0 0.0
      %624 = vmatpush1.msra.mxu0 0.0
      %625 = vmatprep.subr.mxu0 0.0
      %626 = vmatpush1.msra.mxu0 0.0
      %627 = vmatprep.subr.mxu0 0.0
      %628 = vmatpush1.msra.mxu0 0.0
      %629 = vmatprep.subr.mxu0 0.0
      %630 = vmatpush1.msra.mxu0 0.0
      %631 = vmatprep.subr.mxu0 0.0
      %632 = vmatpush1.msra.mxu0 0.0
      %633 = vmatprep.subr.mxu0 0.0
      %634 = vmatpush1.msra.mxu0 0.0
      %635 = vmatprep.subr.mxu0 0.0
      %636 = vmatpush1.msra.mxu0 0.0
      %637 = vmatprep.subr.mxu0 0.0
      %638 = vmatpush1.msra.mxu0 0.0
      %639 = vmatprep.subr.mxu0 0.0
      %640 = vmatpush1.msra.mxu0 0.0
      %641 = vmatprep.subr.mxu0 0.0
      %642 = vmatpush1.msra.mxu0 0.0
      %643 = vmatprep.subr.mxu0 0.0
      %644 = vmatpush1.msra.mxu0 0.0
      %645 = vmatprep.subr.mxu0 0.0
      %646 = vmatpush1.msra.mxu0 0.0
      %647 = vmatprep.subr.mxu0 0.0
      %648 = vmatpush1.msra.mxu0 0.0
      %649 = vmatprep.subr.mxu0 0.0
      %650 = vmatpush1.msra.mxu0 0.0
      %651 = vmatprep.subr.mxu0 0.0
      %652 = vmatpush1.msra.mxu0 0.0
      %653 = vmatprep.subr.mxu0 0.0
      %654 = vmatpush1.msra.mxu0 0.0
      %655 = vmatprep.subr.mxu0 0.0
      %656 = vmatpush1.msra.mxu0 0.0
      %657 = vmatprep.subr.mxu0 0.0
      %658 = vmatpush1.msra.mxu0 0.0
      %659 = vmatprep.subr.mxu0 0.0
      %660 = vmatpush1.msra.mxu0 0.0
      %661 = vmatprep.subr.mxu0 0.0
      %662 = vmatpush1.msra.mxu0 0.0
      %663 = vmatprep.subr.mxu0 0.0
      %664 = vmatpush1.msra.mxu0 0.0
      %665 = vmatprep.subr.mxu0 0.0
      %666 = vmatpush1.msra.mxu0 0.0
      %667 = vmatprep.subr.mxu0 0.0
      %668 = vmatpush1.msra.mxu0 0.0
      %669 = vmatprep.subr.mxu0 0.0
      %670 = vmatpush1.msra.mxu0 0.0
      %671 = vmatprep.mubr.f32.mxu0 0.0
      %672 = vmatmul.mubr.f32.gmra.mrb[0].mxu0 %v605
      %v673 = vpop.f32.mrb[0].mxu0
      %v674 = vadd.f32 0.0, %v673
      %v675 = vpop.f32.mrb[0].mxu0
      %676 = vdwg.mxu0
      %v677 = vpack.c.bf16 %v674, %v674
      %678 = vrot.lane.b32.xlu0 %v501, 124
      %v679 = vpop.permute.xlu0 %678
      %680 = vrot.lane.b32.xlu0 %v501, 92
      %v681 = vpop.permute.xlu0 %680
      %v682 = vsel %vm513, %v679, 0
      %v684 = vsel %vm513, %v681, 0
      %686 = vmatprep.subr.mxu0 0.0
      %687 = vmatpush1.xpose.msra.mxu0 %v684
      %688 = vmatprep.subr.mxu0 0.0
      %689 = vmatpush1.xpose.msra.mxu0 0.0
      %690 = vmatprep.subr.mxu0 0.0
      %691 = vmatpush1.xpose.msra.mxu0 0.0
      %692 = vmatprep.subr.mxu0 0.0
      %693 = vmatpush1.xpose.msra.mxu0 0.0
      %694 = vmatprep.subr.mxu0 0.0
      %695 = vmatpush1.xpose.msra.mxu0 0.0
      %696 = vmatprep.subr.mxu0 0.0
      %697 = vmatpush1.xpose.msra.mxu0 0.0
      %698 = vmatprep.subr.mxu0 0.0
      %699 = vmatpush1.xpose.msra.mxu0 0.0
      %700 = vmatprep.subr.mxu0 0.0
      %701 = vmatpush1.xpose.msra.mxu0 0.0
      %702 = vmatprep.subr.mxu0 0.0
      %703 = vmatpush1.xpose.msra.mxu0 0.0
      %704 = vmatprep.subr.mxu0 0.0
      %705 = vmatpush1.xpose.msra.mxu0 0.0
      %706 = vmatprep.subr.mxu0 0.0
      %707 = vmatpush1.xpose.msra.mxu0 0.0
      %708 = vmatprep.subr.mxu0 0.0
      %709 = vmatpush1.xpose.msra.mxu0 0.0
      %710 = vmatprep.subr.mxu0 0.0
      %711 = vmatpush1.xpose.msra.mxu0 0.0
      %712 = vmatprep.subr.mxu0 0.0
      %713 = vmatpush1.xpose.msra.mxu0 0.0
      %714 = vmatprep.subr.mxu0 0.0
      %715 = vmatpush1.xpose.msra.mxu0 0.0
      %716 = vmatprep.subr.mxu0 0.0
      %717 = vmatpush1.xpose.msra.mxu0 0.0
      %718 = vmatprep.subr.mxu0 0.0
      %719 = vmatpush1.xpose.msra.mxu0 0.0
      %720 = vmatprep.subr.mxu0 0.0
      %721 = vmatpush1.xpose.msra.mxu0 0.0
      %722 = vmatprep.subr.mxu0 0.0
      %723 = vmatpush1.xpose.msra.mxu0 0.0
      %724 = vmatprep.subr.mxu0 0.0
      %725 = vmatpush1.xpose.msra.mxu0 0.0
      %726 = vmatprep.subr.mxu0 0.0
      %727 = vmatpush1.xpose.msra.mxu0 0.0
      %728 = vmatprep.subr.mxu0 0.0
      %729 = vmatpush1.xpose.msra.mxu0 0.0
      %730 = vmatprep.subr.mxu0 0.0
      %731 = vmatpush1.xpose.msra.mxu0 0.0
      %732 = vmatprep.subr.mxu0 0.0
      %733 = vmatpush1.xpose.msra.mxu0 0.0
      %734 = vmatprep.subr.mxu0 0.0
      %735 = vmatpush1.xpose.msra.mxu0 0.0
      %736 = vmatprep.subr.mxu0 0.0
      %737 = vmatpush1.xpose.msra.mxu0 0.0
      %738 = vmatprep.subr.mxu0 0.0
      %739 = vmatpush1.xpose.msra.mxu0 0.0
      %740 = vmatprep.subr.mxu0 0.0
      %741 = vmatpush1.xpose.msra.mxu0 0.0
      %742 = vmatprep.subr.mxu0 0.0
      %743 = vmatpush1.xpose.msra.mxu0 0.0
      %744 = vmatprep.subr.mxu0 0.0
      %745 = vmatpush1.xpose.msra.mxu0 0.0
      %746 = vmatprep.subr.mxu0 0.0
      %747 = vmatpush1.xpose.msra.mxu0 0.0
      %748 = vmatprep.subr.mxu0 0.0
      %749 = vmatpush1.xpose.msra.mxu0 0.0
      %750 = vmatprep.mubr.f32.mxu0 0.0
      %751 = vmatmul.mubr.f32.gmra.mrb[0].mxu0 %v682
      %v752 = vpop.f32.mrb[0].mxu0
      %v753 = vadd.f32 0.0, %v752
      %v754 = vpop.f32.mrb[0].mxu0
      %755 = vdwg.mxu0
      %v756 = vmul.f32 %v753, 0.5
      %v757 = vsel %vm589, %v756, -inf
      %758 = vmax.xlane.f32.xlu0 %v757
      %v759 = vpop.xlane.xlu0 %758
      %v760 = vsub.f32 %v756, %v759
      %v761 = vmul.f32 %v760, 1.442695
      %v762 = vpow.pop %v761
      %v763 = vsel %vm589, %v762, 0.0
      %764 = vadd.xlane.f32.xlu0 %v763
      %v765 = vpop.xlane.xlu0 %764
      %v766 = vrcp.pop %v765
      %v767 = vmul.f32 %v762, %v766
      %768 = vrot.lane.b32.xlu0 %v501, 60
      %v769 = vpop.permute.xlu0 %768
      %v772 = vsel %vm589, %v767, 0
      %774 = vmatprep.subr.mxu0 0.0
      %775 = vmatpush1.msra.mxu0 %v769
      %776 = vmatprep.subr.mxu0 0.0
      %777 = vmatpush1.msra.mxu0 0.0
      %778 = vmatprep.subr.mxu0 0.0
      %779 = vmatpush1.msra.mxu0 0.0
      %780 = vmatprep.subr.mxu0 0.0
      %781 = vmatpush1.msra.mxu0 0.0
      %782 = vmatprep.subr.mxu0 0.0
      %783 = vmatpush1.msra.mxu0 0.0
      %784 = vmatprep.subr.mxu0 0.0
      %785 = vmatpush1.msra.mxu0 0.0
      %786 = vmatprep.subr.mxu0 0.0
      %787 = vmatpush1.msra.mxu0 0.0
      %788 = vmatprep.subr.mxu0 0.0
      %789 = vmatpush1.msra.mxu0 0.0
      %790 = vmatprep.subr.mxu0 0.0
      %791 = vmatpush1.msra.mxu0 0.0
      %792 = vmatprep.subr.mxu0 0.0
      %793 = vmatpush1.msra.mxu0 0.0
      %794 = vmatprep.subr.mxu0 0.0
      %795 = vmatpush1.msra.mxu0 0.0
      %796 = vmatprep.subr.mxu0 0.0
      %797 = vmatpush1.msra.mxu0 0.0
      %798 = vmatprep.subr.mxu0 0.0
      %799 = vmatpush1.msra.mxu0 0.0
      %800 = vmatprep.subr.mxu0 0.0
      %801 = vmatpush1.msra.mxu0 0.0
      %802 = vmatprep.subr.mxu0 0.0
      %803 = vmatpush1.msra.mxu0 0.0
      %804 = vmatprep.subr.mxu0 0.0
      %805 = vmatpush1.msra.mxu0 0.0
      %806 = vmatprep.subr.mxu0 0.0
      %807 = vmatpush1.msra.mxu0 0.0
      %808 = vmatprep.subr.mxu0 0.0
      %809 = vmatpush1.msra.mxu0 0.0
      %810 = vmatprep.subr.mxu0 0.0
      %811 = vmatpush1.msra.mxu0 0.0
      %812 = vmatprep.subr.mxu0 0.0
      %813 = vmatpush1.msra.mxu0 0.0
      %814 = vmatprep.subr.mxu0 0.0
      %815 = vmatpush1.msra.mxu0 0.0
      %816 = vmatprep.subr.mxu0 0.0
      %817 = vmatpush1.msra.mxu0 0.0
      %818 = vmatprep.subr.mxu0 0.0
      %819 = vmatpush1.msra.mxu0 0.0
      %820 = vmatprep.subr.mxu0 0.0
      %821 = vmatpush1.msra.mxu0 0.0
      %822 = vmatprep.subr.mxu0 0.0
      %823 = vmatpush1.msra.mxu0 0.0
      %824 = vmatprep.subr.mxu0 0.0
      %825 = vmatpush1.msra.mxu0 0.0
      %826 = vmatprep.subr.mxu0 0.0
      %827 = vmatpush1.msra.mxu0 0.0
      %828 = vmatprep.subr.mxu0 0.0
      %829 = vmatpush1.msra.mxu0 0.0
      %830 = vmatprep.subr.mxu0 0.0
      %831 = vmatpush1.msra.mxu0 0.0
      %832 = vmatprep.subr.mxu0 0.0
      %833 = vmatpush1.msra.mxu0 0.0
      %834 = vmatprep.subr.mxu0 0.0
      %835 = vmatpush1.msra.mxu0 0.0
      %836 = vmatprep.subr.mxu0 0.0
      %837 = vmatpush1.msra.mxu0 0.0
      %838 = vmatprep.mubr.f32.mxu0 0.0
      %839 = vmatmul.mubr.f32.gmra.mrb[0].mxu0 %v772
      %v840 = vpop.f32.mrb[0].mxu0
      %v841 = vadd.f32 0.0, %v840
      %v842 = vpop.f32.mrb[0].mxu0
      %843 = vdwg.mxu0
      %v844 = vpack.c.bf16 %v841, %v841
      %v846 = vunpack.c.l.b16 %v506
      %v847 = vpack.c.b16 %v846, %v846
      %v848 = vrot.slane %v847, 2
      %v850 = vsel %vm513, %v844, 0
      %vm852 = vcmask 1041408
      %v854 = vsel %vm852, %v848, 0
      %856 = vmatprep.subr.bf16.mxu0 0
      %857 = vmatpush1.bf16.msra.mxu0 %v854
      %858 = vmatprep.subr.bf16.mxu0 0
      %859 = vmatpush1.bf16.msra.mxu0 0
      %860 = vmatprep.subr.bf16.mxu0 0
      %861 = vmatpush1.bf16.msra.mxu0 0
      %862 = vmatprep.subr.bf16.mxu0 0
      %863 = vmatpush1.bf16.msra.mxu0 0
      %864 = vmatprep.subr.bf16.mxu0 0
      %865 = vmatpush1.bf16.msra.mxu0 0
      %866 = vmatprep.subr.bf16.mxu0 0
      %867 = vmatpush1.bf16.msra.mxu0 0
      %868 = vmatprep.subr.bf16.mxu0 0
      %869 = vmatpush1.bf16.msra.mxu0 0
      %870 = vmatprep.subr.bf16.mxu0 0
      %871 = vmatpush1.bf16.msra.mxu0 0
      %872 = vmatprep.subr.bf16.mxu0 0
      %873 = vmatpush1.bf16.msra.mxu0 0
      %874 = vmatprep.subr.bf16.mxu0 0
      %875 = vmatpush1.bf16.msra.mxu0 0
      %876 = vmatprep.subr.bf16.mxu0 0
      %877 = vmatpush1.bf16.msra.mxu0 0
      %878 = vmatprep.subr.bf16.mxu0 0
      %879 = vmatpush1.bf16.msra.mxu0 0
      %880 = vmatprep.subr.bf16.mxu0 0
      %881 = vmatpush1.bf16.msra.mxu0 0
      %882 = vmatprep.subr.bf16.mxu0 0
      %883 = vmatpush1.bf16.msra.mxu0 0
      %884 = vmatprep.subr.bf16.mxu0 0
      %885 = vmatpush1.bf16.msra.mxu0 0
      %886 = vmatprep.subr.bf16.mxu0 0
      %887 = vmatpush1.bf16.msra.mxu0 0
      %888 = vmatprep.mubr.bf16.mxu0 0
      %889 = vmatmul.mubr.bf16.gmra.mrb[0].mxu0 %v850
      %v890 = vpop.f32.mrb[0].mxu0
      %v891 = vadd.f32 0.0, %v890
      %v892 = vpop.f32.mrb[0].mxu0
      %v893 = vpop.f32.mrb[0].mxu0
      %v894 = vpop.f32.mrb[0].mxu0
      %895 = vdwg.mxu0
      %v897 = vsel %vm513, %v677, 0
      %v900 = vsel %vm852, %v506, 0
      %902 = vmatprep.subr.bf16.mxu0 0
      %903 = vmatpush1.bf16.msra.mxu0 %v900
      %904 = vmatprep.subr.bf16.mxu0 0
      %905 = vmatpush1.bf16.msra.mxu0 0
      %906 = vmatprep.subr.bf16.mxu0 0
      %907 = vmatpush1.bf16.msra.mxu0 0
      %908 = vmatprep.subr.bf16.mxu0 0
      %909 = vmatpush1.bf16.msra.mxu0 0
      %910 = vmatprep.subr.bf16.mxu0 0
      %911 = vmatpush1.bf16.msra.mxu0 0
      %912 = vmatprep.subr.bf16.mxu0 0
      %913 = vmatpush1.bf16.msra.mxu0 0
      %914 = vmatprep.subr.bf16.mxu0 0
      %915 = vmatpush1.bf16.msra.mxu0 0
      %916 = vmatprep.subr.bf16.mxu0 0
      %917 = vmatpush1.bf16.msra.mxu0 0
      %918 = vmatprep.subr.bf16.mxu0 0
      %919 = vmatpush1.bf16.msra.mxu0 0
      %920 = vmatprep.subr.bf16.mxu0 0
      %921 = vmatpush1.bf16.msra.mxu0 0
      %922 = vmatprep.subr.bf16.mxu0 0
      %923 = vmatpush1.bf16.msra.mxu0 0
      %924 = vmatprep.subr.bf16.mxu0 0
      %925 = vmatpush1.bf16.msra.mxu0 0
      %926 = vmatprep.subr.bf16.mxu0 0
      %927 = vmatpush1.bf16.msra.mxu0 0
      %928 = vmatprep.subr.bf16.mxu0 0
      %929 = vmatpush1.bf16.msra.mxu0 0
      %930 = vmatprep.subr.bf16.mxu0 0
      %931 = vmatpush1.bf16.msra.mxu0 0
      %932 = vmatprep.subr.bf16.mxu0 0
      %933 = vmatpush1.bf16.msra.mxu0 0
      %934 = vmatprep.mubr.bf16.mxu0 0
      %935 = vmatmul.mubr.bf16.gmra.mrb[0].mxu0 %v897
      %v936 = vpop.f32.mrb[0].mxu0
      %v937 = vadd.f32 %v891, %v936
      %v938 = vpop.f32.mrb[0].mxu0
      %v939 = vpop.f32.mrb[0].mxu0
      %v940 = vpop.f32.mrb[0].mxu0
      %941 = vdwg.mxu0
      %942 = vrot.lane.b32.xlu0 %v501, 120
      %v943 = vpop.permute.xlu0 %942
      %944 = vrot.lane.b32.xlu0 %v501, 88
      %v945 = vpop.permute.xlu0 %944
      %v946 = vsel %vm513, %v943, 0
      %v948 = vsel %vm513, %v945, 0
      %950 = vmatprep.subr.mxu0 0.0
      %951 = vmatpush1.xpose.msra.mxu0 %v948
      %952 = vmatprep.subr.mxu0 0.0
      %953 = vmatpush1.xpose.msra.mxu0 0.0
      %954 = vmatprep.subr.mxu0 0.0
      %955 = vmatpush1.xpose.msra.mxu0 0.0
      %956 = vmatprep.subr.mxu0 0.0
      %957 = vmatpush1.xpose.msra.mxu0 0.0
      %958 = vmatprep.subr.mxu0 0.0
      %959 = vmatpush1.xpose.msra.mxu0 0.0
      %960 = vmatprep.subr.mxu0 0.0
      %961 = vmatpush1.xpose.msra.mxu0 0.0
      %962 = vmatprep.subr.mxu0 0.0
      %963 = vmatpush1.xpose.msra.mxu0 0.0
      %964 = vmatprep.subr.mxu0 0.0
      %965 = vmatpush1.xpose.msra.mxu0 0.0
      %966 = vmatprep.subr.mxu0 0.0
      %967 = vmatpush1.xpose.msra.mxu0 0.0
      %968 = vmatprep.subr.mxu0 0.0
      %969 = vmatpush1.xpose.msra.mxu0 0.0
      %970 = vmatprep.subr.mxu0 0.0
      %971 = vmatpush1.xpose.msra.mxu0 0.0
      %972 = vmatprep.subr.mxu0 0.0
      %973 = vmatpush1.xpose.msra.mxu0 0.0
      %974 = vmatprep.subr.mxu0 0.0
      %975 = vmatpush1.xpose.msra.mxu0 0.0
      %976 = vmatprep.subr.mxu0 0.0
      %977 = vmatpush1.xpose.msra.mxu0 0.0
      %978 = vmatprep.subr.mxu0 0.0
      %979 = vmatpush1.xpose.msra.mxu0 0.0
      %980 = vmatprep.subr.mxu0 0.0
      %981 = vmatpush1.xpose.msra.mxu0 0.0
      %982 = vmatprep.subr.mxu0 0.0
      %983 = vmatpush1.xpose.msra.mxu0 0.0
      %984 = vmatprep.subr.mxu0 0.0
      %985 = vmatpush1.xpose.msra.mxu0 0.0
      %986 = vmatprep.subr.mxu0 0.0
      %987 = vmatpush1.xpose.msra.mxu0 0.0
      %988 = vmatprep.subr.mxu0 0.0
      %989 = vmatpush1.xpose.msra.mxu0 0.0
      %990 = vmatprep.subr.mxu0 0.0
      %991 = vmatpush1.xpose.msra.mxu0 0.0
      %992 = vmatprep.subr.mxu0 0.0
      %993 = vmatpush1.xpose.msra.mxu0 0.0
      %994 = vmatprep.subr.mxu0 0.0
      %995 = vmatpush1.xpose.msra.mxu0 0.0
      %996 = vmatprep.subr.mxu0 0.0
      %997 = vmatpush1.xpose.msra.mxu0 0.0
      %998 = vmatprep.subr.mxu0 0.0
      %999 = vmatpush1.xpose.msra.mxu0 0.0
      %1000 = vmatprep.subr.mxu0 0.0
      %1001 = vmatpush1.xpose.msra.mxu0 0.0
      %1002 = vmatprep.subr.mxu0 0.0
      %1003 = vmatpush1.xpose.msra.mxu0 0.0
      %1004 = vmatprep.subr.mxu0 0.0
      %1005 = vmatpush1.xpose.msra.mxu0 0.0
      %1006 = vmatprep.subr.mxu0 0.0
      %1007 = vmatpush1.xpose.msra.mxu0 0.0
      %1008 = vmatprep.subr.mxu0 0.0
      %1009 = vmatpush1.xpose.msra.mxu0 0.0
      %1010 = vmatprep.subr.mxu0 0.0
      %1011 = vmatpush1.xpose.msra.mxu0 0.0
      %1012 = vmatprep.subr.mxu0 0.0
      %1013 = vmatpush1.xpose.msra.mxu0 0.0
      %1014 = vmatprep.mubr.f32.mxu0 0.0
      %1015 = vmatmul.mubr.f32.gmra.mrb[0].mxu0 %v946
      %v1016 = vpop.f32.mrb[0].mxu0
      %v1017 = vadd.f32 0.0, %v1016
      %v1018 = vpop.f32.mrb[0].mxu0
      %1019 = vdwg.mxu0
      %v1020 = vmul.f32 %v1017, 0.5
      %v1021 = vsel %vm589, %v1020, -inf
      %1022 = vmax.xlane.f32.xlu0 %v1021
      %v1023 = vpop.xlane.xlu0 %1022
      %v1024 = vsub.f32 %v1020, %v1023
      %v1025 = vmul.f32 %v1024, 1.442695
      %v1026 = vpow.pop %v1025
      %v1027 = vsel %vm589, %v1026, 0.0
      %1028 = vadd.xlane.f32.xlu0 %v1027
      %v1029 = vpop.xlane.xlu0 %1028
      %v1030 = vrcp.pop %v1029
      %v1031 = vmul.f32 %v1026, %v1030
      %1032 = vrot.lane.b32.xlu0 %v501, 56
      %v1033 = vpop.permute.xlu0 %1032
      %v1036 = vsel %vm589, %v1031, 0
      %1038 = vmatprep.subr.mxu0 0.0
      %1039 = vmatpush1.msra.mxu0 %v1033
      %1040 = vmatprep.subr.mxu0 0.0
      %1041 = vmatpush1.msra.mxu0 0.0
      %1042 = vmatprep.subr.mxu0 0.0
      %1043 = vmatpush1.msra.mxu0 0.0
      %1044 = vmatprep.subr.mxu0 0.0
      %1045 = vmatpush1.msra.mxu0 0.0
      %1046 = vmatprep.subr.mxu0 0.0
      %1047 = vmatpush1.msra.mxu0 0.0
      %1048 = vmatprep.subr.mxu0 0.0
      %1049 = vmatpush1.msra.mxu0 0.0
      %1050 = vmatprep.subr.mxu0 0.0
      %1051 = vmatpush1.msra.mxu0 0.0
      %1052 = vmatprep.subr.mxu0 0.0
      %1053 = vmatpush1.msra.mxu0 0.0
      %1054 = vmatprep.subr.mxu0 0.0
      %1055 = vmatpush1.msra.mxu0 0.0
      %1056 = vmatprep.subr.mxu0 0.0
      %1057 = vmatpush1.msra.mxu0 0.0
      %1058 = vmatprep.subr.mxu0 0.0
      %1059 = vmatpush1.msra.mxu0 0.0
      %1060 = vmatprep.subr.mxu0 0.0
      %1061 = vmatpush1.msra.mxu0 0.0
      %1062 = vmatprep.subr.mxu0 0.0
      %1063 = vmatpush1.msra.mxu0 0.0
      %1064 = vmatprep.subr.mxu0 0.0
      %1065 = vmatpush1.msra.mxu0 0.0
      %1066 = vmatprep.subr.mxu0 0.0
      %1067 = vmatpush1.msra.mxu0 0.0
      %1068 = vmatprep.subr.mxu0 0.0
      %1069 = vmatpush1.msra.mxu0 0.0
      %1070 = vmatprep.subr.mxu0 0.0
      %1071 = vmatpush1.msra.mxu0 0.0
      %1072 = vmatprep.subr.mxu0 0.0
      %1073 = vmatpush1.msra.mxu0 0.0
      %1074 = vmatprep.subr.mxu0 0.0
      %1075 = vmatpush1.msra.mxu0 0.0
      %1076 = vmatprep.subr.mxu0 0.0
      %1077 = vmatpush1.msra.mxu0 0.0
      %1078 = vmatprep.subr.mxu0 0.0
      %1079 = vmatpush1.msra.mxu0 0.0
      %1080 = vmatprep.subr.mxu0 0.0
      %1081 = vmatpush1.msra.mxu0 0.0
      %1082 = vmatprep.subr.mxu0 0.0
      %1083 = vmatpush1.msra.mxu0 0.0
      %1084 = vmatprep.subr.mxu0 0.0
      %1085 = vmatpush1.msra.mxu0 0.0
      %1086 = vmatprep.subr.mxu0 0.0
      %1087 = vmatpush1.msra.mxu0 0.0
      %1088 = vmatprep.subr.mxu0 0.0
      %1089 = vmatpush1.msra.mxu0 0.0
      %1090 = vmatprep.subr.mxu0 0.0
      %1091 = vmatpush1.msra.mxu0 0.0
      %1092 = vmatprep.subr.mxu0 0.0
      %1093 = vmatpush1.msra.mxu0 0.0
      %1094 = vmatprep.subr.mxu0 0.0
      %1095 = vmatpush1.msra.mxu0 0.0
      %1096 = vmatprep.subr.mxu0 0.0
      %1097 = vmatpush1.msra.mxu0 0.0
      %1098 = vmatprep.subr.mxu0 0.0
      %1099 = vmatpush1.msra.mxu0 0.0
      %1100 = vmatprep.subr.mxu0 0.0
      %1101 = vmatpush1.msra.mxu0 0.0
      %1102 = vmatprep.mubr.f32.mxu0 0.0
      %1103 = vmatmul.mubr.f32.gmra.mrb[0].mxu0 %v1036
      %v1104 = vpop.f32.mrb[0].mxu0
      %v1105 = vadd.f32 0.0, %v1104
      %v1106 = vpop.f32.mrb[0].mxu0
      %1107 = vdwg.mxu0
      %v1108 = vpack.c.bf16 %v1105, %v1105
      %v1110 = vsel %vm513, %v1108, 0
      %v1113 = vsel %vm852, %v507, 0
      %1115 = vmatprep.subr.bf16.mxu0 0
      %1116 = vmatpush1.bf16.msra.mxu0 %v1113
      %1117 = vmatprep.subr.bf16.mxu0 0
      %1118 = vmatpush1.bf16.msra.mxu0 0
      %1119 = vmatprep.subr.bf16.mxu0 0
      %1120 = vmatpush1.bf16.msra.mxu0 0
      %1121 = vmatprep.subr.bf16.mxu0 0
      %1122 = vmatpush1.bf16.msra.mxu0 0
      %1123 = vmatprep.subr.bf16.mxu0 0
      %1124 = vmatpush1.bf16.msra.mxu0 0
      %1125 = vmatprep.subr.bf16.mxu0 0
      %1126 = vmatpush1.bf16.msra.mxu0 0
      %1127 = vmatprep.subr.bf16.mxu0 0
      %1128 = vmatpush1.bf16.msra.mxu0 0
      %1129 = vmatprep.subr.bf16.mxu0 0
      %1130 = vmatpush1.bf16.msra.mxu0 0
      %1131 = vmatprep.subr.bf16.mxu0 0
      %1132 = vmatpush1.bf16.msra.mxu0 0
      %1133 = vmatprep.subr.bf16.mxu0 0
      %1134 = vmatpush1.bf16.msra.mxu0 0
      %1135 = vmatprep.subr.bf16.mxu0 0
      %1136 = vmatpush1.bf16.msra.mxu0 0
      %1137 = vmatprep.subr.bf16.mxu0 0
      %1138 = vmatpush1.bf16.msra.mxu0 0
      %1139 = vmatprep.subr.bf16.mxu0 0
      %1140 = vmatpush1.bf16.msra.mxu0 0
      %1141 = vmatprep.subr.bf16.mxu0 0
      %1142 = vmatpush1.bf16.msra.mxu0 0
      %1143 = vmatprep.subr.bf16.mxu0 0
      %1144 = vmatpush1.bf16.msra.mxu0 0
      %1145 = vmatprep.subr.bf16.mxu0 0
      %1146 = vmatpush1.bf16.msra.mxu0 0
      %1147 = vmatprep.mubr.bf16.mxu0 0
      %1148 = vmatmul.mubr.bf16.gmra.mrb[0].mxu0 %v1110
      %v1149 = vpop.f32.mrb[0].mxu0
      %v1150 = vadd.f32 0.0, %v1149
      %v1151 = vpop.f32.mrb[0].mxu0
      %v1152 = vpop.f32.mrb[0].mxu0
      %v1153 = vpop.f32.mrb[0].mxu0
      %1154 = vdwg.mxu0
      %v1155 = vadd.f32 %v937, %v1150
      %1156 = vrot.lane.b32.xlu0 %v501, 116
      %v1157 = vpop.permute.xlu0 %1156
      %1158 = vrot.lane.b32.xlu0 %v501, 84
      %v1159 = vpop.permute.xlu0 %1158
      %v1160 = vsel %vm513, %v1157, 0
      %v1162 = vsel %vm513, %v1159, 0
      %1164 = vmatprep.subr.mxu0 0.0
      %1165 = vmatpush1.xpose.msra.mxu0 %v1162
      %1166 = vmatprep.subr.mxu0 0.0
      %1167 = vmatpush1.xpose.msra.mxu0 0.0
      %1168 = vmatprep.subr.mxu0 0.0
      %1169 = vmatpush1.xpose.msra.mxu0 0.0
      %1170 = vmatprep.subr.mxu0 0.0
      %1171 = vmatpush1.xpose.msra.mxu0 0.0
      %1172 = vmatprep.subr.mxu0 0.0
      %1173 = vmatpush1.xpose.msra.mxu0 0.0
      %1174 = vmatprep.subr.mxu0 0.0
      %1175 = vmatpush1.xpose.msra.mxu0 0.0
      %1176 = vmatprep.subr.mxu0 0.0
      %1177 = vmatpush1.xpose.msra.mxu0 0.0
      %1178 = vmatprep.subr.mxu0 0.0
      %1179 = vmatpush1.xpose.msra.mxu0 0.0
      %1180 = vmatprep.subr.mxu0 0.0
      %1181 = vmatpush1.xpose.msra.mxu0 0.0
      %1182 = vmatprep.subr.mxu0 0.0
      %1183 = vmatpush1.xpose.msra.mxu0 0.0
      %1184 = vmatprep.subr.mxu0 0.0
      %1185 = vmatpush1.xpose.msra.mxu0 0.0
      %1186 = vmatprep.subr.mxu0 0.0
      %1187 = vmatpush1.xpose.msra.mxu0 0.0
      %1188 = vmatprep.subr.mxu0 0.0
      %1189 = vmatpush1.xpose.msra.mxu0 0.0
      %1190 = vmatprep.subr.mxu0 0.0
      %1191 = vmatpush1.xpose.msra.mxu0 0.0
      %1192 = vmatprep.subr.mxu0 0.0
      %1193 = vmatpush1.xpose.msra.mxu0 0.0
      %1194 = vmatprep.subr.mxu0 0.0
      %1195 = vmatpush1.xpose.msra.mxu0 0.0
      %1196 = vmatprep.subr.mxu0 0.0
      %1197 = vmatpush1.xpose.msra.mxu0 0.0
      %1198 = vmatprep.subr.mxu0 0.0
      %1199 = vmatpush1.xpose.msra.mxu0 0.0
      %1200 = vmatprep.subr.mxu0 0.0
      %1201 = vmatpush1.xpose.msra.mxu0 0.0
      %1202 = vmatprep.subr.mxu0 0.0
      %1203 = vmatpush1.xpose.msra.mxu0 0.0
      %1204 = vmatprep.subr.mxu0 0.0
      %1205 = vmatpush1.xpose.msra.mxu0 0.0
      %1206 = vmatprep.subr.mxu0 0.0
      %1207 = vmatpush1.xpose.msra.mxu0 0.0
      %1208 = vmatprep.subr.mxu0 0.0
      %1209 = vmatpush1.xpose.msra.mxu0 0.0
      %1210 = vmatprep.subr.mxu0 0.0
      %1211 = vmatpush1.xpose.msra.mxu0 0.0
      %1212 = vmatprep.subr.mxu0 0.0
      %1213 = vmatpush1.xpose.msra.mxu0 0.0
      %1214 = vmatprep.subr.mxu0 0.0
      %1215 = vmatpush1.xpose.msra.mxu0 0.0
      %1216 = vmatprep.subr.mxu0 0.0
      %1217 = vmatpush1.xpose.msra.mxu0 0.0
      %1218 = vmatprep.subr.mxu0 0.0
      %1219 = vmatpush1.xpose.msra.mxu0 0.0
      %1220 = vmatprep.subr.mxu0 0.0
      %1221 = vmatpush1.xpose.msra.mxu0 0.0
      %1222 = vmatprep.subr.mxu0 0.0
      %1223 = vmatpush1.xpose.msra.mxu0 0.0
      %1224 = vmatprep.subr.mxu0 0.0
      %1225 = vmatpush1.xpose.msra.mxu0 0.0
      %1226 = vmatprep.subr.mxu0 0.0
      %1227 = vmatpush1.xpose.msra.mxu0 0.0
      %1228 = vmatprep.mubr.f32.mxu0 0.0
      %1229 = vmatmul.mubr.f32.gmra.mrb[0].mxu0 %v1160
      %v1230 = vpop.f32.mrb[0].mxu0
      %v1231 = vadd.f32 0.0, %v1230
      %v1232 = vpop.f32.mrb[0].mxu0
      %1233 = vdwg.mxu0
      %v1234 = vmul.f32 %v1231, 0.5
      %v1235 = vsel %vm589, %v1234, -inf
      %1236 = vmax.xlane.f32.xlu0 %v1235
      %v1237 = vpop.xlane.xlu0 %1236
      %v1238 = vsub.f32 %v1234, %v1237
      %v1239 = vmul.f32 %v1238, 1.442695
      %v1240 = vpow.pop %v1239
      %v1241 = vsel %vm589, %v1240, 0.0
      %1242 = vadd.xlane.f32.xlu0 %v1241
      %v1243 = vpop.xlane.xlu0 %1242
      %v1244 = vrcp.pop %v1243
      %v1245 = vmul.f32 %v1240, %v1244
      %1246 = vrot.lane.b32.xlu0 %v501, 52
      %v1247 = vpop.permute.xlu0 %1246
      %v1250 = vsel %vm589, %v1245, 0
      %1252 = vmatprep.subr.mxu0 0.0
      %1253 = vmatpush1.msra.mxu0 %v1247
      %1254 = vmatprep.subr.mxu0 0.0
      %1255 = vmatpush1.msra.mxu0 0.0
      %1256 = vmatprep.subr.mxu0 0.0
      %1257 = vmatpush1.msra.mxu0 0.0
      %1258 = vmatprep.subr.mxu0 0.0
      %1259 = vmatpush1.msra.mxu0 0.0
      %1260 = vmatprep.subr.mxu0 0.0
      %1261 = vmatpush1.msra.mxu0 0.0
      %1262 = vmatprep.subr.mxu0 0.0
      %1263 = vmatpush1.msra.mxu0 0.0
      %1264 = vmatprep.subr.mxu0 0.0
      %1265 = vmatpush1.msra.mxu0 0.0
      %1266 = vmatprep.subr.mxu0 0.0
      %1267 = vmatpush1.msra.mxu0 0.0
      %1268 = vmatprep.subr.mxu0 0.0
      %1269 = vmatpush1.msra.mxu0 0.0
      %1270 = vmatprep.subr.mxu0 0.0
      %1271 = vmatpush1.msra.mxu0 0.0
      %1272 = vmatprep.subr.mxu0 0.0
      %1273 = vmatpush1.msra.mxu0 0.0
      %1274 = vmatprep.subr.mxu0 0.0
      %1275 = vmatpush1.msra.mxu0 0.0
      %1276 = vmatprep.subr.mxu0 0.0
      %1277 = vmatpush1.msra.mxu0 0.0
      %1278 = vmatprep.subr.mxu0 0.0
      %1279 = vmatpush1.msra.mxu0 0.0
      %1280 = vmatprep.subr.mxu0 0.0
      %1281 = vmatpush1.msra.mxu0 0.0
      %1282 = vmatprep.subr.mxu0 0.0
      %1283 = vmatpush1.msra.mxu0 0.0
      %1284 = vmatprep.subr.mxu0 0.0
      %1285 = vmatpush1.msra.mxu0 0.0
      %1286 = vmatprep.subr.mxu0 0.0
      %1287 = vmatpush1.msra.mxu0 0.0
      %1288 = vmatprep.subr.mxu0 0.0
      %1289 = vmatpush1.msra.mxu0 0.0
      %1290 = vmatprep.subr.mxu0 0.0
      %1291 = vmatpush1.msra.mxu0 0.0
      %1292 = vmatprep.subr.mxu0 0.0
      %1293 = vmatpush1.msra.mxu0 0.0
      %1294 = vmatprep.subr.mxu0 0.0
      %1295 = vmatpush1.msra.mxu0 0.0
      %1296 = vmatprep.subr.mxu0 0.0
      %1297 = vmatpush1.msra.mxu0 0.0
      %1298 = vmatprep.subr.mxu0 0.0
      %1299 = vmatpush1.msra.mxu0 0.0
      %1300 = vmatprep.subr.mxu0 0.0
      %1301 = vmatpush1.msra.mxu0 0.0
      %1302 = vmatprep.subr.mxu0 0.0
      %1303 = vmatpush1.msra.mxu0 0.0
      %1304 = vmatprep.subr.mxu0 0.0
      %1305 = vmatpush1.msra.mxu0 0.0
      %1306 = vmatprep.subr.mxu0 0.0
      %1307 = vmatpush1.msra.mxu0 0.0
      %1308 = vmatprep.subr.mxu0 0.0
      %1309 = vmatpush1.msra.mxu0 0.0
      %1310 = vmatprep.subr.mxu0 0.0
      %1311 = vmatpush1.msra.mxu0 0.0
      %1312 = vmatprep.subr.mxu0 0.0
      %1313 = vmatpush1.msra.mxu0 0.0
      %1314 = vmatprep.subr.mxu0 0.0
      %1315 = vmatpush1.msra.mxu0 0.0
      %1316 = vmatprep.mubr.f32.mxu0 0.0
      %1317 = vmatmul.mubr.f32.gmra.mrb[0].mxu0 %v1250
      %v1318 = vpop.f32.mrb[0].mxu0
      %v1319 = vadd.f32 0.0, %v1318
      %v1320 = vpop.f32.mrb[0].mxu0
      %1321 = vdwg.mxu0
      %v1322 = vpack.c.bf16 %v1319, %v1319
      %v1324 = vunpack.c.l.b16 %v507
      %v1325 = vpack.c.b16 %v1324, %v1324
      %v1326 = vrot.slane %v1325, 2
      %v1328 = vsel %vm513, %v1322, 0
      %v1331 = vsel %vm852, %v1326, 0
      %1333 = vmatprep.subr.bf16.mxu0 0
      %1334 = vmatpush1.bf16.msra.mxu0 %v1331
      %1335 = vmatprep.subr.bf16.mxu0 0
      %1336 = vmatpush1.bf16.msra.mxu0 0
      %1337 = vmatprep.subr.bf16.mxu0 0
      %1338 = vmatpush1.bf16.msra.mxu0 0
      %1339 = vmatprep.subr.bf16.mxu0 0
      %1340 = vmatpush1.bf16.msra.mxu0 0
      %1341 = vmatprep.subr.bf16.mxu0 0
      %1342 = vmatpush1.bf16.msra.mxu0 0
      %1343 = vmatprep.subr.bf16.mxu0 0
      %1344 = vmatpush1.bf16.msra.mxu0 0
      %1345 = vmatprep.subr.bf16.mxu0 0
      %1346 = vmatpush1.bf16.msra.mxu0 0
      %1347 = vmatprep.subr.bf16.mxu0 0
      %1348 = vmatpush1.bf16.msra.mxu0 0
      %1349 = vmatprep.subr.bf16.mxu0 0
      %1350 = vmatpush1.bf16.msra.mxu0 0
      %1351 = vmatprep.subr.bf16.mxu0 0
      %1352 = vmatpush1.bf16.msra.mxu0 0
      %1353 = vmatprep.subr.bf16.mxu0 0
      %1354 = vmatpush1.bf16.msra.mxu0 0
      %1355 = vmatprep.subr.bf16.mxu0 0
      %1356 = vmatpush1.bf16.msra.mxu0 0
      %1357 = vmatprep.subr.bf16.mxu0 0
      %1358 = vmatpush1.bf16.msra.mxu0 0
      %1359 = vmatprep.subr.bf16.mxu0 0
      %1360 = vmatpush1.bf16.msra.mxu0 0
      %1361 = vmatprep.subr.bf16.mxu0 0
      %1362 = vmatpush1.bf16.msra.mxu0 0
      %1363 = vmatprep.subr.bf16.mxu0 0
      %1364 = vmatpush1.bf16.msra.mxu0 0
      %1365 = vmatprep.mubr.bf16.mxu0 0
      %1366 = vmatmul.mubr.bf16.gmra.mrb[0].mxu0 %v1328
      %v1367 = vpop.f32.mrb[0].mxu0
      %v1368 = vadd.f32 0.0, %v1367
      %v1369 = vpop.f32.mrb[0].mxu0
      %v1370 = vpop.f32.mrb[0].mxu0
      %v1371 = vpop.f32.mrb[0].mxu0
      %1372 = vdwg.mxu0
      %v1373 = vadd.f32 %v1155, %v1368
      %1374 = vrot.lane.b32.xlu0 %v501, 112
      %v1375 = vpop.permute.xlu0 %1374
      %1376 = vrot.lane.b32.xlu0 %v501, 80
      %v1377 = vpop.permute.xlu0 %1376
      %v1378 = vsel %vm513, %v1375, 0
      %v1380 = vsel %vm513, %v1377, 0
      %1382 = vmatprep.subr.mxu0 0.0
      %1383 = vmatpush1.xpose.msra.mxu0 %v1380
      %1384 = vmatprep.subr.mxu0 0.0
      %1385 = vmatpush1.xpose.msra.mxu0 0.0
      %1386 = vmatprep.subr.mxu0 0.0
      %1387 = vmatpush1.xpose.msra.mxu0 0.0
      %1388 = vmatprep.subr.mxu0 0.0
      %1389 = vmatpush1.xpose.msra.mxu0 0.0
      %1390 = vmatprep.subr.mxu0 0.0
      %1391 = vmatpush1.xpose.msra.mxu0 0.0
      %1392 = vmatprep.subr.mxu0 0.0
      %1393 = vmatpush1.xpose.msra.mxu0 0.0
      %1394 = vmatprep.subr.mxu0 0.0
      %1395 = vmatpush1.xpose.msra.mxu0 0.0
      %1396 = vmatprep.subr.mxu0 0.0
      %1397 = vmatpush1.xpose.msra.mxu0 0.0
      %1398 = vmatprep.subr.mxu0 0.0
      %1399 = vmatpush1.xpose.msra.mxu0 0.0
      %1400 = vmatprep.subr.mxu0 0.0
      %1401 = vmatpush1.xpose.msra.mxu0 0.0
      %1402 = vmatprep.subr.mxu0 0.0
      %1403 = vmatpush1.xpose.msra.mxu0 0.0
      %1404 = vmatprep.subr.mxu0 0.0
      %1405 = vmatpush1.xpose.msra.mxu0 0.0
      %1406 = vmatprep.subr.mxu0 0.0
      %1407 = vmatpush1.xpose.msra.mxu0 0.0
      %1408 = vmatprep.subr.mxu0 0.0
      %1409 = vmatpush1.xpose.msra.mxu0 0.0
      %1410 = vmatprep.subr.mxu0 0.0
      %1411 = vmatpush1.xpose.msra.mxu0 0.0
      %1412 = vmatprep.subr.mxu0 0.0
      %1413 = vmatpush1.xpose.msra.mxu0 0.0
      %1414 = vmatprep.subr.mxu0 0.0
      %1415 = vmatpush1.xpose.msra.mxu0 0.0
      %1416 = vmatprep.subr.mxu0 0.0
      %1417 = vmatpush1.xpose.msra.mxu0 0.0
      %1418 = vmatprep.subr.mxu0 0.0
      %1419 = vmatpush1.xpose.msra.mxu0 0.0
      %1420 = vmatprep.subr.mxu0 0.0
      %1421 = vmatpush1.xpose.msra.mxu0 0.0
      %1422 = vmatprep.subr.mxu0 0.0
      %1423 = vmatpush1.xpose.msra.mxu0 0.0
      %1424 = vmatprep.subr.mxu0 0.0
      %1425 = vmatpush1.xpose.msra.mxu0 0.0
      %1426 = vmatprep.subr.mxu0 0.0
      %1427 = vmatpush1.xpose.msra.mxu0 0.0
      %1428 = vmatprep.subr.mxu0 0.0
      %1429 = vmatpush1.xpose.msra.mxu0 0.0
      %1430 = vmatprep.subr.mxu0 0.0
      %1431 = vmatpush1.xpose.msra.mxu0 0.0
      %1432 = vmatprep.subr.mxu0 0.0
      %1433 = vmatpush1.xpose.msra.mxu0 0.0
      %1434 = vmatprep.subr.mxu0 0.0
      %1435 = vmatpush1.xpose.msra.mxu0 0.0
      %1436 = vmatprep.subr.mxu0 0.0
      %1437 = vmatpush1.xpose.msra.mxu0 0.0
      %1438 = vmatprep.subr.mxu0 0.0
      %1439 = vmatpush1.xpose.msra.mxu0 0.0
      %1440 = vmatprep.subr.mxu0 0.0
      %1441 = vmatpush1.xpose.msra.mxu0 0.0
      %1442 = vmatprep.subr.mxu0 0.0
      %1443 = vmatpush1.xpose.msra.mxu0 0.0
      %1444 = vmatprep.subr.mxu0 0.0
      %1445 = vmatpush1.xpose.msra.mxu0 0.0
      %1446 = vmatprep.mubr.f32.mxu0 0.0
      %1447 = vmatmul.mubr.f32.gmra.mrb[0].mxu0 %v1378
      %v1448 = vpop.f32.mrb[0].mxu0
      %v1449 = vadd.f32 0.0, %v1448
      %v1450 = vpop.f32.mrb[0].mxu0
      %1451 = vdwg.mxu0
      %v1452 = vmul.f32 %v1449, 0.5
      %v1453 = vsel %vm589, %v1452, -inf
      %1454 = vmax.xlane.f32.xlu0 %v1453
      %v1455 = vpop.xlane.xlu0 %1454
      %v1456 = vsub.f32 %v1452, %v1455
      %v1457 = vmul.f32 %v1456, 1.442695
      %v1458 = vpow.pop %v1457
      %v1459 = vsel %vm589, %v1458, 0.0
      %1460 = vadd.xlane.f32.xlu0 %v1459
      %v1461 = vpop.xlane.xlu0 %1460
      %v1462 = vrcp.pop %v1461
      %v1463 = vmul.f32 %v1458, %v1462
      %1464 = vrot.lane.b32.xlu0 %v501, 48
      %v1465 = vpop.permute.xlu0 %1464
      %v1468 = vsel %vm589, %v1463, 0
      %1470 = vmatprep.subr.mxu0 0.0
      %1471 = vmatpush1.msra.mxu0 %v1465
      %1472 = vmatprep.subr.mxu0 0.0
      %1473 = vmatpush1.msra.mxu0 0.0
      %1474 = vmatprep.subr.mxu0 0.0
      %1475 = vmatpush1.msra.mxu0 0.0
      %1476 = vmatprep.subr.mxu0 0.0
      %1477 = vmatpush1.msra.mxu0 0.0
      %1478 = vmatprep.subr.mxu0 0.0
      %1479 = vmatpush1.msra.mxu0 0.0
      %1480 = vmatprep.subr.mxu0 0.0
      %1481 = vmatpush1.msra.mxu0 0.0
      %1482 = vmatprep.subr.mxu0 0.0
      %1483 = vmatpush1.msra.mxu0 0.0
      %1484 = vmatprep.subr.mxu0 0.0
      %1485 = vmatpush1.msra.mxu0 0.0
      %1486 = vmatprep.subr.mxu0 0.0
      %1487 = vmatpush1.msra.mxu0 0.0
      %1488 = vmatprep.subr.mxu0 0.0
      %1489 = vmatpush1.msra.mxu0 0.0
      %1490 = vmatprep.subr.mxu0 0.0
      %1491 = vmatpush1.msra.mxu0 0.0
      %1492 = vmatprep.subr.mxu0 0.0
      %1493 = vmatpush1.msra.mxu0 0.0
      %1494 = vmatprep.subr.mxu0 0.0
      %1495 = vmatpush1.msra.mxu0 0.0
      %1496 = vmatprep.subr.mxu0 0.0
      %1497 = vmatpush1.msra.mxu0 0.0
      %1498 = vmatprep.subr.mxu0 0.0
      %1499 = vmatpush1.msra.mxu0 0.0
      %1500 = vmatprep.subr.mxu0 0.0
      %1501 = vmatpush1.msra.mxu0 0.0
      %1502 = vmatprep.subr.mxu0 0.0
      %1503 = vmatpush1.msra.mxu0 0.0
      %1504 = vmatprep.subr.mxu0 0.0
      %1505 = vmatpush1.msra.mxu0 0.0
      %1506 = vmatprep.subr.mxu0 0.0
      %1507 = vmatpush1.msra.mxu0 0.0
      %1508 = vmatprep.subr.mxu0 0.0
      %1509 = vmatpush1.msra.mxu0 0.0
      %1510 = vmatprep.subr.mxu0 0.0
      %1511 = vmatpush1.msra.mxu0 0.0
      %1512 = vmatprep.subr.mxu0 0.0
      %1513 = vmatpush1.msra.mxu0 0.0
      %1514 = vmatprep.subr.mxu0 0.0
      %1515 = vmatpush1.msra.mxu0 0.0
      %1516 = vmatprep.subr.mxu0 0.0
      %1517 = vmatpush1.msra.mxu0 0.0
      %1518 = vmatprep.subr.mxu0 0.0
      %1519 = vmatpush1.msra.mxu0 0.0
      %1520 = vmatprep.subr.mxu0 0.0
      %1521 = vmatpush1.msra.mxu0 0.0
      %1522 = vmatprep.subr.mxu0 0.0
      %1523 = vmatpush1.msra.mxu0 0.0
      %1524 = vmatprep.subr.mxu0 0.0
      %1525 = vmatpush1.msra.mxu0 0.0
      %1526 = vmatprep.subr.mxu0 0.0
      %1527 = vmatpush1.msra.mxu0 0.0
      %1528 = vmatprep.subr.mxu0 0.0
      %1529 = vmatpush1.msra.mxu0 0.0
      %1530 = vmatprep.subr.mxu0 0.0
      %1531 = vmatpush1.msra.mxu0 0.0
      %1532 = vmatprep.subr.mxu0 0.0
      %1533 = vmatpush1.msra.mxu0 0.0
      %1534 = vmatprep.mubr.f32.mxu0 0.0
      %1535 = vmatmul.mubr.f32.gmra.mrb[0].mxu0 %v1468
      %v1536 = vpop.f32.mrb[0].mxu0
      %v1537 = vadd.f32 0.0, %v1536
      %v1538 = vpop.f32.mrb[0].mxu0
      %1539 = vdwg.mxu0
      %v1540 = vpack.c.bf16 %v1537, %v1537
      %v1542 = vsel %vm513, %v1540, 0
      %v1545 = vsel %vm852, %v508, 0
      %1547 = vmatprep.subr.bf16.mxu0 0
      %1548 = vmatpush1.bf16.msra.mxu0 %v1545
      %1549 = vmatprep.subr.bf16.mxu0 0
      %1550 = vmatpush1.bf16.msra.mxu0 0
      %1551 = vmatprep.subr.bf16.mxu0 0
      %1552 = vmatpush1.bf16.msra.mxu0 0
      %1553 = vmatprep.subr.bf16.mxu0 0
      %1554 = vmatpush1.bf16.msra.mxu0 0
      %1555 = vmatprep.subr.bf16.mxu0 0
      %1556 = vmatpush1.bf16.msra.mxu0 0
      %1557 = vmatprep.subr.bf16.mxu0 0
      %1558 = vmatpush1.bf16.msra.mxu0 0
      %1559 = vmatprep.subr.bf16.mxu0 0
      %1560 = vmatpush1.bf16.msra.mxu0 0
      %1561 = vmatprep.subr.bf16.mxu0 0
      %1562 = vmatpush1.bf16.msra.mxu0 0
      %1563 = vmatprep.subr.bf16.mxu0 0
      %1564 = vmatpush1.bf16.msra.mxu0 0
      %1565 = vmatprep.subr.bf16.mxu0 0
      %1566 = vmatpush1.bf16.msra.mxu0 0
      %1567 = vmatprep.subr.bf16.mxu0 0
      %1568 = vmatpush1.bf16.msra.mxu0 0
      %1569 = vmatprep.subr.bf16.mxu0 0
      %1570 = vmatpush1.bf16.msra.mxu0 0
      %1571 = vmatprep.subr.bf16.mxu0 0
      %1572 = vmatpush1.bf16.msra.mxu0 0
      %1573 = vmatprep.subr.bf16.mxu0 0
      %1574 = vmatpush1.bf16.msra.mxu0 0
      %1575 = vmatprep.subr.bf16.mxu0 0
      %1576 = vmatpush1.bf16.msra.mxu0 0
      %1577 = vmatprep.subr.bf16.mxu0 0
      %1578 = vmatpush1.bf16.msra.mxu0 0
      %1579 = vmatprep.mubr.bf16.mxu0 0
      %1580 = vmatmul.mubr.bf16.gmra.mrb[0].mxu0 %v1542
      %v1581 = vpop.f32.mrb[0].mxu0
      %v1582 = vadd.f32 0.0, %v1581
      %v1583 = vpop.f32.mrb[0].mxu0
      %v1584 = vpop.f32.mrb[0].mxu0
      %v1585 = vpop.f32.mrb[0].mxu0
      %1586 = vdwg.mxu0
      %v1587 = vadd.f32 %v1373, %v1582
      %1588 = vrot.lane.b32.xlu0 %v501, 108
      %v1589 = vpop.permute.xlu0 %1588
      %1590 = vrot.lane.b32.xlu0 %v501, 76
      %v1591 = vpop.permute.xlu0 %1590
      %v1592 = vsel %vm513, %v1589, 0
      %v1594 = vsel %vm513, %v1591, 0
      %1596 = vmatprep.subr.mxu0 0.0
      %1597 = vmatpush1.xpose.msra.mxu0 %v1594
      %1598 = vmatprep.subr.mxu0 0.0
      %1599 = vmatpush1.xpose.msra.mxu0 0.0
      %1600 = vmatprep.subr.mxu0 0.0
      %1601 = vmatpush1.xpose.msra.mxu0 0.0
      %1602 = vmatprep.subr.mxu0 0.0
      %1603 = vmatpush1.xpose.msra.mxu0 0.0
      %1604 = vmatprep.subr.mxu0 0.0
      %1605 = vmatpush1.xpose.msra.mxu0 0.0
      %1606 = vmatprep.subr.mxu0 0.0
      %1607 = vmatpush1.xpose.msra.mxu0 0.0
      %1608 = vmatprep.subr.mxu0 0.0
      %1609 = vmatpush1.xpose.msra.mxu0 0.0
      %1610 = vmatprep.subr.mxu0 0.0
      %1611 = vmatpush1.xpose.msra.mxu0 0.0
      %1612 = vmatprep.subr.mxu0 0.0
      %1613 = vmatpush1.xpose.msra.mxu0 0.0
      %1614 = vmatprep.subr.mxu0 0.0
      %1615 = vmatpush1.xpose.msra.mxu0 0.0
      %1616 = vmatprep.subr.mxu0 0.0
      %1617 = vmatpush1.xpose.msra.mxu0 0.0
      %1618 = vmatprep.subr.mxu0 0.0
      %1619 = vmatpush1.xpose.msra.mxu0 0.0
      %1620 = vmatprep.subr.mxu0 0.0
      %1621 = vmatpush1.xpose.msra.mxu0 0.0
      %1622 = vmatprep.subr.mxu0 0.0
      %1623 = vmatpush1.xpose.msra.mxu0 0.0
      %1624 = vmatprep.subr.mxu0 0.0
      %1625 = vmatpush1.xpose.msra.mxu0 0.0
      %1626 = vmatprep.subr.mxu0 0.0
      %1627 = vmatpush1.xpose.msra.mxu0 0.0
      %1628 = vmatprep.subr.mxu0 0.0
      %1629 = vmatpush1.xpose.msra.mxu0 0.0
      %1630 = vmatprep.subr.mxu0 0.0
      %1631 = vmatpush1.xpose.msra.mxu0 0.0
      %1632 = vmatprep.subr.mxu0 0.0
      %1633 = vmatpush1.xpose.msra.mxu0 0.0
      %1634 = vmatprep.subr.mxu0 0.0
      %1635 = vmatpush1.xpose.msra.mxu0 0.0
      %1636 = vmatprep.subr.mxu0 0.0
      %1637 = vmatpush1.xpose.msra.mxu0 0.0
      %1638 = vmatprep.subr.mxu0 0.0
      %1639 = vmatpush1.xpose.msra.mxu0 0.0
      %1640 = vmatprep.subr.mxu0 0.0
      %1641 = vmatpush1.xpose.msra.mxu0 0.0
      %1642 = vmatprep.subr.mxu0 0.0
      %1643 = vmatpush1.xpose.msra.mxu0 0.0
      %1644 = vmatprep.subr.mxu0 0.0
      %1645 = vmatpush1.xpose.msra.mxu0 0.0
      %1646 = vmatprep.subr.mxu0 0.0
      %1647 = vmatpush1.xpose.msra.mxu0 0.0
      %1648 = vmatprep.subr.mxu0 0.0
      %1649 = vmatpush1.xpose.msra.mxu0 0.0
      %1650 = vmatprep.subr.mxu0 0.0
      %1651 = vmatpush1.xpose.msra.mxu0 0.0
      %1652 = vmatprep.subr.mxu0 0.0
      %1653 = vmatpush1.xpose.msra.mxu0 0.0
      %1654 = vmatprep.subr.mxu0 0.0
      %1655 = vmatpush1.xpose.msra.mxu0 0.0
      %1656 = vmatprep.subr.mxu0 0.0
      %1657 = vmatpush1.xpose.msra.mxu0 0.0
      %1658 = vmatprep.subr.mxu0 0.0
      %1659 = vmatpush1.xpose.msra.mxu0 0.0
      %1660 = vmatprep.mubr.f32.mxu0 0.0
      %1661 = vmatmul.mubr.f32.gmra.mrb[0].mxu0 %v1592
      %v1662 = vpop.f32.mrb[0].mxu0
      %v1663 = vadd.f32 0.0, %v1662
      %v1664 = vpop.f32.mrb[0].mxu0
      %1665 = vdwg.mxu0
      %v1666 = vmul.f32 %v1663, 0.5
      %v1667 = vsel %vm589, %v1666, -inf
      %1668 = vmax.xlane.f32.xlu0 %v1667
      %v1669 = vpop.xlane.xlu0 %1668
      %v1670 = vsub.f32 %v1666, %v1669
      %v1671 = vmul.f32 %v1670, 1.442695
      %v1672 = vpow.pop %v1671
      %v1673 = vsel %vm589, %v1672, 0.0
      %1674 = vadd.xlane.f32.xlu0 %v1673
      %v1675 = vpop.xlane.xlu0 %1674
      %v1676 = vrcp.pop %v1675
      %v1677 = vmul.f32 %v1672, %v1676
      %1678 = vrot.lane.b32.xlu0 %v501, 44
      %v1679 = vpop.permute.xlu0 %1678
      %v1682 = vsel %vm589, %v1677, 0
      %1684 = vmatprep.subr.mxu0 0.0
      %1685 = vmatpush1.msra.mxu0 %v1679
      %1686 = vmatprep.subr.mxu0 0.0
      %1687 = vmatpush1.msra.mxu0 0.0
      %1688 = vmatprep.subr.mxu0 0.0
      %1689 = vmatpush1.msra.mxu0 0.0
      %1690 = vmatprep.subr.mxu0 0.0
      %1691 = vmatpush1.msra.mxu0 0.0
      %1692 = vmatprep.subr.mxu0 0.0
      %1693 = vmatpush1.msra.mxu0 0.0
      %1694 = vmatprep.subr.mxu0 0.0
      %1695 = vmatpush1.msra.mxu0 0.0
      %1696 = vmatprep.subr.mxu0 0.0
      %1697 = vmatpush1.msra.mxu0 0.0
      %1698 = vmatprep.subr.mxu0 0.0
      %1699 = vmatpush1.msra.mxu0 0.0
      %1700 = vmatprep.subr.mxu0 0.0
      %1701 = vmatpush1.msra.mxu0 0.0
      %1702 = vmatprep.subr.mxu0 0.0
      %1703 = vmatpush1.msra.mxu0 0.0
      %1704 = vmatprep.subr.mxu0 0.0
      %1705 = vmatpush1.msra.mxu0 0.0
      %1706 = vmatprep.subr.mxu0 0.0
      %1707 = vmatpush1.msra.mxu0 0.0
      %1708 = vmatprep.subr.mxu0 0.0
      %1709 = vmatpush1.msra.mxu0 0.0
      %1710 = vmatprep.subr.mxu0 0.0
      %1711 = vmatpush1.msra.mxu0 0.0
      %1712 = vmatprep.subr.mxu0 0.0
      %1713 = vmatpush1.msra.mxu0 0.0
      %1714 = vmatprep.subr.mxu0 0.0
      %1715 = vmatpush1.msra.mxu0 0.0
      %1716 = vmatprep.subr.mxu0 0.0
      %1717 = vmatpush1.msra.mxu0 0.0
      %1718 = vmatprep.subr.mxu0 0.0
      %1719 = vmatpush1.msra.mxu0 0.0
      %1720 = vmatprep.subr.mxu0 0.0
      %1721 = vmatpush1.msra.mxu0 0.0
      %1722 = vmatprep.subr.mxu0 0.0
      %1723 = vmatpush1.msra.mxu0 0.0
      %1724 = vmatprep.subr.mxu0 0.0
      %1725 = vmatpush1.msra.mxu0 0.0
      %1726 = vmatprep.subr.mxu0 0.0
      %1727 = vmatpush1.msra.mxu0 0.0
      %1728 = vmatprep.subr.mxu0 0.0
      %1729 = vmatpush1.msra.mxu0 0.0
      %1730 = vmatprep.subr.mxu0 0.0
      %1731 = vmatpush1.msra.mxu0 0.0
      %1732 = vmatprep.subr.mxu0 0.0
      %1733 = vmatpush1.msra.mxu0 0.0
      %1734 = vmatprep.subr.mxu0 0.0
      %1735 = vmatpush1.msra.mxu0 0.0
      %1736 = vmatprep.subr.mxu0 0.0
      %1737 = vmatpush1.msra.mxu0 0.0
      %1738 = vmatprep.subr.mxu0 0.0
      %1739 = vmatpush1.msra.mxu0 0.0
      %1740 = vmatprep.subr.mxu0 0.0
      %1741 = vmatpush1.msra.mxu0 0.0
      %1742 = vmatprep.subr.mxu0 0.0
      %1743 = vmatpush1.msra.mxu0 0.0
      %1744 = vmatprep.subr.mxu0 0.0
      %1745 = vmatpush1.msra.mxu0 0.0
      %1746 = vmatprep.subr.mxu0 0.0
      %1747 = vmatpush1.msra.mxu0 0.0
      %1748 = vmatprep.mubr.f32.mxu0 0.0
      %1749 = vmatmul.mubr.f32.gmra.mrb[0].mxu0 %v1682
      %v1750 = vpop.f32.mrb[0].mxu0
      %v1751 = vadd.f32 0.0, %v1750
      %v1752 = vpop.f32.mrb[0].mxu0
      %1753 = vdwg.mxu0
      %v1754 = vpack.c.bf16 %v1751, %v1751
      %v1756 = vunpack.c.l.b16 %v508
      %v1757 = vpack.c.b16 %v1756, %v1756
      %v1758 = vrot.slane %v1757, 2
      %v1760 = vsel %vm513, %v1754, 0
      %v1763 = vsel %vm852, %v1758, 0
      %1765 = vmatprep.subr.bf16.mxu0 0
      %1766 = vmatpush1.bf16.msra.mxu0 %v1763
      %1767 = vmatprep.subr.bf16.mxu0 0
      %1768 = vmatpush1.bf16.msra.mxu0 0
      %1769 = vmatprep.subr.bf16.mxu0 0
      %1770 = vmatpush1.bf16.msra.mxu0 0
      %1771 = vmatprep.subr.bf16.mxu0 0
      %1772 = vmatpush1.bf16.msra.mxu0 0
      %1773 = vmatprep.subr.bf16.mxu0 0
      %1774 = vmatpush1.bf16.msra.mxu0 0
      %1775 = vmatprep.subr.bf16.mxu0 0
      %1776 = vmatpush1.bf16.msra.mxu0 0
      %1777 = vmatprep.subr.bf16.mxu0 0
      %1778 = vmatpush1.bf16.msra.mxu0 0
      %1779 = vmatprep.subr.bf16.mxu0 0
      %1780 = vmatpush1.bf16.msra.mxu0 0
      %1781 = vmatprep.subr.bf16.mxu0 0
      %1782 = vmatpush1.bf16.msra.mxu0 0
      %1783 = vmatprep.subr.bf16.mxu0 0
      %1784 = vmatpush1.bf16.msra.mxu0 0
      %1785 = vmatprep.subr.bf16.mxu0 0
      %1786 = vmatpush1.bf16.msra.mxu0 0
      %1787 = vmatprep.subr.bf16.mxu0 0
      %1788 = vmatpush1.bf16.msra.mxu0 0
      %1789 = vmatprep.subr.bf16.mxu0 0
      %1790 = vmatpush1.bf16.msra.mxu0 0
      %1791 = vmatprep.subr.bf16.mxu0 0
      %1792 = vmatpush1.bf16.msra.mxu0 0
      %1793 = vmatprep.subr.bf16.mxu0 0
      %1794 = vmatpush1.bf16.msra.mxu0 0
      %1795 = vmatprep.subr.bf16.mxu0 0
      %1796 = vmatpush1.bf16.msra.mxu0 0
      %1797 = vmatprep.mubr.bf16.mxu0 0
      %1798 = vmatmul.mubr.bf16.gmra.mrb[0].mxu0 %v1760
      %v1799 = vpop.f32.mrb[0].mxu0
      %v1800 = vadd.f32 0.0, %v1799
      %v1801 = vpop.f32.mrb[0].mxu0
      %v1802 = vpop.f32.mrb[0].mxu0
      %v1803 = vpop.f32.mrb[0].mxu0
      %1804 = vdwg.mxu0
      %v1805 = vadd.f32 %v1587, %v1800
      %1806 = vrot.lane.b32.xlu0 %v501, 104
      %v1807 = vpop.permute.xlu0 %1806
      %1808 = vrot.lane.b32.xlu0 %v501, 72
      %v1809 = vpop.permute.xlu0 %1808
      %v1810 = vsel %vm513, %v1807, 0
      %v1812 = vsel %vm513, %v1809, 0
      %1814 = vmatprep.subr.mxu0 0.0
      %1815 = vmatpush1.xpose.msra.mxu0 %v1812
      %1816 = vmatprep.subr.mxu0 0.0
      %1817 = vmatpush1.xpose.msra.mxu0 0.0
      %1818 = vmatprep.subr.mxu0 0.0
      %1819 = vmatpush1.xpose.msra.mxu0 0.0
      %1820 = vmatprep.subr.mxu0 0.0
      %1821 = vmatpush1.xpose.msra.mxu0 0.0
      %1822 = vmatprep.subr.mxu0 0.0
      %1823 = vmatpush1.xpose.msra.mxu0 0.0
      %1824 = vmatprep.subr.mxu0 0.0
      %1825 = vmatpush1.xpose.msra.mxu0 0.0
      %1826 = vmatprep.subr.mxu0 0.0
      %1827 = vmatpush1.xpose.msra.mxu0 0.0
      %1828 = vmatprep.subr.mxu0 0.0
      %1829 = vmatpush1.xpose.msra.mxu0 0.0
      %1830 = vmatprep.subr.mxu0 0.0
      %1831 = vmatpush1.xpose.msra.mxu0 0.0
      %1832 = vmatprep.subr.mxu0 0.0
      %1833 = vmatpush1.xpose.msra.mxu0 0.0
      %1834 = vmatprep.subr.mxu0 0.0
      %1835 = vmatpush1.xpose.msra.mxu0 0.0
      %1836 = vmatprep.subr.mxu0 0.0
      %1837 = vmatpush1.xpose.msra.mxu0 0.0
      %1838 = vmatprep.subr.mxu0 0.0
      %1839 = vmatpush1.xpose.msra.mxu0 0.0
      %1840 = vmatprep.subr.mxu0 0.0
      %1841 = vmatpush1.xpose.msra.mxu0 0.0
      %1842 = vmatprep.subr.mxu0 0.0
      %1843 = vmatpush1.xpose.msra.mxu0 0.0
      %1844 = vmatprep.subr.mxu0 0.0
      %1845 = vmatpush1.xpose.msra.mxu0 0.0
      %1846 = vmatprep.subr.mxu0 0.0
      %1847 = vmatpush1.xpose.msra.mxu0 0.0
      %1848 = vmatprep.subr.mxu0 0.0
      %1849 = vmatpush1.xpose.msra.mxu0 0.0
      %1850 = vmatprep.subr.mxu0 0.0
      %1851 = vmatpush1.xpose.msra.mxu0 0.0
      %1852 = vmatprep.subr.mxu0 0.0
      %1853 = vmatpush1.xpose.msra.mxu0 0.0
      %1854 = vmatprep.subr.mxu0 0.0
      %1855 = vmatpush1.xpose.msra.mxu0 0.0
      %1856 = vmatprep.subr.mxu0 0.0
      %1857 = vmatpush1.xpose.msra.mxu0 0.0
      %1858 = vmatprep.subr.mxu0 0.0
      %1859 = vmatpush1.xpose.msra.mxu0 0.0
      %1860 = vmatprep.subr.mxu0 0.0
      %1861 = vmatpush1.xpose.msra.mxu0 0.0
      %1862 = vmatprep.subr.mxu0 0.0
      %1863 = vmatpush1.xpose.msra.mxu0 0.0
      %1864 = vmatprep.subr.mxu0 0.0
      %1865 = vmatpush1.xpose.msra.mxu0 0.0
      %1866 = vmatprep.subr.mxu0 0.0
      %1867 = vmatpush1.xpose.msra.mxu0 0.0
      %1868 = vmatprep.subr.mxu0 0.0
      %1869 = vmatpush1.xpose.msra.mxu0 0.0
      %1870 = vmatprep.subr.mxu0 0.0
      %1871 = vmatpush1.xpose.msra.mxu0 0.0
      %1872 = vmatprep.subr.mxu0 0.0
      %1873 = vmatpush1.xpose.msra.mxu0 0.0
      %1874 = vmatprep.subr.mxu0 0.0
      %1875 = vmatpush1.xpose.msra.mxu0 0.0
      %1876 = vmatprep.subr.mxu0 0.0
      %1877 = vmatpush1.xpose.msra.mxu0 0.0
      %1878 = vmatprep.mubr.f32.mxu0 0.0
      %1879 = vmatmul.mubr.f32.gmra.mrb[0].mxu0 %v1810
      %v1880 = vpop.f32.mrb[0].mxu0
      %v1881 = vadd.f32 0.0, %v1880
      %v1882 = vpop.f32.mrb[0].mxu0
      %1883 = vdwg.mxu0
      %v1884 = vmul.f32 %v1881, 0.5
      %v1885 = vsel %vm589, %v1884, -inf
      %1886 = vmax.xlane.f32.xlu0 %v1885
      %v1887 = vpop.xlane.xlu0 %1886
      %v1888 = vsub.f32 %v1884, %v1887
      %v1889 = vmul.f32 %v1888, 1.442695
      %v1890 = vpow.pop %v1889
      %v1891 = vsel %vm589, %v1890, 0.0
      %1892 = vadd.xlane.f32.xlu0 %v1891
      %v1893 = vpop.xlane.xlu0 %1892
      %v1894 = vrcp.pop %v1893
      %v1895 = vmul.f32 %v1890, %v1894
      %1896 = vrot.lane.b32.xlu0 %v501, 40
      %v1897 = vpop.permute.xlu0 %1896
      %v1900 = vsel %vm589, %v1895, 0
      %1902 = vmatprep.subr.mxu0 0.0
      %1903 = vmatpush1.msra.mxu0 %v1897
      %1904 = vmatprep.subr.mxu0 0.0
      %1905 = vmatpush1.msra.mxu0 0.0
      %1906 = vmatprep.subr.mxu0 0.0
      %1907 = vmatpush1.msra.mxu0 0.0
      %1908 = vmatprep.subr.mxu0 0.0
      %1909 = vmatpush1.msra.mxu0 0.0
      %1910 = vmatprep.subr.mxu0 0.0
      %1911 = vmatpush1.msra.mxu0 0.0
      %1912 = vmatprep.subr.mxu0 0.0
      %1913 = vmatpush1.msra.mxu0 0.0
      %1914 = vmatprep.subr.mxu0 0.0
      %1915 = vmatpush1.msra.mxu0 0.0
      %1916 = vmatprep.subr.mxu0 0.0
      %1917 = vmatpush1.msra.mxu0 0.0
      %1918 = vmatprep.subr.mxu0 0.0
      %1919 = vmatpush1.msra.mxu0 0.0
      %1920 = vmatprep.subr.mxu0 0.0
      %1921 = vmatpush1.msra.mxu0 0.0
      %1922 = vmatprep.subr.mxu0 0.0
      %1923 = vmatpush1.msra.mxu0 0.0
      %1924 = vmatprep.subr.mxu0 0.0
      %1925 = vmatpush1.msra.mxu0 0.0
      %1926 = vmatprep.subr.mxu0 0.0
      %1927 = vmatpush1.msra.mxu0 0.0
      %1928 = vmatprep.subr.mxu0 0.0
      %1929 = vmatpush1.msra.mxu0 0.0
      %1930 = vmatprep.subr.mxu0 0.0
      %1931 = vmatpush1.msra.mxu0 0.0
      %1932 = vmatprep.subr.mxu0 0.0
      %1933 = vmatpush1.msra.mxu0 0.0
      %1934 = vmatprep.subr.mxu0 0.0
      %1935 = vmatpush1.msra.mxu0 0.0
      %1936 = vmatprep.subr.mxu0 0.0
      %1937 = vmatpush1.msra.mxu0 0.0
      %1938 = vmatprep.subr.mxu0 0.0
      %1939 = vmatpush1.msra.mxu0 0.0
      %1940 = vmatprep.subr.mxu0 0.0
      %1941 = vmatpush1.msra.mxu0 0.0
      %1942 = vmatprep.subr.mxu0 0.0
      %1943 = vmatpush1.msra.mxu0 0.0
      %1944 = vmatprep.subr.mxu0 0.0
      %1945 = vmatpush1.msra.mxu0 0.0
      %1946 = vmatprep.subr.mxu0 0.0
      %1947 = vmatpush1.msra.mxu0 0.0
      %1948 = vmatprep.subr.mxu0 0.0
      %1949 = vmatpush1.msra.mxu0 0.0
      %1950 = vmatprep.subr.mxu0 0.0
      %1951 = vmatpush1.msra.mxu0 0.0
      %1952 = vmatprep.subr.mxu0 0.0
      %1953 = vmatpush1.msra.mxu0 0.0
      %1954 = vmatprep.subr.mxu0 0.0
      %1955 = vmatpush1.msra.mxu0 0.0
      %1956 = vmatprep.subr.mxu0 0.0
      %1957 = vmatpush1.msra.mxu0 0.0
      %1958 = vmatprep.subr.mxu0 0.0
      %1959 = vmatpush1.msra.mxu0 0.0
      %1960 = vmatprep.subr.mxu0 0.0
      %1961 = vmatpush1.msra.mxu0 0.0
      %1962 = vmatprep.subr.mxu0 0.0
      %1963 = vmatpush1.msra.mxu0 0.0
      %1964 = vmatprep.subr.mxu0 0.0
      %1965 = vmatpush1.msra.mxu0 0.0
      %1966 = vmatprep.mubr.f32.mxu0 0.0
      %1967 = vmatmul.mubr.f32.gmra.mrb[0].mxu0 %v1900
      %v1968 = vpop.f32.mrb[0].mxu0
      %v1969 = vadd.f32 0.0, %v1968
      %v1970 = vpop.f32.mrb[0].mxu0
      %1971 = vdwg.mxu0
      %v1972 = vpack.c.bf16 %v1969, %v1969
      %v1974 = vsel %vm513, %v1972, 0
      %v1977 = vsel %vm852, %v509, 0
      %1979 = vmatprep.subr.bf16.mxu0 0
      %1980 = vmatpush1.bf16.msra.mxu0 %v1977
      %1981 = vmatprep.subr.bf16.mxu0 0
      %1982 = vmatpush1.bf16.msra.mxu0 0
      %1983 = vmatprep.subr.bf16.mxu0 0
      %1984 = vmatpush1.bf16.msra.mxu0 0
      %1985 = vmatprep.subr.bf16.mxu0 0
      %1986 = vmatpush1.bf16.msra.mxu0 0
      %1987 = vmatprep.subr.bf16.mxu0 0
      %1988 = vmatpush1.bf16.msra.mxu0 0
      %1989 = vmatprep.subr.bf16.mxu0 0
      %1990 = vmatpush1.bf16.msra.mxu0 0
      %1991 = vmatprep.subr.bf16.mxu0 0
      %1992 = vmatpush1.bf16.msra.mxu0 0
      %1993 = vmatprep.subr.bf16.mxu0 0
      %1994 = vmatpush1.bf16.msra.mxu0 0
      %1995 = vmatprep.subr.bf16.mxu0 0
      %1996 = vmatpush1.bf16.msra.mxu0 0
      %1997 = vmatprep.subr.bf16.mxu0 0
      %1998 = vmatpush1.bf16.msra.mxu0 0
      %1999 = vmatprep.subr.bf16.mxu0 0
      %2000 = vmatpush1.bf16.msra.mxu0 0
      %2001 = vmatprep.subr.bf16.mxu0 0
      %2002 = vmatpush1.bf16.msra.mxu0 0
      %2003 = vmatprep.subr.bf16.mxu0 0
      %2004 = vmatpush1.bf16.msra.mxu0 0
      %2005 = vmatprep.subr.bf16.mxu0 0
      %2006 = vmatpush1.bf16.msra.mxu0 0
      %2007 = vmatprep.subr.bf16.mxu0 0
      %2008 = vmatpush1.bf16.msra.mxu0 0
      %2009 = vmatprep.subr.bf16.mxu0 0
      %2010 = vmatpush1.bf16.msra.mxu0 0
      %2011 = vmatprep.mubr.bf16.mxu0 0
      %2012 = vmatmul.mubr.bf16.gmra.mrb[0].mxu0 %v1974
      %v2013 = vpop.f32.mrb[0].mxu0
      %v2014 = vadd.f32 0.0, %v2013
      %v2015 = vpop.f32.mrb[0].mxu0
      %v2016 = vpop.f32.mrb[0].mxu0
      %v2017 = vpop.f32.mrb[0].mxu0
      %2018 = vdwg.mxu0
      %v2019 = vadd.f32 %v1805, %v2014
      %2020 = vrot.lane.b32.xlu0 %v501, 100
      %v2021 = vpop.permute.xlu0 %2020
      %2022 = vrot.lane.b32.xlu0 %v501, 68
      %v2023 = vpop.permute.xlu0 %2022
      %v2024 = vsel %vm513, %v2021, 0
      %v2026 = vsel %vm513, %v2023, 0
      %2028 = vmatprep.subr.mxu0 0.0
      %2029 = vmatpush1.xpose.msra.mxu0 %v2026
      %2030 = vmatprep.subr.mxu0 0.0
      %2031 = vmatpush1.xpose.msra.mxu0 0.0
      %2032 = vmatprep.subr.mxu0 0.0
      %2033 = vmatpush1.xpose.msra.mxu0 0.0
      %2034 = vmatprep.subr.mxu0 0.0
      %2035 = vmatpush1.xpose.msra.mxu0 0.0
      %2036 = vmatprep.subr.mxu0 0.0
      %2037 = vmatpush1.xpose.msra.mxu0 0.0
      %2038 = vmatprep.subr.mxu0 0.0
      %2039 = vmatpush1.xpose.msra.mxu0 0.0
      %2040 = vmatprep.subr.mxu0 0.0
      %2041 = vmatpush1.xpose.msra.mxu0 0.0
      %2042 = vmatprep.subr.mxu0 0.0
      %2043 = vmatpush1.xpose.msra.mxu0 0.0
      %2044 = vmatprep.subr.mxu0 0.0
      %2045 = vmatpush1.xpose.msra.mxu0 0.0
      %2046 = vmatprep.subr.mxu0 0.0
      %2047 = vmatpush1.xpose.msra.mxu0 0.0
      %2048 = vmatprep.subr.mxu0 0.0
      %2049 = vmatpush1.xpose.msra.mxu0 0.0
      %2050 = vmatprep.subr.mxu0 0.0
      %2051 = vmatpush1.xpose.msra.mxu0 0.0
      %2052 = vmatprep.subr.mxu0 0.0
      %2053 = vmatpush1.xpose.msra.mxu0 0.0
      %2054 = vmatprep.subr.mxu0 0.0
      %2055 = vmatpush1.xpose.msra.mxu0 0.0
      %2056 = vmatprep.subr.mxu0 0.0
      %2057 = vmatpush1.xpose.msra.mxu0 0.0
      %2058 = vmatprep.subr.mxu0 0.0
      %2059 = vmatpush1.xpose.msra.mxu0 0.0
      %2060 = vmatprep.subr.mxu0 0.0
      %2061 = vmatpush1.xpose.msra.mxu0 0.0
      %2062 = vmatprep.subr.mxu0 0.0
      %2063 = vmatpush1.xpose.msra.mxu0 0.0
      %2064 = vmatprep.subr.mxu0 0.0
      %2065 = vmatpush1.xpose.msra.mxu0 0.0
      %2066 = vmatprep.subr.mxu0 0.0
      %2067 = vmatpush1.xpose.msra.mxu0 0.0
      %2068 = vmatprep.subr.mxu0 0.0
      %2069 = vmatpush1.xpose.msra.mxu0 0.0
      %2070 = vmatprep.subr.mxu0 0.0
      %2071 = vmatpush1.xpose.msra.mxu0 0.0
      %2072 = vmatprep.subr.mxu0 0.0
      %2073 = vmatpush1.xpose.msra.mxu0 0.0
      %2074 = vmatprep.subr.mxu0 0.0
      %2075 = vmatpush1.xpose.msra.mxu0 0.0
      %2076 = vmatprep.subr.mxu0 0.0
      %2077 = vmatpush1.xpose.msra.mxu0 0.0
      %2078 = vmatprep.subr.mxu0 0.0
      %2079 = vmatpush1.xpose.msra.mxu0 0.0
      %2080 = vmatprep.subr.mxu0 0.0
      %2081 = vmatpush1.xpose.msra.mxu0 0.0
      %2082 = vmatprep.subr.mxu0 0.0
      %2083 = vmatpush1.xpose.msra.mxu0 0.0
      %2084 = vmatprep.subr.mxu0 0.0
      %2085 = vmatpush1.xpose.msra.mxu0 0.0
      %2086 = vmatprep.subr.mxu0 0.0
      %2087 = vmatpush1.xpose.msra.mxu0 0.0
      %2088 = vmatprep.subr.mxu0 0.0
      %2089 = vmatpush1.xpose.msra.mxu0 0.0
      %2090 = vmatprep.subr.mxu0 0.0
      %2091 = vmatpush1.xpose.msra.mxu0 0.0
      %2092 = vmatprep.mubr.f32.mxu0 0.0
      %2093 = vmatmul.mubr.f32.gmra.mrb[0].mxu0 %v2024
      %v2094 = vpop.f32.mrb[0].mxu0
      %v2095 = vadd.f32 0.0, %v2094
      %v2096 = vpop.f32.mrb[0].mxu0
      %2097 = vdwg.mxu0
      %v2098 = vmul.f32 %v2095, 0.5
      %v2099 = vsel %vm589, %v2098, -inf
      %2100 = vmax.xlane.f32.xlu0 %v2099
      %v2101 = vpop.xlane.xlu0 %2100
      %v2102 = vsub.f32 %v2098, %v2101
      %v2103 = vmul.f32 %v2102, 1.442695
      %v2104 = vpow.pop %v2103
      %v2105 = vsel %vm589, %v2104, 0.0
      %2106 = vadd.xlane.f32.xlu0 %v2105
      %v2107 = vpop.xlane.xlu0 %2106
      %v2108 = vrcp.pop %v2107
      %v2109 = vmul.f32 %v2104, %v2108
      %2110 = vrot.lane.b32.xlu0 %v501, 36
      %v2111 = vpop.permute.xlu0 %2110
      %v2114 = vsel %vm589, %v2109, 0
      %2116 = vmatprep.subr.mxu0 0.0
      %2117 = vmatpush1.msra.mxu0 %v2111
      %2118 = vmatprep.subr.mxu0 0.0
      %2119 = vmatpush1.msra.mxu0 0.0
      %2120 = vmatprep.subr.mxu0 0.0
      %2121 = vmatpush1.msra.mxu0 0.0
      %2122 = vmatprep.subr.mxu0 0.0
      %2123 = vmatpush1.msra.mxu0 0.0
      %2124 = vmatprep.subr.mxu0 0.0
      %2125 = vmatpush1.msra.mxu0 0.0
      %2126 = vmatprep.subr.mxu0 0.0
      %2127 = vmatpush1.msra.mxu0 0.0
      %2128 = vmatprep.subr.mxu0 0.0
      %2129 = vmatpush1.msra.mxu0 0.0
      %2130 = vmatprep.subr.mxu0 0.0
      %2131 = vmatpush1.msra.mxu0 0.0
      %2132 = vmatprep.subr.mxu0 0.0
      %2133 = vmatpush1.msra.mxu0 0.0
      %2134 = vmatprep.subr.mxu0 0.0
      %2135 = vmatpush1.msra.mxu0 0.0
      %2136 = vmatprep.subr.mxu0 0.0
      %2137 = vmatpush1.msra.mxu0 0.0
      %2138 = vmatprep.subr.mxu0 0.0
      %2139 = vmatpush1.msra.mxu0 0.0
      %2140 = vmatprep.subr.mxu0 0.0
      %2141 = vmatpush1.msra.mxu0 0.0
      %2142 = vmatprep.subr.mxu0 0.0
      %2143 = vmatpush1.msra.mxu0 0.0
      %2144 = vmatprep.subr.mxu0 0.0
      %2145 = vmatpush1.msra.mxu0 0.0
      %2146 = vmatprep.subr.mxu0 0.0
      %2147 = vmatpush1.msra.mxu0 0.0
      %2148 = vmatprep.subr.mxu0 0.0
      %2149 = vmatpush1.msra.mxu0 0.0
      %2150 = vmatprep.subr.mxu0 0.0
      %2151 = vmatpush1.msra.mxu0 0.0
      %2152 = vmatprep.subr.mxu0 0.0
      %2153 = vmatpush1.msra.mxu0 0.0
      %2154 = vmatprep.subr.mxu0 0.0
      %2155 = vmatpush1.msra.mxu0 0.0
      %2156 = vmatprep.subr.mxu0 0.0
      %2157 = vmatpush1.msra.mxu0 0.0
      %2158 = vmatprep.subr.mxu0 0.0
      %2159 = vmatpush1.msra.mxu0 0.0
      %2160 = vmatprep.subr.mxu0 0.0
      %2161 = vmatpush1.msra.mxu0 0.0
      %2162 = vmatprep.subr.mxu0 0.0
      %2163 = vmatpush1.msra.mxu0 0.0
      %2164 = vmatprep.subr.mxu0 0.0
      %2165 = vmatpush1.msra.mxu0 0.0
      %2166 = vmatprep.subr.mxu0 0.0
      %2167 = vmatpush1.msra.mxu0 0.0
      %2168 = vmatprep.subr.mxu0 0.0
      %2169 = vmatpush1.msra.mxu0 0.0
      %2170 = vmatprep.subr.mxu0 0.0
      %2171 = vmatpush1.msra.mxu0 0.0
      %2172 = vmatprep.subr.mxu0 0.0
      %2173 = vmatpush1.msra.mxu0 0.0
      %2174 = vmatprep.subr.mxu0 0.0
      %2175 = vmatpush1.msra.mxu0 0.0
      %2176 = vmatprep.subr.mxu0 0.0
      %2177 = vmatpush1.msra.mxu0 0.0
      %2178 = vmatprep.subr.mxu0 0.0
      %2179 = vmatpush1.msra.mxu0 0.0
      %2180 = vmatprep.mubr.f32.mxu0 0.0
      %2181 = vmatmul.mubr.f32.gmra.mrb[0].mxu0 %v2114
      %v2182 = vpop.f32.mrb[0].mxu0
      %v2183 = vadd.f32 0.0, %v2182
      %v2184 = vpop.f32.mrb[0].mxu0
      %2185 = vdwg.mxu0
      %v2186 = vpack.c.bf16 %v2183, %v2183
      %v2188 = vunpack.c.l.b16 %v509
      %v2189 = vpack.c.b16 %v2188, %v2188
      %v2190 = vrot.slane %v2189, 2
      %v2192 = vsel %vm513, %v2186, 0
      %v2195 = vsel %vm852, %v2190, 0
      %2197 = vmatprep.subr.bf16.mxu0 0
      %2198 = vmatpush1.bf16.msra.mxu0 %v2195
      %2199 = vmatprep.subr.bf16.mxu0 0
      %2200 = vmatpush1.bf16.msra.mxu0 0
      %2201 = vmatprep.subr.bf16.mxu0 0
      %2202 = vmatpush1.bf16.msra.mxu0 0
      %2203 = vmatprep.subr.bf16.mxu0 0
      %2204 = vmatpush1.bf16.msra.mxu0 0
      %2205 = vmatprep.subr.bf16.mxu0 0
      %2206 = vmatpush1.bf16.msra.mxu0 0
      %2207 = vmatprep.subr.bf16.mxu0 0
      %2208 = vmatpush1.bf16.msra.mxu0 0
      %2209 = vmatprep.subr.bf16.mxu0 0
      %2210 = vmatpush1.bf16.msra.mxu0 0
      %2211 = vmatprep.subr.bf16.mxu0 0
      %2212 = vmatpush1.bf16.msra.mxu0 0
      %2213 = vmatprep.subr.bf16.mxu0 0
      %2214 = vmatpush1.bf16.msra.mxu0 0
      %2215 = vmatprep.subr.bf16.mxu0 0
      %2216 = vmatpush1.bf16.msra.mxu0 0
      %2217 = vmatprep.subr.bf16.mxu0 0
      %2218 = vmatpush1.bf16.msra.mxu0 0
      %2219 = vmatprep.subr.bf16.mxu0 0
      %2220 = vmatpush1.bf16.msra.mxu0 0
      %2221 = vmatprep.subr.bf16.mxu0 0
      %2222 = vmatpush1.bf16.msra.mxu0 0
      %2223 = vmatprep.subr.bf16.mxu0 0
      %2224 = vmatpush1.bf16.msra.mxu0 0
      %2225 = vmatprep.subr.bf16.mxu0 0
      %2226 = vmatpush1.bf16.msra.mxu0 0
      %2227 = vmatprep.subr.bf16.mxu0 0
      %2228 = vmatpush1.bf16.msra.mxu0 0
      %2229 = vmatprep.mubr.bf16.mxu0 0
      %2230 = vmatmul.mubr.bf16.gmra.mrb[0].mxu0 %v2192
      %v2231 = vpop.f32.mrb[0].mxu0
      %v2232 = vadd.f32 0.0, %v2231
      %v2233 = vpop.f32.mrb[0].mxu0
      %v2234 = vpop.f32.mrb[0].mxu0
      %v2235 = vpop.f32.mrb[0].mxu0
      %2236 = vdwg.mxu0
      %v2237 = vadd.f32 %v2019, %v2232
      %v2238 = vld [vmem:[%s4] sm:$0x1]
      %v2240 = vlaneseq
      %v2241 = vshrl.u32 %v2240, 7
      %v2242 = vsub.s32 0, %v2241
      %v2243 = vrot.slane %v2238, %v2242
      %v2245 = vadd.f32 %v2237, %v2243
      %v2246 = vadd.f32 %v437, %v2245
      %v2247 = vsel %vm462, %v2246, 0.0
      %2248 = vadd.xlane.f32.xlu0 %v2247
      %v2249 = vpop.xlane.xlu0 %2248
      %v2250 = vrcp.pop 32.0
      %v2251 = vmul.f32 %v2249, %v2250
      %v2252 = vsub.f32 %v2246, %v2251
      %v2253 = vmul.f32 %v2252, %v2252
      %v2254 = vsel %vm462, %v2253, 0.0
      %2255 = vadd.xlane.f32.xlu0 %v2254
      %v2256 = vpop.xlane.xlu0 %2255
      %v2257 = vmul.f32 %v2256, %v2250
      %v2258 = vadd.f32 %v2257, 1e-05
      %v2259 = vrsqrt.pop %v2258
      %v2260 = vmul.f32 %v2252, %v2259
      %v2261 = vld [vmem:[%s5] sm:$0x1]
      %v2263 = vlaneseq
      %v2264 = vshrl.u32 %v2263, 7
      %v2265 = vsub.s32 0, %v2264
      %v2266 = vrot.slane %v2261, %v2265
      %v2268 = vmul.f32 %v2260, %v2266
      %v2269 = vld [vmem:[%s6] sm:$0x1]
      %v2271 = vlaneseq
      %v2272 = vshrl.u32 %v2271, 7
      %v2273 = vsub.s32 0, %v2272
      %v2274 = vrot.slane %v2269, %v2273
      %v2276 = vadd.f32 %v2268, %v2274
      %v2277 = vpack.c.bf16 %v2276, %v2276
      %v2278 = vld [vmem:[%s7] sm:$0xff]
      %v2279 = vld [vmem:[%s7 + $0x8] sm:$0xff]
      %v2280 = vld [vmem:[%s7 + $0x10] sm:$0xff]
      %v2281 = vld [vmem:[%s7 + $0x18] sm:$0xff]
      %v2282 = vld [vmem:[%s7 + $0x20] sm:$0xff]
      %v2283 = vld [vmem:[%s7 + $0x28] sm:$0xff]
      %v2284 = vld [vmem:[%s7 + $0x30] sm:$0xff]
      %v2285 = vld [vmem:[%s7 + $0x38] sm:$0xff]
      %v2286 = vld [vmem:[%s7 + $0x40] sm:$0xff]
      %v2287 = vld [vmem:[%s7 + $0x48] sm:$0xff]
      %v2288 = vld [vmem:[%s7 + $0x50] sm:$0xff]
      %v2289 = vld [vmem:[%s7 + $0x58] sm:$0xff]
      %v2290 = vld [vmem:[%s7 + $0x60] sm:$0xff]
      %v2291 = vld [vmem:[%s7 + $0x68] sm:$0xff]
      %v2292 = vld [vmem:[%s7 + $0x70] sm:$0xff]
      %v2293 = vld [vmem:[%s7 + $0x78] sm:$0xff]
      %v2294 = vld [vmem:[%s7 + $0x80] sm:$0xff]
      %v2295 = vld [vmem:[%s7 + $0x88] sm:$0xff]
      %v2296 = vld [vmem:[%s7 + $0x90] sm:$0xff]
      %v2297 = vld [vmem:[%s7 + $0x98] sm:$0xff]
      %v2298 = vld [vmem:[%s7 + $0xa0] sm:$0xff]
      %v2299 = vld [vmem:[%s7 + $0xa8] sm:$0xff]
      %v2300 = vld [vmem:[%s7 + $0xb0] sm:$0xff]
      %v2301 = vld [vmem:[%s7 + $0xb8] sm:$0xff]
      %v2302 = vld [vmem:[%s7 + $0xc0] sm:$0xff]
      %v2303 = vld [vmem:[%s7 + $0xc8] sm:$0xff]
      %v2304 = vld [vmem:[%s7 + $0xd0] sm:$0xff]
      %v2305 = vld [vmem:[%s7 + $0xd8] sm:$0xff]
      %v2306 = vld [vmem:[%s7 + $0xe0] sm:$0xff]
      %v2307 = vld [vmem:[%s7 + $0xe8] sm:$0xff]
      %v2308 = vld [vmem:[%s7 + $0xf0] sm:$0xff]
      %v2309 = vld [vmem:[%s7 + $0xf8] sm:$0xff]
      %v2310 = vld [vmem:[%s8] sm:$0xff]
      %v2311 = vld [vmem:[%s8 + $0x8] sm:$0xff]
      %v2314 = vlaneseq
      %v2315 = vshrl.u32 %v2314, 7
      %v2316 = vsub.s32 0, %v2315
      %v2317 = vrot.slane %v2310, %v2316
      %v2318 = vlaneseq
      %v2319 = vshrl.u32 %v2318, 7
      %v2320 = vsub.s32 1, %v2319
      %v2321 = vrot.slane %v2310, %v2320
      %v2322 = vlaneseq
      %v2323 = vshrl.u32 %v2322, 7
      %v2324 = vsub.s32 2, %v2323
      %v2325 = vrot.slane %v2310, %v2324
      %v2326 = vlaneseq
      %v2327 = vshrl.u32 %v2326, 7
      %v2328 = vsub.s32 3, %v2327
      %v2329 = vrot.slane %v2310, %v2328
      %v2330 = vlaneseq
      %v2331 = vshrl.u32 %v2330, 7
      %v2332 = vsub.s32 4, %v2331
      %v2333 = vrot.slane %v2310, %v2332
      %v2334 = vlaneseq
      %v2335 = vshrl.u32 %v2334, 7
      %v2336 = vsub.s32 5, %v2335
      %v2337 = vrot.slane %v2310, %v2336
      %v2338 = vlaneseq
      %v2339 = vshrl.u32 %v2338, 7
      %v2340 = vsub.s32 6, %v2339
      %v2341 = vrot.slane %v2310, %v2340
      %v2342 = vlaneseq
      %v2343 = vshrl.u32 %v2342, 7
      %v2344 = vsub.s32 7, %v2343
      %v2345 = vrot.slane %v2310, %v2344
      %v2346 = vlaneseq
      %v2347 = vshrl.u32 %v2346, 7
      %v2348 = vsub.s32 0, %v2347
      %v2349 = vrot.slane %v2311, %v2348
      %v2350 = vlaneseq
      %v2351 = vshrl.u32 %v2350, 7
      %v2352 = vsub.s32 1, %v2351
      %v2353 = vrot.slane %v2311, %v2352
      %v2354 = vlaneseq
      %v2355 = vshrl.u32 %v2354, 7
      %v2356 = vsub.s32 2, %v2355
      %v2357 = vrot.slane %v2311, %v2356
      %v2358 = vlaneseq
      %v2359 = vshrl.u32 %v2358, 7
      %v2360 = vsub.s32 3, %v2359
      %v2361 = vrot.slane %v2311, %v2360
      %v2362 = vlaneseq
      %v2363 = vshrl.u32 %v2362, 7
      %v2364 = vsub.s32 4, %v2363
      %v2365 = vrot.slane %v2311, %v2364
      %v2366 = vlaneseq
      %v2367 = vshrl.u32 %v2366, 7
      %v2368 = vsub.s32 5, %v2367
      %v2369 = vrot.slane %v2311, %v2368
      %v2370 = vlaneseq
      %v2371 = vshrl.u32 %v2370, 7
      %v2372 = vsub.s32 6, %v2371
      %v2373 = vrot.slane %v2311, %v2372
      %v2374 = vlaneseq
      %v2375 = vshrl.u32 %v2374, 7
      %v2376 = vsub.s32 7, %v2375
      %v2377 = vrot.slane %v2311, %v2376
      %v2426 = vunpack.c.l.b16 %v2278
      %v2427 = vunpack.c.h.b16 %v2278
      %v2428 = vunpack.c.l.b16 %v2279
      %v2429 = vunpack.c.h.b16 %v2279
      %v2430 = vunpack.c.l.b16 %v2280
      %v2431 = vunpack.c.h.b16 %v2280
      %v2432 = vunpack.c.l.b16 %v2281
      %v2433 = vunpack.c.h.b16 %v2281
      %v2434 = vunpack.c.l.b16 %v2282
      %v2435 = vunpack.c.h.b16 %v2282
      %v2436 = vunpack.c.l.b16 %v2283
      %v2437 = vunpack.c.h.b16 %v2283
      %v2438 = vunpack.c.l.b16 %v2284
      %v2439 = vunpack.c.h.b16 %v2284
      %v2440 = vunpack.c.l.b16 %v2285
      %v2441 = vunpack.c.h.b16 %v2285
      %v2442 = vunpack.c.l.b16 %v2286
      %v2443 = vunpack.c.h.b16 %v2286
      %v2444 = vunpack.c.l.b16 %v2287
      %v2445 = vunpack.c.h.b16 %v2287
      %v2446 = vunpack.c.l.b16 %v2288
      %v2447 = vunpack.c.h.b16 %v2288
      %v2448 = vunpack.c.l.b16 %v2289
      %v2449 = vunpack.c.h.b16 %v2289
      %v2450 = vunpack.c.l.b16 %v2290
      %v2451 = vunpack.c.h.b16 %v2290
      %v2452 = vunpack.c.l.b16 %v2291
      %v2453 = vunpack.c.h.b16 %v2291
      %v2454 = vunpack.c.l.b16 %v2292
      %v2455 = vunpack.c.h.b16 %v2292
      %v2456 = vunpack.c.l.b16 %v2293
      %v2457 = vunpack.c.h.b16 %v2293
      %v2458 = vunpack.c.l.b16 %v2294
      %v2459 = vunpack.c.h.b16 %v2294
      %v2460 = vunpack.c.l.b16 %v2295
      %v2461 = vunpack.c.h.b16 %v2295
      %v2462 = vunpack.c.l.b16 %v2296
      %v2463 = vunpack.c.h.b16 %v2296
      %v2464 = vunpack.c.l.b16 %v2297
      %v2465 = vunpack.c.h.b16 %v2297
      %v2466 = vunpack.c.l.b16 %v2298
      %v2467 = vunpack.c.h.b16 %v2298
      %v2468 = vunpack.c.l.b16 %v2299
      %v2469 = vunpack.c.h.b16 %v2299
      %v2470 = vunpack.c.l.b16 %v2300
      %v2471 = vunpack.c.h.b16 %v2300
      %v2472 = vunpack.c.l.b16 %v2301
      %v2473 = vunpack.c.h.b16 %v2301
      %v2474 = vunpack.c.l.b16 %v2302
      %v2475 = vunpack.c.h.b16 %v2302
      %v2476 = vunpack.c.l.b16 %v2303
      %v2477 = vunpack.c.h.b16 %v2303
      %v2478 = vunpack.c.l.b16 %v2304
      %v2479 = vunpack.c.h.b16 %v2304
      %v2480 = vunpack.c.l.b16 %v2305
      %v2481 = vunpack.c.h.b16 %v2305
      %v2482 = vunpack.c.l.b16 %v2306
      %v2483 = vunpack.c.h.b16 %v2306
      %v2484 = vunpack.c.l.b16 %v2307
      %v2485 = vunpack.c.h.b16 %v2307
      %v2486 = vunpack.c.l.b16 %v2308
      %v2487 = vunpack.c.h.b16 %v2308
      %v2488 = vunpack.c.l.b16 %v2309
      %v2489 = vunpack.c.h.b16 %v2309
      %v2490 = vpack.c.b16 %v2442, %v2426
      %v2491 = vpack.c.b16 %v2443, %v2427
      %v2492 = vpack.c.b16 %v2444, %v2428
      %v2493 = vpack.c.b16 %v2445, %v2429
      %v2494 = vpack.c.b16 %v2446, %v2430
      %v2495 = vpack.c.b16 %v2447, %v2431
      %v2496 = vpack.c.b16 %v2448, %v2432
      %v2497 = vpack.c.b16 %v2449, %v2433
      %v2498 = vpack.c.b16 %v2450, %v2434
      %v2499 = vpack.c.b16 %v2451, %v2435
      %v2500 = vpack.c.b16 %v2452, %v2436
      %v2501 = vpack.c.b16 %v2453, %v2437
      %v2502 = vpack.c.b16 %v2454, %v2438
      %v2503 = vpack.c.b16 %v2455, %v2439
      %v2504 = vpack.c.b16 %v2456, %v2440
      %v2505 = vpack.c.b16 %v2457, %v2441
      %v2506 = vpack.c.b16 %v2474, %v2458
      %v2507 = vpack.c.b16 %v2475, %v2459
      %v2508 = vpack.c.b16 %v2476, %v2460
      %v2509 = vpack.c.b16 %v2477, %v2461
      %v2510 = vpack.c.b16 %v2478, %v2462
      %v2511 = vpack.c.b16 %v2479, %v2463
      %v2512 = vpack.c.b16 %v2480, %v2464
      %v2513 = vpack.c.b16 %v2481, %v2465
      %v2514 = vpack.c.b16 %v2482, %v2466
      %v2515 = vpack.c.b16 %v2483, %v2467
      %v2516 = vpack.c.b16 %v2484, %v2468
      %v2517 = vpack.c.b16 %v2485, %v2469
      %v2518 = vpack.c.b16 %v2486, %v2470
      %v2519 = vpack.c.b16 %v2487, %v2471
      %v2520 = vpack.c.b16 %v2488, %v2472
      %v2521 = vpack.c.b16 %v2489, %v2473
      %v2555 = vsel %vm462, %v2277, 0
      %2557 = vmatprep.subr.bf16.mxu0 %v2491
      %2558 = vmatpush1.bf16.msra.mxu0 %v2490
      %2559 = vmatprep.subr.bf16.mxu0 %v2507
      %2560 = vmatpush1.bf16.msra.mxu0 %v2506
      %2561 = vmatprep.subr.bf16.mxu0 0
      %2562 = vmatpush1.bf16.msra.mxu0 0
      %2563 = vmatprep.subr.bf16.mxu0 0
      %2564 = vmatpush1.bf16.msra.mxu0 0
      %2565 = vmatprep.subr.bf16.mxu0 0
      %2566 = vmatpush1.bf16.msra.mxu0 0
      %2567 = vmatprep.subr.bf16.mxu0 0
      %2568 = vmatpush1.bf16.msra.mxu0 0
      %2569 = vmatprep.subr.bf16.mxu0 0
      %2570 = vmatpush1.bf16.msra.mxu0 0
      %2571 = vmatprep.subr.bf16.mxu0 0
      %2572 = vmatpush1.bf16.msra.mxu0 0
      %2573 = vmatprep.subr.bf16.mxu0 0
      %2574 = vmatpush1.bf16.msra.mxu0 0
      %2575 = vmatprep.subr.bf16.mxu0 0
      %2576 = vmatpush1.bf16.msra.mxu0 0
      %2577 = vmatprep.subr.bf16.mxu0 0
      %2578 = vmatpush1.bf16.msra.mxu0 0
      %2579 = vmatprep.subr.bf16.mxu0 0
      %2580 = vmatpush1.bf16.msra.mxu0 0
      %2581 = vmatprep.subr.bf16.mxu0 0
      %2582 = vmatpush1.bf16.msra.mxu0 0
      %2583 = vmatprep.subr.bf16.mxu0 0
      %2584 = vmatpush1.bf16.msra.mxu0 0
      %2585 = vmatprep.subr.bf16.mxu0 0
      %2586 = vmatpush1.bf16.msra.mxu0 0
      %2587 = vmatprep.subr.bf16.mxu0 0
      %2588 = vmatpush1.bf16.msra.mxu0 0
      %2589 = vmatprep.mubr.bf16.mxu0 0
      %2590 = vmatmul.mubr.bf16.gmra.mrb[0].mxu0 %v2555
      %v2591 = vpop.f32.mrb[0].mxu0
      %v2592 = vadd.f32 %v2317, %v2591
      %v2593 = vpop.f32.mrb[0].mxu0
      %v2594 = vadd.f32 %v2321, %v2593
      %v2595 = vpop.f32.mrb[0].mxu0
      %v2596 = vpop.f32.mrb[0].mxu0
      %2597 = vdwg.mxu0
      %2598 = vmatprep.subr.bf16.mxu0 %v2493
      %2599 = vmatpush1.bf16.msra.mxu0 %v2492
      %2600 = vmatprep.subr.bf16.mxu0 %v2509
      %2601 = vmatpush1.bf16.msra.mxu0 %v2508
      %2602 = vmatprep.subr.bf16.mxu0 0
      %2603 = vmatpush1.bf16.msra.mxu0 0
      %2604 = vmatprep.subr.bf16.mxu0 0
      %2605 = vmatpush1.bf16.msra.mxu0 0
      %2606 = vmatprep.subr.bf16.mxu0 0
      %2607 = vmatpush1.bf16.msra.mxu0 0
      %2608 = vmatprep.subr.bf16.mxu0 0
      %2609 = vmatpush1.bf16.msra.mxu0 0
      %2610 = vmatprep.subr.bf16.mxu0 0
      %2611 = vmatpush1.bf16.msra.mxu0 0
      %2612 = vmatprep.subr.bf16.mxu0 0
      %2613 = vmatpush1.bf16.msra.mxu0 0
      %2614 = vmatprep.subr.bf16.mxu0 0
      %2615 = vmatpush1.bf16.msra.mxu0 0
      %2616 = vmatprep.subr.bf16.mxu0 0
      %2617 = vmatpush1.bf16.msra.mxu0 0
      %2618 = vmatprep.subr.bf16.mxu0 0
      %2619 = vmatpush1.bf16.msra.mxu0 0
      %2620 = vmatprep.subr.bf16.mxu0 0
      %2621 = vmatpush1.bf16.msra.mxu0 0
      %2622 = vmatprep.subr.bf16.mxu0 0
      %2623 = vmatpush1.bf16.msra.mxu0 0
      %2624 = vmatprep.subr.bf16.mxu0 0
      %2625 = vmatpush1.bf16.msra.mxu0 0
      %2626 = vmatprep.subr.bf16.mxu0 0
      %2627 = vmatpush1.bf16.msra.mxu0 0
      %2628 = vmatprep.subr.bf16.mxu0 0
      %2629 = vmatpush1.bf16.msra.mxu0 0
      %2630 = vmatprep.mubr.bf16.mxu0 0
      %2631 = vmatmul.mubr.bf16.gmra.mrb[0].mxu0 %v2555
      %v2632 = vpop.f32.mrb[0].mxu0
      %v2633 = vadd.f32 %v2325, %v2632
      %v2634 = vpop.f32.mrb[0].mxu0
      %v2635 = vadd.f32 %v2329, %v2634
      %v2636 = vpop.f32.mrb[0].mxu0
      %v2637 = vpop.f32.mrb[0].mxu0
      %2638 = vdwg.mxu0
      %2639 = vmatprep.subr.bf16.mxu0 %v2495
      %2640 = vmatpush1.bf16.msra.mxu0 %v2494
      %2641 = vmatprep.subr.bf16.mxu0 %v2511
      %2642 = vmatpush1.bf16.msra.mxu0 %v2510
      %2643 = vmatprep.subr.bf16.mxu0 0
      %2644 = vmatpush1.bf16.msra.mxu0 0
      %2645 = vmatprep.subr.bf16.mxu0 0
      %2646 = vmatpush1.bf16.msra.mxu0 0
      %2647 = vmatprep.subr.bf16.mxu0 0
      %2648 = vmatpush1.bf16.msra.mxu0 0
      %2649 = vmatprep.subr.bf16.mxu0 0
      %2650 = vmatpush1.bf16.msra.mxu0 0
      %2651 = vmatprep.subr.bf16.mxu0 0
      %2652 = vmatpush1.bf16.msra.mxu0 0
      %2653 = vmatprep.subr.bf16.mxu0 0
      %2654 = vmatpush1.bf16.msra.mxu0 0
      %2655 = vmatprep.subr.bf16.mxu0 0
      %2656 = vmatpush1.bf16.msra.mxu0 0
      %2657 = vmatprep.subr.bf16.mxu0 0
      %2658 = vmatpush1.bf16.msra.mxu0 0
      %2659 = vmatprep.subr.bf16.mxu0 0
      %2660 = vmatpush1.bf16.msra.mxu0 0
      %2661 = vmatprep.subr.bf16.mxu0 0
      %2662 = vmatpush1.bf16.msra.mxu0 0
      %2663 = vmatprep.subr.bf16.mxu0 0
      %2664 = vmatpush1.bf16.msra.mxu0 0
      %2665 = vmatprep.subr.bf16.mxu0 0
      %2666 = vmatpush1.bf16.msra.mxu0 0
      %2667 = vmatprep.subr.bf16.mxu0 0
      %2668 = vmatpush1.bf16.msra.mxu0 0
      %2669 = vmatprep.subr.bf16.mxu0 0
      %2670 = vmatpush1.bf16.msra.mxu0 0
      %2671 = vmatprep.mubr.bf16.mxu0 0
      %2672 = vmatmul.mubr.bf16.gmra.mrb[0].mxu0 %v2555
      %v2673 = vpop.f32.mrb[0].mxu0
      %v2674 = vadd.f32 %v2333, %v2673
      %v2675 = vpop.f32.mrb[0].mxu0
      %v2676 = vadd.f32 %v2337, %v2675
      %v2677 = vpop.f32.mrb[0].mxu0
      %v2678 = vpop.f32.mrb[0].mxu0
      %2679 = vdwg.mxu0
      %2680 = vmatprep.subr.bf16.mxu0 %v2497
      %2681 = vmatpush1.bf16.msra.mxu0 %v2496
      %2682 = vmatprep.subr.bf16.mxu0 %v2513
      %2683 = vmatpush1.bf16.msra.mxu0 %v2512
      %2684 = vmatprep.subr.bf16.mxu0 0
      %2685 = vmatpush1.bf16.msra.mxu0 0
      %2686 = vmatprep.subr.bf16.mxu0 0
      %2687 = vmatpush1.bf16.msra.mxu0 0
      %2688 = vmatprep.subr.bf16.mxu0 0
      %2689 = vmatpush1.bf16.msra.mxu0 0
      %2690 = vmatprep.subr.bf16.mxu0 0
      %2691 = vmatpush1.bf16.msra.mxu0 0
      %2692 = vmatprep.subr.bf16.mxu0 0
      %2693 = vmatpush1.bf16.msra.mxu0 0
      %2694 = vmatprep.subr.bf16.mxu0 0
      %2695 = vmatpush1.bf16.msra.mxu0 0
      %2696 = vmatprep.subr.bf16.mxu0 0
      %2697 = vmatpush1.bf16.msra.mxu0 0
      %2698 = vmatprep.subr.bf16.mxu0 0
      %2699 = vmatpush1.bf16.msra.mxu0 0
      %2700 = vmatprep.subr.bf16.mxu0 0
      %2701 = vmatpush1.bf16.msra.mxu0 0
      %2702 = vmatprep.subr.bf16.mxu0 0
      %2703 = vmatpush1.bf16.msra.mxu0 0
      %2704 = vmatprep.subr.bf16.mxu0 0
      %2705 = vmatpush1.bf16.msra.mxu0 0
      %2706 = vmatprep.subr.bf16.mxu0 0
      %2707 = vmatpush1.bf16.msra.mxu0 0
      %2708 = vmatprep.subr.bf16.mxu0 0
      %2709 = vmatpush1.bf16.msra.mxu0 0
      %2710 = vmatprep.subr.bf16.mxu0 0
      %2711 = vmatpush1.bf16.msra.mxu0 0
      %2712 = vmatprep.mubr.bf16.mxu0 0
      %2713 = vmatmul.mubr.bf16.gmra.mrb[0].mxu0 %v2555
      %v2714 = vpop.f32.mrb[0].mxu0
      %v2715 = vadd.f32 %v2341, %v2714
      %v2716 = vpop.f32.mrb[0].mxu0
      %v2717 = vadd.f32 %v2345, %v2716
      %v2718 = vpop.f32.mrb[0].mxu0
      %v2719 = vpop.f32.mrb[0].mxu0
      %2720 = vdwg.mxu0
      %2721 = vmatprep.subr.bf16.mxu0 %v2499
      %2722 = vmatpush1.bf16.msra.mxu0 %v2498
      %2723 = vmatprep.subr.bf16.mxu0 %v2515
      %2724 = vmatpush1.bf16.msra.mxu0 %v2514
      %2725 = vmatprep.subr.bf16.mxu0 0
      %2726 = vmatpush1.bf16.msra.mxu0 0
      %2727 = vmatprep.subr.bf16.mxu0 0
      %2728 = vmatpush1.bf16.msra.mxu0 0
      %2729 = vmatprep.subr.bf16.mxu0 0
      %2730 = vmatpush1.bf16.msra.mxu0 0
      %2731 = vmatprep.subr.bf16.mxu0 0
      %2732 = vmatpush1.bf16.msra.mxu0 0
      %2733 = vmatprep.subr.bf16.mxu0 0
      %2734 = vmatpush1.bf16.msra.mxu0 0
      %2735 = vmatprep.subr.bf16.mxu0 0
      %2736 = vmatpush1.bf16.msra.mxu0 0
      %2737 = vmatprep.subr.bf16.mxu0 0
      %2738 = vmatpush1.bf16.msra.mxu0 0
      %2739 = vmatprep.subr.bf16.mxu0 0
      %2740 = vmatpush1.bf16.msra.mxu0 0
      %2741 = vmatprep.subr.bf16.mxu0 0
      %2742 = vmatpush1.bf16.msra.mxu0 0
      %2743 = vmatprep.subr.bf16.mxu0 0
      %2744 = vmatpush1.bf16.msra.mxu0 0
      %2745 = vmatprep.subr.bf16.mxu0 0
      %2746 = vmatpush1.bf16.msra.mxu0 0
      %2747 = vmatprep.subr.bf16.mxu0 0
      %2748 = vmatpush1.bf16.msra.mxu0 0
      %2749 = vmatprep.subr.bf16.mxu0 0
      %2750 = vmatpush1.bf16.msra.mxu0 0
      %2751 = vmatprep.subr.bf16.mxu0 0
      %2752 = vmatpush1.bf16.msra.mxu0 0
      %2753 = vmatprep.mubr.bf16.mxu0 0
      %2754 = vmatmul.mubr.bf16.gmra.mrb[0].mxu0 %v2555
      %v2755 = vpop.f32.mrb[0].mxu0
      %v2756 = vadd.f32 %v2349, %v2755
      %v2757 = vpop.f32.mrb[0].mxu0
      %v2758 = vadd.f32 %v2353, %v2757
      %v2759 = vpop.f32.mrb[0].mxu0
      %v2760 = vpop.f32.mrb[0].mxu0
      %2761 = vdwg.mxu0
      %2762 = vmatprep.subr.bf16.mxu0 %v2501
      %2763 = vmatpush1.bf16.msra.mxu0 %v2500
      %2764 = vmatprep.subr.bf16.mxu0 %v2517
      %2765 = vmatpush1.bf16.msra.mxu0 %v2516
      %2766 = vmatprep.subr.bf16.mxu0 0
      %2767 = vmatpush1.bf16.msra.mxu0 0
      %2768 = vmatprep.subr.bf16.mxu0 0
      %2769 = vmatpush1.bf16.msra.mxu0 0
      %2770 = vmatprep.subr.bf16.mxu0 0
      %2771 = vmatpush1.bf16.msra.mxu0 0
      %2772 = vmatprep.subr.bf16.mxu0 0
      %2773 = vmatpush1.bf16.msra.mxu0 0
      %2774 = vmatprep.subr.bf16.mxu0 0
      %2775 = vmatpush1.bf16.msra.mxu0 0
      %2776 = vmatprep.subr.bf16.mxu0 0
      %2777 = vmatpush1.bf16.msra.mxu0 0
      %2778 = vmatprep.subr.bf16.mxu0 0
      %2779 = vmatpush1.bf16.msra.mxu0 0
      %2780 = vmatprep.subr.bf16.mxu0 0
      %2781 = vmatpush1.bf16.msra.mxu0 0
      %2782 = vmatprep.subr.bf16.mxu0 0
      %2783 = vmatpush1.bf16.msra.mxu0 0
      %2784 = vmatprep.subr.bf16.mxu0 0
      %2785 = vmatpush1.bf16.msra.mxu0 0
      %2786 = vmatprep.subr.bf16.mxu0 0
      %2787 = vmatpush1.bf16.msra.mxu0 0
      %2788 = vmatprep.subr.bf16.mxu0 0
      %2789 = vmatpush1.bf16.msra.mxu0 0
      %2790 = vmatprep.subr.bf16.mxu0 0
      %2791 = vmatpush1.bf16.msra.mxu0 0
      %2792 = vmatprep.subr.bf16.mxu0 0
      %2793 = vmatpush1.bf16.msra.mxu0 0
      %2794 = vmatprep.mubr.bf16.mxu0 0
      %2795 = vmatmul.mubr.bf16.gmra.mrb[0].mxu0 %v2555
      %v2796 = vpop.f32.mrb[0].mxu0
      %v2797 = vadd.f32 %v2357, %v2796
      %v2798 = vpop.f32.mrb[0].mxu0
      %v2799 = vadd.f32 %v2361, %v2798
      %v2800 = vpop.f32.mrb[0].mxu0
      %v2801 = vpop.f32.mrb[0].mxu0
      %2802 = vdwg.mxu0
      %2803 = vmatprep.subr.bf16.mxu0 %v2503
      %2804 = vmatpush1.bf16.msra.mxu0 %v2502
      %2805 = vmatprep.subr.bf16.mxu0 %v2519
      %2806 = vmatpush1.bf16.msra.mxu0 %v2518
      %2807 = vmatprep.subr.bf16.mxu0 0
      %2808 = vmatpush1.bf16.msra.mxu0 0
      %2809 = vmatprep.subr.bf16.mxu0 0
      %2810 = vmatpush1.bf16.msra.mxu0 0
      %2811 = vmatprep.subr.bf16.mxu0 0
      %2812 = vmatpush1.bf16.msra.mxu0 0
      %2813 = vmatprep.subr.bf16.mxu0 0
      %2814 = vmatpush1.bf16.msra.mxu0 0
      %2815 = vmatprep.subr.bf16.mxu0 0
      %2816 = vmatpush1.bf16.msra.mxu0 0
      %2817 = vmatprep.subr.bf16.mxu0 0
      %2818 = vmatpush1.bf16.msra.mxu0 0
      %2819 = vmatprep.subr.bf16.mxu0 0
      %2820 = vmatpush1.bf16.msra.mxu0 0
      %2821 = vmatprep.subr.bf16.mxu0 0
      %2822 = vmatpush1.bf16.msra.mxu0 0
      %2823 = vmatprep.subr.bf16.mxu0 0
      %2824 = vmatpush1.bf16.msra.mxu0 0
      %2825 = vmatprep.subr.bf16.mxu0 0
      %2826 = vmatpush1.bf16.msra.mxu0 0
      %2827 = vmatprep.subr.bf16.mxu0 0
      %2828 = vmatpush1.bf16.msra.mxu0 0
      %2829 = vmatprep.subr.bf16.mxu0 0
      %2830 = vmatpush1.bf16.msra.mxu0 0
      %2831 = vmatprep.subr.bf16.mxu0 0
      %2832 = vmatpush1.bf16.msra.mxu0 0
      %2833 = vmatprep.subr.bf16.mxu0 0
      %2834 = vmatpush1.bf16.msra.mxu0 0
      %2835 = vmatprep.mubr.bf16.mxu0 0
      %2836 = vmatmul.mubr.bf16.gmra.mrb[0].mxu0 %v2555
      %v2837 = vpop.f32.mrb[0].mxu0
      %v2838 = vadd.f32 %v2365, %v2837
      %v2839 = vpop.f32.mrb[0].mxu0
      %v2840 = vadd.f32 %v2369, %v2839
      %v2841 = vpop.f32.mrb[0].mxu0
      %v2842 = vpop.f32.mrb[0].mxu0
      %2843 = vdwg.mxu0
      %2844 = vmatprep.subr.bf16.mxu0 %v2505
      %2845 = vmatpush1.bf16.msra.mxu0 %v2504
      %2846 = vmatprep.subr.bf16.mxu0 %v2521
      %2847 = vmatpush1.bf16.msra.mxu0 %v2520
      %2848 = vmatprep.subr.bf16.mxu0 0
      %2849 = vmatpush1.bf16.msra.mxu0 0
      %2850 = vmatprep.subr.bf16.mxu0 0
      %2851 = vmatpush1.bf16.msra.mxu0 0
      %2852 = vmatprep.subr.bf16.mxu0 0
      %2853 = vmatpush1.bf16.msra.mxu0 0
      %2854 = vmatprep.subr.bf16.mxu0 0
      %2855 = vmatpush1.bf16.msra.mxu0 0
      %2856 = vmatprep.subr.bf16.mxu0 0
      %2857 = vmatpush1.bf16.msra.mxu0 0
      %2858 = vmatprep.subr.bf16.mxu0 0
      %2859 = vmatpush1.bf16.msra.mxu0 0
      %2860 = vmatprep.subr.bf16.mxu0 0
      %2861 = vmatpush1.bf16.msra.mxu0 0
      %2862 = vmatprep.subr.bf16.mxu0 0
      %2863 = vmatpush1.bf16.msra.mxu0 0
      %2864 = vmatprep.subr.bf16.mxu0 0
      %2865 = vmatpush1.bf16.msra.mxu0 0
      %2866 = vmatprep.subr.bf16.mxu0 0
      %2867 = vmatpush1.bf16.msra.mxu0 0
      %2868 = vmatprep.subr.bf16.mxu0 0
      %2869 = vmatpush1.bf16.msra.mxu0 0
      %2870 = vmatprep.subr.bf16.mxu0 0
      %2871 = vmatpush1.bf16.msra.mxu0 0
      %2872 = vmatprep.subr.bf16.mxu0 0
      %2873 = vmatpush1.bf16.msra.mxu0 0
      %2874 = vmatprep.subr.bf16.mxu0 0
      %2875 = vmatpush1.bf16.msra.mxu0 0
      %2876 = vmatprep.mubr.bf16.mxu0 0
      %2877 = vmatmul.mubr.bf16.gmra.mrb[0].mxu0 %v2555
      %v2878 = vpop.f32.mrb[0].mxu0
      %v2879 = vadd.f32 %v2373, %v2878
      %v2880 = vpop.f32.mrb[0].mxu0
      %v2881 = vadd.f32 %v2377, %v2880
      %v2882 = vpop.f32.mrb[0].mxu0
      %v2883 = vpop.f32.mrb[0].mxu0
      %2884 = vdwg.mxu0
      %v2885 = vmax.f32 %v2592, 0.0
      %v2886 = vmax.f32 %v2594, 0.0
      %v2887 = vmax.f32 %v2633, 0.0
      %v2888 = vmax.f32 %v2635, 0.0
      %v2889 = vmax.f32 %v2674, 0.0
      %v2890 = vmax.f32 %v2676, 0.0
      %v2891 = vmax.f32 %v2715, 0.0
      %v2892 = vmax.f32 %v2717, 0.0
      %v2893 = vmax.f32 %v2756, 0.0
      %v2894 = vmax.f32 %v2758, 0.0
      %v2895 = vmax.f32 %v2797, 0.0
      %v2896 = vmax.f32 %v2799, 0.0
      %v2897 = vmax.f32 %v2838, 0.0
      %v2898 = vmax.f32 %v2840, 0.0
      %v2899 = vmax.f32 %v2879, 0.0
      %v2900 = vmax.f32 %v2881, 0.0
      %v2901 = vpack.c.bf16 %v2885, %v2885
      %v2902 = vpack.c.bf16 %v2886, %v2886
      %v2903 = vpack.c.bf16 %v2887, %v2887
      %v2904 = vpack.c.bf16 %v2888, %v2888
      %v2905 = vpack.c.bf16 %v2889, %v2889
      %v2906 = vpack.c.bf16 %v2890, %v2890
      %v2907 = vpack.c.bf16 %v2891, %v2891
      %v2908 = vpack.c.bf16 %v2892, %v2892
      %v2909 = vpack.c.bf16 %v2893, %v2893
      %v2910 = vpack.c.bf16 %v2894, %v2894
      %v2911 = vpack.c.bf16 %v2895, %v2895
      %v2912 = vpack.c.bf16 %v2896, %v2896
      %v2913 = vpack.c.bf16 %v2897, %v2897
      %v2914 = vpack.c.bf16 %v2898, %v2898
      %v2915 = vpack.c.bf16 %v2899, %v2899
      %v2916 = vpack.c.bf16 %v2900, %v2900
      %v2917 = vld [vmem:[%s9] sm:$0xf]
      %v2918 = vld [vmem:[%s9 + $0x4] sm:$0xf]
      %v2919 = vld [vmem:[%s9 + $0x8] sm:$0xf]
      %v2920 = vld [vmem:[%s9 + $0xc] sm:$0xf]
      %v2921 = vld [vmem:[%s9 + $0x10] sm:$0xf]
      %v2922 = vld [vmem:[%s9 + $0x14] sm:$0xf]
      %v2923 = vld [vmem:[%s9 + $0x18] sm:$0xf]
      %v2924 = vld [vmem:[%s9 + $0x1c] sm:$0xf]
      %v2925 = vld [vmem:[%s9 + $0x20] sm:$0xf]
      %v2926 = vld [vmem:[%s9 + $0x24] sm:$0xf]
      %v2927 = vld [vmem:[%s9 + $0x28] sm:$0xf]
      %v2928 = vld [vmem:[%s9 + $0x2c] sm:$0xf]
      %v2929 = vld [vmem:[%s9 + $0x30] sm:$0xf]
      %v2930 = vld [vmem:[%s9 + $0x34] sm:$0xf]
      %v2931 = vld [vmem:[%s9 + $0x38] sm:$0xf]
      %v2932 = vld [vmem:[%s9 + $0x3c] sm:$0xf]
      %v2933 = vld [vmem:[%s9 + $0x40] sm:$0xf]
      %v2934 = vld [vmem:[%s9 + $0x44] sm:$0xf]
      %v2935 = vld [vmem:[%s9 + $0x48] sm:$0xf]
      %v2936 = vld [vmem:[%s9 + $0x4c] sm:$0xf]
      %v2937 = vld [vmem:[%s9 + $0x50] sm:$0xf]
      %v2938 = vld [vmem:[%s9 + $0x54] sm:$0xf]
      %v2939 = vld [vmem:[%s9 + $0x58] sm:$0xf]
      %v2940 = vld [vmem:[%s9 + $0x5c] sm:$0xf]
      %v2941 = vld [vmem:[%s9 + $0x60] sm:$0xf]
      %v2942 = vld [vmem:[%s9 + $0x64] sm:$0xf]
      %v2943 = vld [vmem:[%s9 + $0x68] sm:$0xf]
      %v2944 = vld [vmem:[%s9 + $0x6c] sm:$0xf]
      %v2945 = vld [vmem:[%s9 + $0x70] sm:$0xf]
      %v2946 = vld [vmem:[%s9 + $0x74] sm:$0xf]
      %v2947 = vld [vmem:[%s9 + $0x78] sm:$0xf]
      %v2948 = vld [vmem:[%s9 + $0x7c] sm:$0xf]
      %v2949 = vld [vmem:[%s9 + $0x80] sm:$0xf]
      %v2950 = vld [vmem:[%s9 + $0x84] sm:$0xf]
      %v2951 = vld [vmem:[%s9 + $0x88] sm:$0xf]
      %v2952 = vld [vmem:[%s9 + $0x8c] sm:$0xf]
      %v2953 = vld [vmem:[%s9 + $0x90] sm:$0xf]
      %v2954 = vld [vmem:[%s9 + $0x94] sm:$0xf]
      %v2955 = vld [vmem:[%s9 + $0x98] sm:$0xf]
      %v2956 = vld [vmem:[%s9 + $0x9c] sm:$0xf]
      %v2957 = vld [vmem:[%s9 + $0xa0] sm:$0xf]
      %v2958 = vld [vmem:[%s9 + $0xa4] sm:$0xf]
      %v2959 = vld [vmem:[%s9 + $0xa8] sm:$0xf]
      %v2960 = vld [vmem:[%s9 + $0xac] sm:$0xf]
      %v2961 = vld [vmem:[%s9 + $0xb0] sm:$0xf]
      %v2962 = vld [vmem:[%s9 + $0xb4] sm:$0xf]
      %v2963 = vld [vmem:[%s9 + $0xb8] sm:$0xf]
      %v2964 = vld [vmem:[%s9 + $0xbc] sm:$0xf]
      %v2965 = vld [vmem:[%s9 + $0xc0] sm:$0xf]
      %v2966 = vld [vmem:[%s9 + $0xc4] sm:$0xf]
      %v2967 = vld [vmem:[%s9 + $0xc8] sm:$0xf]
      %v2968 = vld [vmem:[%s9 + $0xcc] sm:$0xf]
      %v2969 = vld [vmem:[%s9 + $0xd0] sm:$0xf]
      %v2970 = vld [vmem:[%s9 + $0xd4] sm:$0xf]
      %v2971 = vld [vmem:[%s9 + $0xd8] sm:$0xf]
      %v2972 = vld [vmem:[%s9 + $0xdc] sm:$0xf]
      %v2973 = vld [vmem:[%s9 + $0xe0] sm:$0xf]
      %v2974 = vld [vmem:[%s9 + $0xe4] sm:$0xf]
      %v2975 = vld [vmem:[%s9 + $0xe8] sm:$0xf]
      %v2976 = vld [vmem:[%s9 + $0xec] sm:$0xf]
      %v2977 = vld [vmem:[%s9 + $0xf0] sm:$0xf]
      %v2978 = vld [vmem:[%s9 + $0xf4] sm:$0xf]
      %v2979 = vld [vmem:[%s9 + $0xf8] sm:$0xf]
      %v2980 = vld [vmem:[%s9 + $0xfc] sm:$0xf]
      %v2981 = vld [vmem:[%s9 + $0x100] sm:$0xf]
      %v2982 = vld [vmem:[%s9 + $0x104] sm:$0xf]
      %v2983 = vld [vmem:[%s9 + $0x108] sm:$0xf]
      %v2984 = vld [vmem:[%s9 + $0x10c] sm:$0xf]
      %v2985 = vld [vmem:[%s9 + $0x110] sm:$0xf]
      %v2986 = vld [vmem:[%s9 + $0x114] sm:$0xf]
      %v2987 = vld [vmem:[%s9 + $0x118] sm:$0xf]
      %v2988 = vld [vmem:[%s9 + $0x11c] sm:$0xf]
      %v2989 = vld [vmem:[%s9 + $0x120] sm:$0xf]
      %v2990 = vld [vmem:[%s9 + $0x124] sm:$0xf]
      %v2991 = vld [vmem:[%s9 + $0x128] sm:$0xf]
      %v2992 = vld [vmem:[%s9 + $0x12c] sm:$0xf]
      %v2993 = vld [vmem:[%s9 + $0x130] sm:$0xf]
      %v2994 = vld [vmem:[%s9 + $0x134] sm:$0xf]
      %v2995 = vld [vmem:[%s9 + $0x138] sm:$0xf]
      %v2996 = vld [vmem:[%s9 + $0x13c] sm:$0xf]
      %v2997 = vld [vmem:[%s9 + $0x140] sm:$0xf]
      %v2998 = vld [vmem:[%s9 + $0x144] sm:$0xf]
      %v2999 = vld [vmem:[%s9 + $0x148] sm:$0xf]
      %v3000 = vld [vmem:[%s9 + $0x14c] sm:$0xf]
      %v3001 = vld [vmem:[%s9 + $0x150] sm:$0xf]
      %v3002 = vld [vmem:[%s9 + $0x154] sm:$0xf]
      %v3003 = vld [vmem:[%s9 + $0x158] sm:$0xf]
      %v3004 = vld [vmem:[%s9 + $0x15c] sm:$0xf]
      %v3005 = vld [vmem:[%s9 + $0x160] sm:$0xf]
      %v3006 = vld [vmem:[%s9 + $0x164] sm:$0xf]
      %v3007 = vld [vmem:[%s9 + $0x168] sm:$0xf]
      %v3008 = vld [vmem:[%s9 + $0x16c] sm:$0xf]
      %v3009 = vld [vmem:[%s9 + $0x170] sm:$0xf]
      %v3010 = vld [vmem:[%s9 + $0x174] sm:$0xf]
      %v3011 = vld [vmem:[%s9 + $0x178] sm:$0xf]
      %v3012 = vld [vmem:[%s9 + $0x17c] sm:$0xf]
      %v3013 = vld [vmem:[%s9 + $0x180] sm:$0xf]
      %v3014 = vld [vmem:[%s9 + $0x184] sm:$0xf]
      %v3015 = vld [vmem:[%s9 + $0x188] sm:$0xf]
      %v3016 = vld [vmem:[%s9 + $0x18c] sm:$0xf]
      %v3017 = vld [vmem:[%s9 + $0x190] sm:$0xf]
      %v3018 = vld [vmem:[%s9 + $0x194] sm:$0xf]
      %v3019 = vld [vmem:[%s9 + $0x198] sm:$0xf]
      %v3020 = vld [vmem:[%s9 + $0x19c] sm:$0xf]
      %v3021 = vld [vmem:[%s9 + $0x1a0] sm:$0xf]
      %v3022 = vld [vmem:[%s9 + $0x1a4] sm:$0xf]
      %v3023 = vld [vmem:[%s9 + $0x1a8] sm:$0xf]
      %v3024 = vld [vmem:[%s9 + $0x1ac] sm:$0xf]
      %v3025 = vld [vmem:[%s9 + $0x1b0] sm:$0xf]
      %v3026 = vld [vmem:[%s9 + $0x1b4] sm:$0xf]
      %v3027 = vld [vmem:[%s9 + $0x1b8] sm:$0xf]
      %v3028 = vld [vmem:[%s9 + $0x1bc] sm:$0xf]
      %v3029 = vld [vmem:[%s9 + $0x1c0] sm:$0xf]
      %v3030 = vld [vmem:[%s9 + $0x1c4] sm:$0xf]
      %v3031 = vld [vmem:[%s9 + $0x1c8] sm:$0xf]
      %v3032 = vld [vmem:[%s9 + $0x1cc] sm:$0xf]
      %v3033 = vld [vmem:[%s9 + $0x1d0] sm:$0xf]
      %v3034 = vld [vmem:[%s9 + $0x1d4] sm:$0xf]
      %v3035 = vld [vmem:[%s9 + $0x1d8] sm:$0xf]
      %v3036 = vld [vmem:[%s9 + $0x1dc] sm:$0xf]
      %v3037 = vld [vmem:[%s9 + $0x1e0] sm:$0xf]
      %v3038 = vld [vmem:[%s9 + $0x1e4] sm:$0xf]
      %v3039 = vld [vmem:[%s9 + $0x1e8] sm:$0xf]
      %v3040 = vld [vmem:[%s9 + $0x1ec] sm:$0xf]
      %v3041 = vld [vmem:[%s9 + $0x1f0] sm:$0xf]
      %v3042 = vld [vmem:[%s9 + $0x1f4] sm:$0xf]
      %v3043 = vld [vmem:[%s9 + $0x1f8] sm:$0xf]
      %v3044 = vld [vmem:[%s9 + $0x1fc] sm:$0xf]
      %v3045 = vld [vmem:[%s9 + $0x200] sm:$0xf]
      %v3046 = vld [vmem:[%s9 + $0x204] sm:$0xf]
      %v3047 = vld [vmem:[%s9 + $0x208] sm:$0xf]
      %v3048 = vld [vmem:[%s9 + $0x20c] sm:$0xf]
      %v3049 = vld [vmem:[%s9 + $0x210] sm:$0xf]
      %v3050 = vld [vmem:[%s9 + $0x214] sm:$0xf]
      %v3051 = vld [vmem:[%s9 + $0x218] sm:$0xf]
      %v3052 = vld [vmem:[%s9 + $0x21c] sm:$0xf]
      %v3053 = vld [vmem:[%s9 + $0x220] sm:$0xf]
      %v3054 = vld [vmem:[%s9 + $0x224] sm:$0xf]
      %v3055 = vld [vmem:[%s9 + $0x228] sm:$0xf]
      %v3056 = vld [vmem:[%s9 + $0x22c] sm:$0xf]
      %v3057 = vld [vmem:[%s9 + $0x230] sm:$0xf]
      %v3058 = vld [vmem:[%s9 + $0x234] sm:$0xf]
      %v3059 = vld [vmem:[%s9 + $0x238] sm:$0xf]
      %v3060 = vld [vmem:[%s9 + $0x23c] sm:$0xf]
      %v3061 = vld [vmem:[%s9 + $0x240] sm:$0xf]
      %v3062 = vld [vmem:[%s9 + $0x244] sm:$0xf]
      %v3063 = vld [vmem:[%s9 + $0x248] sm:$0xf]
      %v3064 = vld [vmem:[%s9 + $0x24c] sm:$0xf]
      %v3065 = vld [vmem:[%s9 + $0x250] sm:$0xf]
      %v3066 = vld [vmem:[%s9 + $0x254] sm:$0xf]
      %v3067 = vld [vmem:[%s9 + $0x258] sm:$0xf]
      %v3068 = vld [vmem:[%s9 + $0x25c] sm:$0xf]
      %v3069 = vld [vmem:[%s9 + $0x260] sm:$0xf]
      %v3070 = vld [vmem:[%s9 + $0x264] sm:$0xf]
      %v3071 = vld [vmem:[%s9 + $0x268] sm:$0xf]
      %v3072 = vld [vmem:[%s9 + $0x26c] sm:$0xf]
      %v3073 = vld [vmem:[%s9 + $0x270] sm:$0xf]
      %v3074 = vld [vmem:[%s9 + $0x274] sm:$0xf]
      %v3075 = vld [vmem:[%s9 + $0x278] sm:$0xf]
      %v3076 = vld [vmem:[%s9 + $0x27c] sm:$0xf]
      %v3077 = vld [vmem:[%s9 + $0x280] sm:$0xf]
      %v3078 = vld [vmem:[%s9 + $0x284] sm:$0xf]
      %v3079 = vld [vmem:[%s9 + $0x288] sm:$0xf]
      %v3080 = vld [vmem:[%s9 + $0x28c] sm:$0xf]
      %v3081 = vld [vmem:[%s9 + $0x290] sm:$0xf]
      %v3082 = vld [vmem:[%s9 + $0x294] sm:$0xf]
      %v3083 = vld [vmem:[%s9 + $0x298] sm:$0xf]
      %v3084 = vld [vmem:[%s9 + $0x29c] sm:$0xf]
      %v3085 = vld [vmem:[%s9 + $0x2a0] sm:$0xf]
      %v3086 = vld [vmem:[%s9 + $0x2a4] sm:$0xf]
      %v3087 = vld [vmem:[%s9 + $0x2a8] sm:$0xf]
      %v3088 = vld [vmem:[%s9 + $0x2ac] sm:$0xf]
      %v3089 = vld [vmem:[%s9 + $0x2b0] sm:$0xf]
      %v3090 = vld [vmem:[%s9 + $0x2b4] sm:$0xf]
      %v3091 = vld [vmem:[%s9 + $0x2b8] sm:$0xf]
      %v3092 = vld [vmem:[%s9 + $0x2bc] sm:$0xf]
      %v3093 = vld [vmem:[%s9 + $0x2c0] sm:$0xf]
      %v3094 = vld [vmem:[%s9 + $0x2c4] sm:$0xf]
      %v3095 = vld [vmem:[%s9 + $0x2c8] sm:$0xf]
      %v3096 = vld [vmem:[%s9 + $0x2cc] sm:$0xf]
      %v3097 = vld [vmem:[%s9 + $0x2d0] sm:$0xf]
      %v3098 = vld [vmem:[%s9 + $0x2d4] sm:$0xf]
      %v3099 = vld [vmem:[%s9 + $0x2d8] sm:$0xf]
      %v3100 = vld [vmem:[%s9 + $0x2dc] sm:$0xf]
      %v3101 = vld [vmem:[%s9 + $0x2e0] sm:$0xf]
      %v3102 = vld [vmem:[%s9 + $0x2e4] sm:$0xf]
      %v3103 = vld [vmem:[%s9 + $0x2e8] sm:$0xf]
      %v3104 = vld [vmem:[%s9 + $0x2ec] sm:$0xf]
      %v3105 = vld [vmem:[%s9 + $0x2f0] sm:$0xf]
      %v3106 = vld [vmem:[%s9 + $0x2f4] sm:$0xf]
      %v3107 = vld [vmem:[%s9 + $0x2f8] sm:$0xf]
      %v3108 = vld [vmem:[%s9 + $0x2fc] sm:$0xf]
      %v3109 = vld [vmem:[%s9 + $0x300] sm:$0xf]
      %v3110 = vld [vmem:[%s9 + $0x304] sm:$0xf]
      %v3111 = vld [vmem:[%s9 + $0x308] sm:$0xf]
      %v3112 = vld [vmem:[%s9 + $0x30c] sm:$0xf]
      %v3113 = vld [vmem:[%s9 + $0x310] sm:$0xf]
      %v3114 = vld [vmem:[%s9 + $0x314] sm:$0xf]
      %v3115 = vld [vmem:[%s9 + $0x318] sm:$0xf]
      %v3116 = vld [vmem:[%s9 + $0x31c] sm:$0xf]
      %v3117 = vld [vmem:[%s9 + $0x320] sm:$0xf]
      %v3118 = vld [vmem:[%s9 + $0x324] sm:$0xf]
      %v3119 = vld [vmem:[%s9 + $0x328] sm:$0xf]
      %v3120 = vld [vmem:[%s9 + $0x32c] sm:$0xf]
      %v3121 = vld [vmem:[%s9 + $0x330] sm:$0xf]
      %v3122 = vld [vmem:[%s9 + $0x334] sm:$0xf]
      %v3123 = vld [vmem:[%s9 + $0x338] sm:$0xf]
      %v3124 = vld [vmem:[%s9 + $0x33c] sm:$0xf]
      %v3125 = vld [vmem:[%s9 + $0x340] sm:$0xf]
      %v3126 = vld [vmem:[%s9 + $0x344] sm:$0xf]
      %v3127 = vld [vmem:[%s9 + $0x348] sm:$0xf]
      %v3128 = vld [vmem:[%s9 + $0x34c] sm:$0xf]
      %v3129 = vld [vmem:[%s9 + $0x350] sm:$0xf]
      %v3130 = vld [vmem:[%s9 + $0x354] sm:$0xf]
      %v3131 = vld [vmem:[%s9 + $0x358] sm:$0xf]
      %v3132 = vld [vmem:[%s9 + $0x35c] sm:$0xf]
      %v3133 = vld [vmem:[%s9 + $0x360] sm:$0xf]
      %v3134 = vld [vmem:[%s9 + $0x364] sm:$0xf]
      %v3135 = vld [vmem:[%s9 + $0x368] sm:$0xf]
      %v3136 = vld [vmem:[%s9 + $0x36c] sm:$0xf]
      %v3137 = vld [vmem:[%s9 + $0x370] sm:$0xf]
      %v3138 = vld [vmem:[%s9 + $0x374] sm:$0xf]
      %v3139 = vld [vmem:[%s9 + $0x378] sm:$0xf]
      %v3140 = vld [vmem:[%s9 + $0x37c] sm:$0xf]
      %v3141 = vld [vmem:[%s9 + $0x380] sm:$0xf]
      %v3142 = vld [vmem:[%s9 + $0x384] sm:$0xf]
      %v3143 = vld [vmem:[%s9 + $0x388] sm:$0xf]
      %v3144 = vld [vmem:[%s9 + $0x38c] sm:$0xf]
      %v3145 = vld [vmem:[%s9 + $0x390] sm:$0xf]
      %v3146 = vld [vmem:[%s9 + $0x394] sm:$0xf]
      %v3147 = vld [vmem:[%s9 + $0x398] sm:$0xf]
      %v3148 = vld [vmem:[%s9 + $0x39c] sm:$0xf]
      %v3149 = vld [vmem:[%s9 + $0x3a0] sm:$0xf]
      %v3150 = vld [vmem:[%s9 + $0x3a4] sm:$0xf]
      %v3151 = vld [vmem:[%s9 + $0x3a8] sm:$0xf]
      %v3152 = vld [vmem:[%s9 + $0x3ac] sm:$0xf]
      %v3153 = vld [vmem:[%s9 + $0x3b0] sm:$0xf]
      %v3154 = vld [vmem:[%s9 + $0x3b4] sm:$0xf]
      %v3155 = vld [vmem:[%s9 + $0x3b8] sm:$0xf]
      %v3156 = vld [vmem:[%s9 + $0x3bc] sm:$0xf]
      %v3157 = vld [vmem:[%s9 + $0x3c0] sm:$0xf]
      %v3158 = vld [vmem:[%s9 + $0x3c4] sm:$0xf]
      %v3159 = vld [vmem:[%s9 + $0x3c8] sm:$0xf]
      %v3160 = vld [vmem:[%s9 + $0x3cc] sm:$0xf]
      %v3161 = vld [vmem:[%s9 + $0x3d0] sm:$0xf]
      %v3162 = vld [vmem:[%s9 + $0x3d4] sm:$0xf]
      %v3163 = vld [vmem:[%s9 + $0x3d8] sm:$0xf]
      %v3164 = vld [vmem:[%s9 + $0x3dc] sm:$0xf]
      %v3165 = vld [vmem:[%s9 + $0x3e0] sm:$0xf]
      %v3166 = vld [vmem:[%s9 + $0x3e4] sm:$0xf]
      %v3167 = vld [vmem:[%s9 + $0x3e8] sm:$0xf]
      %v3168 = vld [vmem:[%s9 + $0x3ec] sm:$0xf]
      %v3169 = vld [vmem:[%s9 + $0x3f0] sm:$0xf]
      %v3170 = vld [vmem:[%s9 + $0x3f4] sm:$0xf]
      %v3171 = vld [vmem:[%s9 + $0x3f8] sm:$0xf]
      %v3172 = vld [vmem:[%s9 + $0x3fc] sm:$0xf]
      %v3173 = vld [vmem:[%s10] sm:$0x1]
      %v3175 = vlaneseq
      %v3176 = vshrl.u32 %v3175, 7
      %v3177 = vsub.s32 0, %v3176
      %v3178 = vrot.slane %v3173, %v3177
      %v3436 = vunpack.c.l.b16 %v2917
      %v3437 = vunpack.c.l.b16 %v2918
      %v3438 = vunpack.c.l.b16 %v2919
      %v3439 = vunpack.c.l.b16 %v2920
      %v3440 = vunpack.c.l.b16 %v2921
      %v3441 = vunpack.c.l.b16 %v2922
      %v3442 = vunpack.c.l.b16 %v2923
      %v3443 = vunpack.c.l.b16 %v2924
      %v3444 = vunpack.c.l.b16 %v2925
      %v3445 = vunpack.c.l.b16 %v2926
      %v3446 = vunpack.c.l.b16 %v2927
      %v3447 = vunpack.c.l.b16 %v2928
      %v3448 = vunpack.c.l.b16 %v2929
      %v3449 = vunpack.c.l.b16 %v2930
      %v3450 = vunpack.c.l.b16 %v2931
      %v3451 = vunpack.c.l.b16 %v2932
      %v3452 = vunpack.c.l.b16 %v2933
      %v3453 = vunpack.c.l.b16 %v2934
      %v3454 = vunpack.c.l.b16 %v2935
      %v3455 = vunpack.c.l.b16 %v2936
      %v3456 = vunpack.c.l.b16 %v2937
      %v3457 = vunpack.c.l.b16 %v2938
      %v3458 = vunpack.c.l.b16 %v2939
      %v3459 = vunpack.c.l.b16 %v2940
      %v3460 = vunpack.c.l.b16 %v2941
      %v3461 = vunpack.c.l.b16 %v2942
      %v3462 = vunpack.c.l.b16 %v2943
      %v3463 = vunpack.c.l.b16 %v2944
      %v3464 = vunpack.c.l.b16 %v2945
      %v3465 = vunpack.c.l.b16 %v2946
      %v3466 = vunpack.c.l.b16 %v2947
      %v3467 = vunpack.c.l.b16 %v2948
      %v3468 = vunpack.c.l.b16 %v2949
      %v3469 = vunpack.c.l.b16 %v2950
      %v3470 = vunpack.c.l.b16 %v2951
      %v3471 = vunpack.c.l.b16 %v2952
      %v3472 = vunpack.c.l.b16 %v2953
      %v3473 = vunpack.c.l.b16 %v2954
      %v3474 = vunpack.c.l.b16 %v2955
      %v3475 = vunpack.c.l.b16 %v2956
      %v3476 = vunpack.c.l.b16 %v2957
      %v3477 = vunpack.c.l.b16 %v2958
      %v3478 = vunpack.c.l.b16 %v2959
      %v3479 = vunpack.c.l.b16 %v2960
      %v3480 = vunpack.c.l.b16 %v2961
      %v3481 = vunpack.c.l.b16 %v2962
      %v3482 = vunpack.c.l.b16 %v2963
      %v3483 = vunpack.c.l.b16 %v2964
      %v3484 = vunpack.c.l.b16 %v2965
      %v3485 = vunpack.c.l.b16 %v2966
      %v3486 = vunpack.c.l.b16 %v2967
      %v3487 = vunpack.c.l.b16 %v2968
      %v3488 = vunpack.c.l.b16 %v2969
      %v3489 = vunpack.c.l.b16 %v2970
      %v3490 = vunpack.c.l.b16 %v2971
      %v3491 = vunpack.c.l.b16 %v2972
      %v3492 = vunpack.c.l.b16 %v2973
      %v3493 = vunpack.c.l.b16 %v2974
      %v3494 = vunpack.c.l.b16 %v2975
      %v3495 = vunpack.c.l.b16 %v2976
      %v3496 = vunpack.c.l.b16 %v2977
      %v3497 = vunpack.c.l.b16 %v2978
      %v3498 = vunpack.c.l.b16 %v2979
      %v3499 = vunpack.c.l.b16 %v2980
      %v3500 = vunpack.c.l.b16 %v2981
      %v3501 = vunpack.c.l.b16 %v2982
      %v3502 = vunpack.c.l.b16 %v2983
      %v3503 = vunpack.c.l.b16 %v2984
      %v3504 = vunpack.c.l.b16 %v2985
      %v3505 = vunpack.c.l.b16 %v2986
      %v3506 = vunpack.c.l.b16 %v2987
      %v3507 = vunpack.c.l.b16 %v2988
      %v3508 = vunpack.c.l.b16 %v2989
      %v3509 = vunpack.c.l.b16 %v2990
      %v3510 = vunpack.c.l.b16 %v2991
      %v3511 = vunpack.c.l.b16 %v2992
      %v3512 = vunpack.c.l.b16 %v2993
      %v3513 = vunpack.c.l.b16 %v2994
      %v3514 = vunpack.c.l.b16 %v2995
      %v3515 = vunpack.c.l.b16 %v2996
      %v3516 = vunpack.c.l.b16 %v2997
      %v3517 = vunpack.c.l.b16 %v2998
      %v3518 = vunpack.c.l.b16 %v2999
      %v3519 = vunpack.c.l.b16 %v3000
      %v3520 = vunpack.c.l.b16 %v3001
      %v3521 = vunpack.c.l.b16 %v3002
      %v3522 = vunpack.c.l.b16 %v3003
      %v3523 = vunpack.c.l.b16 %v3004
      %v3524 = vunpack.c.l.b16 %v3005
      %v3525 = vunpack.c.l.b16 %v3006
      %v3526 = vunpack.c.l.b16 %v3007
      %v3527 = vunpack.c.l.b16 %v3008
      %v3528 = vunpack.c.l.b16 %v3009
      %v3529 = vunpack.c.l.b16 %v3010
      %v3530 = vunpack.c.l.b16 %v3011
      %v3531 = vunpack.c.l.b16 %v3012
      %v3532 = vunpack.c.l.b16 %v3013
      %v3533 = vunpack.c.l.b16 %v3014
      %v3534 = vunpack.c.l.b16 %v3015
      %v3535 = vunpack.c.l.b16 %v3016
      %v3536 = vunpack.c.l.b16 %v3017
      %v3537 = vunpack.c.l.b16 %v3018
      %v3538 = vunpack.c.l.b16 %v3019
      %v3539 = vunpack.c.l.b16 %v3020
      %v3540 = vunpack.c.l.b16 %v3021
      %v3541 = vunpack.c.l.b16 %v3022
      %v3542 = vunpack.c.l.b16 %v3023
      %v3543 = vunpack.c.l.b16 %v3024
      %v3544 = vunpack.c.l.b16 %v3025
      %v3545 = vunpack.c.l.b16 %v3026
      %v3546 = vunpack.c.l.b16 %v3027
      %v3547 = vunpack.c.l.b16 %v3028
      %v3548 = vunpack.c.l.b16 %v3029
      %v3549 = vunpack.c.l.b16 %v3030
      %v3550 = vunpack.c.l.b16 %v3031
      %v3551 = vunpack.c.l.b16 %v3032
      %v3552 = vunpack.c.l.b16 %v3033
      %v3553 = vunpack.c.l.b16 %v3034
      %v3554 = vunpack.c.l.b16 %v3035
      %v3555 = vunpack.c.l.b16 %v3036
      %v3556 = vunpack.c.l.b16 %v3037
      %v3557 = vunpack.c.l.b16 %v3038
      %v3558 = vunpack.c.l.b16 %v3039
      %v3559 = vunpack.c.l.b16 %v3040
      %v3560 = vunpack.c.l.b16 %v3041
      %v3561 = vunpack.c.l.b16 %v3042
      %v3562 = vunpack.c.l.b16 %v3043
      %v3563 = vunpack.c.l.b16 %v3044
      %v3564 = vunpack.c.l.b16 %v3045
      %v3565 = vunpack.c.l.b16 %v3046
      %v3566 = vunpack.c.l.b16 %v3047
      %v3567 = vunpack.c.l.b16 %v3048
      %v3568 = vunpack.c.l.b16 %v3049
      %v3569 = vunpack.c.l.b16 %v3050
      %v3570 = vunpack.c.l.b16 %v3051
      %v3571 = vunpack.c.l.b16 %v3052
      %v3572 = vunpack.c.l.b16 %v3053
      %v3573 = vunpack.c.l.b16 %v3054
      %v3574 = vunpack.c.l.b16 %v3055
      %v3575 = vunpack.c.l.b16 %v3056
      %v3576 = vunpack.c.l.b16 %v3057
      %v3577 = vunpack.c.l.b16 %v3058
      %v3578 = vunpack.c.l.b16 %v3059
      %v3579 = vunpack.c.l.b16 %v3060
      %v3580 = vunpack.c.l.b16 %v3061
      %v3581 = vunpack.c.l.b16 %v3062
      %v3582 = vunpack.c.l.b16 %v3063
      %v3583 = vunpack.c.l.b16 %v3064
      %v3584 = vunpack.c.l.b16 %v3065
      %v3585 = vunpack.c.l.b16 %v3066
      %v3586 = vunpack.c.l.b16 %v3067
      %v3587 = vunpack.c.l.b16 %v3068
      %v3588 = vunpack.c.l.b16 %v3069
      %v3589 = vunpack.c.l.b16 %v3070
      %v3590 = vunpack.c.l.b16 %v3071
      %v3591 = vunpack.c.l.b16 %v3072
      %v3592 = vunpack.c.l.b16 %v3073
      %v3593 = vunpack.c.l.b16 %v3074
      %v3594 = vunpack.c.l.b16 %v3075
      %v3595 = vunpack.c.l.b16 %v3076
      %v3596 = vunpack.c.l.b16 %v3077
      %v3597 = vunpack.c.l.b16 %v3078
      %v3598 = vunpack.c.l.b16 %v3079
      %v3599 = vunpack.c.l.b16 %v3080
      %v3600 = vunpack.c.l.b16 %v3081
      %v3601 = vunpack.c.l.b16 %v3082
      %v3602 = vunpack.c.l.b16 %v3083
      %v3603 = vunpack.c.l.b16 %v3084
      %v3604 = vunpack.c.l.b16 %v3085
      %v3605 = vunpack.c.l.b16 %v3086
      %v3606 = vunpack.c.l.b16 %v3087
      %v3607 = vunpack.c.l.b16 %v3088
      %v3608 = vunpack.c.l.b16 %v3089
      %v3609 = vunpack.c.l.b16 %v3090
      %v3610 = vunpack.c.l.b16 %v3091
      %v3611 = vunpack.c.l.b16 %v3092
      %v3612 = vunpack.c.l.b16 %v3093
      %v3613 = vunpack.c.l.b16 %v3094
      %v3614 = vunpack.c.l.b16 %v3095
      %v3615 = vunpack.c.l.b16 %v3096
      %v3616 = vunpack.c.l.b16 %v3097
      %v3617 = vunpack.c.l.b16 %v3098
      %v3618 = vunpack.c.l.b16 %v3099
      %v3619 = vunpack.c.l.b16 %v3100
      %v3620 = vunpack.c.l.b16 %v3101
      %v3621 = vunpack.c.l.b16 %v3102
      %v3622 = vunpack.c.l.b16 %v3103
      %v3623 = vunpack.c.l.b16 %v3104
      %v3624 = vunpack.c.l.b16 %v3105
      %v3625 = vunpack.c.l.b16 %v3106
      %v3626 = vunpack.c.l.b16 %v3107
      %v3627 = vunpack.c.l.b16 %v3108
      %v3628 = vunpack.c.l.b16 %v3109
      %v3629 = vunpack.c.l.b16 %v3110
      %v3630 = vunpack.c.l.b16 %v3111
      %v3631 = vunpack.c.l.b16 %v3112
      %v3632 = vunpack.c.l.b16 %v3113
      %v3633 = vunpack.c.l.b16 %v3114
      %v3634 = vunpack.c.l.b16 %v3115
      %v3635 = vunpack.c.l.b16 %v3116
      %v3636 = vunpack.c.l.b16 %v3117
      %v3637 = vunpack.c.l.b16 %v3118
      %v3638 = vunpack.c.l.b16 %v3119
      %v3639 = vunpack.c.l.b16 %v3120
      %v3640 = vunpack.c.l.b16 %v3121
      %v3641 = vunpack.c.l.b16 %v3122
      %v3642 = vunpack.c.l.b16 %v3123
      %v3643 = vunpack.c.l.b16 %v3124
      %v3644 = vunpack.c.l.b16 %v3125
      %v3645 = vunpack.c.l.b16 %v3126
      %v3646 = vunpack.c.l.b16 %v3127
      %v3647 = vunpack.c.l.b16 %v3128
      %v3648 = vunpack.c.l.b16 %v3129
      %v3649 = vunpack.c.l.b16 %v3130
      %v3650 = vunpack.c.l.b16 %v3131
      %v3651 = vunpack.c.l.b16 %v3132
      %v3652 = vunpack.c.l.b16 %v3133
      %v3653 = vunpack.c.l.b16 %v3134
      %v3654 = vunpack.c.l.b16 %v3135
      %v3655 = vunpack.c.l.b16 %v3136
      %v3656 = vunpack.c.l.b16 %v3137
      %v3657 = vunpack.c.l.b16 %v3138
      %v3658 = vunpack.c.l.b16 %v3139
      %v3659 = vunpack.c.l.b16 %v3140
      %v3660 = vunpack.c.l.b16 %v3141
      %v3661 = vunpack.c.l.b16 %v3142
      %v3662 = vunpack.c.l.b16 %v3143
      %v3663 = vunpack.c.l.b16 %v3144
      %v3664 = vunpack.c.l.b16 %v3145
      %v3665 = vunpack.c.l.b16 %v3146
      %v3666 = vunpack.c.l.b16 %v3147
      %v3667 = vunpack.c.l.b16 %v3148
      %v3668 = vunpack.c.l.b16 %v3149
      %v3669 = vunpack.c.l.b16 %v3150
      %v3670 = vunpack.c.l.b16 %v3151
      %v3671 = vunpack.c.l.b16 %v3152
      %v3672 = vunpack.c.l.b16 %v3153
      %v3673 = vunpack.c.l.b16 %v3154
      %v3674 = vunpack.c.l.b16 %v3155
      %v3675 = vunpack.c.l.b16 %v3156
      %v3676 = vunpack.c.l.b16 %v3157
      %v3677 = vunpack.c.l.b16 %v3158
      %v3678 = vunpack.c.l.b16 %v3159
      %v3679 = vunpack.c.l.b16 %v3160
      %v3680 = vunpack.c.l.b16 %v3161
      %v3681 = vunpack.c.l.b16 %v3162
      %v3682 = vunpack.c.l.b16 %v3163
      %v3683 = vunpack.c.l.b16 %v3164
      %v3684 = vunpack.c.l.b16 %v3165
      %v3685 = vunpack.c.l.b16 %v3166
      %v3686 = vunpack.c.l.b16 %v3167
      %v3687 = vunpack.c.l.b16 %v3168
      %v3688 = vunpack.c.l.b16 %v3169
      %v3689 = vunpack.c.l.b16 %v3170
      %v3690 = vunpack.c.l.b16 %v3171
      %v3691 = vunpack.c.l.b16 %v3172
      %v3692 = vpack.c.b16 %v3437, %v3436
      %v3693 = vpack.c.b16 %v3439, %v3438
      %v3694 = vpack.c.b16 %v3441, %v3440
      %v3695 = vpack.c.b16 %v3443, %v3442
      %v3696 = vpack.c.b16 %v3445, %v3444
      %v3697 = vpack.c.b16 %v3447, %v3446
      %v3698 = vpack.c.b16 %v3449, %v3448
      %v3699 = vpack.c.b16 %v3451, %v3450
      %v3700 = vpack.c.b16 %v3453, %v3452
      %v3701 = vpack.c.b16 %v3455, %v3454
      %v3702 = vpack.c.b16 %v3457, %v3456
      %v3703 = vpack.c.b16 %v3459, %v3458
      %v3704 = vpack.c.b16 %v3461, %v3460
      %v3705 = vpack.c.b16 %v3463, %v3462
      %v3706 = vpack.c.b16 %v3465, %v3464
      %v3707 = vpack.c.b16 %v3467, %v3466
      %v3708 = vpack.c.b16 %v3469, %v3468
      %v3709 = vpack.c.b16 %v3471, %v3470
      %v3710 = vpack.c.b16 %v3473, %v3472
      %v3711 = vpack.c.b16 %v3475, %v3474
      %v3712 = vpack.c.b16 %v3477, %v3476
      %v3713 = vpack.c.b16 %v3479, %v3478
      %v3714 = vpack.c.b16 %v3481, %v3480
      %v3715 = vpack.c.b16 %v3483, %v3482
      %v3716 = vpack.c.b16 %v3485, %v3484
      %v3717 = vpack.c.b16 %v3487, %v3486
      %v3718 = vpack.c.b16 %v3489, %v3488
      %v3719 = vpack.c.b16 %v3491, %v3490
      %v3720 = vpack.c.b16 %v3493, %v3492
      %v3721 = vpack.c.b16 %v3495, %v3494
      %v3722 = vpack.c.b16 %v3497, %v3496
      %v3723 = vpack.c.b16 %v3499, %v3498
      %v3724 = vpack.c.b16 %v3501, %v3500
      %v3725 = vpack.c.b16 %v3503, %v3502
      %v3726 = vpack.c.b16 %v3505, %v3504
      %v3727 = vpack.c.b16 %v3507, %v3506
      %v3728 = vpack.c.b16 %v3509, %v3508
      %v3729 = vpack.c.b16 %v3511, %v3510
      %v3730 = vpack.c.b16 %v3513, %v3512
      %v3731 = vpack.c.b16 %v3515, %v3514
      %v3732 = vpack.c.b16 %v3517, %v3516
      %v3733 = vpack.c.b16 %v3519, %v3518
      %v3734 = vpack.c.b16 %v3521, %v3520
      %v3735 = vpack.c.b16 %v3523, %v3522
      %v3736 = vpack.c.b16 %v3525, %v3524
      %v3737 = vpack.c.b16 %v3527, %v3526
      %v3738 = vpack.c.b16 %v3529, %v3528
      %v3739 = vpack.c.b16 %v3531, %v3530
      %v3740 = vpack.c.b16 %v3533, %v3532
      %v3741 = vpack.c.b16 %v3535, %v3534
      %v3742 = vpack.c.b16 %v3537, %v3536
      %v3743 = vpack.c.b16 %v3539, %v3538
      %v3744 = vpack.c.b16 %v3541, %v3540
      %v3745 = vpack.c.b16 %v3543, %v3542
      %v3746 = vpack.c.b16 %v3545, %v3544
      %v3747 = vpack.c.b16 %v3547, %v3546
      %v3748 = vpack.c.b16 %v3549, %v3548
      %v3749 = vpack.c.b16 %v3551, %v3550
      %v3750 = vpack.c.b16 %v3553, %v3552
      %v3751 = vpack.c.b16 %v3555, %v3554
      %v3752 = vpack.c.b16 %v3557, %v3556
      %v3753 = vpack.c.b16 %v3559, %v3558
      %v3754 = vpack.c.b16 %v3561, %v3560
      %v3755 = vpack.c.b16 %v3563, %v3562
      %v3756 = vpack.c.b16 %v3565, %v3564
      %v3757 = vpack.c.b16 %v3567, %v3566
      %v3758 = vpack.c.b16 %v3569, %v3568
      %v3759 = vpack.c.b16 %v3571, %v3570
      %v3760 = vpack.c.b16 %v3573, %v3572
      %v3761 = vpack.c.b16 %v3575, %v3574
      %v3762 = vpack.c.b16 %v3577, %v3576
      %v3763 = vpack.c.b16 %v3579, %v3578
      %v3764 = vpack.c.b16 %v3581, %v3580
      %v3765 = vpack.c.b16 %v3583, %v3582
      %v3766 = vpack.c.b16 %v3585, %v3584
      %v3767 = vpack.c.b16 %v3587, %v3586
      %v3768 = vpack.c.b16 %v3589, %v3588
      %v3769 = vpack.c.b16 %v3591, %v3590
      %v3770 = vpack.c.b16 %v3593, %v3592
      %v3771 = vpack.c.b16 %v3595, %v3594
      %v3772 = vpack.c.b16 %v3597, %v3596
      %v3773 = vpack.c.b16 %v3599, %v3598
      %v3774 = vpack.c.b16 %v3601, %v3600
      %v3775 = vpack.c.b16 %v3603, %v3602
      %v3776 = vpack.c.b16 %v3605, %v3604
      %v3777 = vpack.c.b16 %v3607, %v3606
      %v3778 = vpack.c.b16 %v3609, %v3608
      %v3779 = vpack.c.b16 %v3611, %v3610
      %v3780 = vpack.c.b16 %v3613, %v3612
      %v3781 = vpack.c.b16 %v3615, %v3614
      %v3782 = vpack.c.b16 %v3617, %v3616
      %v3783 = vpack.c.b16 %v3619, %v3618
      %v3784 = vpack.c.b16 %v3621, %v3620
      %v3785 = vpack.c.b16 %v3623, %v3622
      %v3786 = vpack.c.b16 %v3625, %v3624
      %v3787 = vpack.c.b16 %v3627, %v3626
      %v3788 = vpack.c.b16 %v3629, %v3628
      %v3789 = vpack.c.b16 %v3631, %v3630
      %v3790 = vpack.c.b16 %v3633, %v3632
      %v3791 = vpack.c.b16 %v3635, %v3634
      %v3792 = vpack.c.b16 %v3637, %v3636
      %v3793 = vpack.c.b16 %v3639, %v3638
      %v3794 = vpack.c.b16 %v3641, %v3640
      %v3795 = vpack.c.b16 %v3643, %v3642
      %v3796 = vpack.c.b16 %v3645, %v3644
      %v3797 = vpack.c.b16 %v3647, %v3646
      %v3798 = vpack.c.b16 %v3649, %v3648
      %v3799 = vpack.c.b16 %v3651, %v3650
      %v3800 = vpack.c.b16 %v3653, %v3652
      %v3801 = vpack.c.b16 %v3655, %v3654
      %v3802 = vpack.c.b16 %v3657, %v3656
      %v3803 = vpack.c.b16 %v3659, %v3658
      %v3804 = vpack.c.b16 %v3661, %v3660
      %v3805 = vpack.c.b16 %v3663, %v3662
      %v3806 = vpack.c.b16 %v3665, %v3664
      %v3807 = vpack.c.b16 %v3667, %v3666
      %v3808 = vpack.c.b16 %v3669, %v3668
      %v3809 = vpack.c.b16 %v3671, %v3670
      %v3810 = vpack.c.b16 %v3673, %v3672
      %v3811 = vpack.c.b16 %v3675, %v3674
      %v3812 = vpack.c.b16 %v3677, %v3676
      %v3813 = vpack.c.b16 %v3679, %v3678
      %v3814 = vpack.c.b16 %v3681, %v3680
      %v3815 = vpack.c.b16 %v3683, %v3682
      %v3816 = vpack.c.b16 %v3685, %v3684
      %v3817 = vpack.c.b16 %v3687, %v3686
      %v3818 = vpack.c.b16 %v3689, %v3688
      %v3819 = vpack.c.b16 %v3691, %v3690
      %3948 = vmatprep.subr.bf16.mxu0 0
      %3949 = vmatpush1.bf16.msra.mxu0 %v3692
      %3950 = vmatprep.subr.bf16.mxu0 0
      %3951 = vmatpush1.bf16.msra.mxu0 %v3693
      %3952 = vmatprep.subr.bf16.mxu0 0
      %3953 = vmatpush1.bf16.msra.mxu0 %v3694
      %3954 = vmatprep.subr.bf16.mxu0 0
      %3955 = vmatpush1.bf16.msra.mxu0 %v3695
      %3956 = vmatprep.subr.bf16.mxu0 0
      %3957 = vmatpush1.bf16.msra.mxu0 %v3696
      %3958 = vmatprep.subr.bf16.mxu0 0
      %3959 = vmatpush1.bf16.msra.mxu0 %v3697
      %3960 = vmatprep.subr.bf16.mxu0 0
      %3961 = vmatpush1.bf16.msra.mxu0 %v3698
      %3962 = vmatprep.subr.bf16.mxu0 0
      %3963 = vmatpush1.bf16.msra.mxu0 %v3699
      %3964 = vmatprep.subr.bf16.mxu0 0
      %3965 = vmatpush1.bf16.msra.mxu0 %v3700
      %3966 = vmatprep.subr.bf16.mxu0 0
      %3967 = vmatpush1.bf16.msra.mxu0 %v3701
      %3968 = vmatprep.subr.bf16.mxu0 0
      %3969 = vmatpush1.bf16.msra.mxu0 %v3702
      %3970 = vmatprep.subr.bf16.mxu0 0
      %3971 = vmatpush1.bf16.msra.mxu0 %v3703
      %3972 = vmatprep.subr.bf16.mxu0 0
      %3973 = vmatpush1.bf16.msra.mxu0 %v3704
      %3974 = vmatprep.subr.bf16.mxu0 0
      %3975 = vmatpush1.bf16.msra.mxu0 %v3705
      %3976 = vmatprep.subr.bf16.mxu0 0
      %3977 = vmatpush1.bf16.msra.mxu0 %v3706
      %3978 = vmatprep.subr.bf16.mxu0 0
      %3979 = vmatpush1.bf16.msra.mxu0 %v3707
      %3980 = vmatprep.mubr.bf16.mxu0 %v2902
      %3981 = vmatmul.mubr.bf16.gmra.mrb[0].mxu0 %v2901
      %v3982 = vpop.f32.mrb[0].mxu0
      %v3983 = vadd.f32 %v3178, %v3982
      %v3984 = vpop.f32.mrb[0].mxu0
      %v3985 = vpop.f32.mrb[0].mxu0
      %v3986 = vpop.f32.mrb[0].mxu0
      %3987 = vdwg.mxu0
      %3988 = vmatprep.subr.bf16.mxu0 0
      %3989 = vmatpush1.bf16.msra.mxu0 %v3708
      %3990 = vmatprep.subr.bf16.mxu0 0
      %3991 = vmatpush1.bf16.msra.mxu0 %v3709
      %3992 = vmatprep.subr.bf16.mxu0 0
      %3993 = vmatpush1.bf16.msra.mxu0 %v3710
      %3994 = vmatprep.subr.bf16.mxu0 0
      %3995 = vmatpush1.bf16.msra.mxu0 %v3711
      %3996 = vmatprep.subr.bf16.mxu0 0
      %3997 = vmatpush1.bf16.msra.mxu0 %v3712
      %3998 = vmatprep.subr.bf16.mxu0 0
      %3999 = vmatpush1.bf16.msra.mxu0 %v3713
      %4000 = vmatprep.subr.bf16.mxu0 0
      %4001 = vmatpush1.bf16.msra.mxu0 %v3714
      %4002 = vmatprep.subr.bf16.mxu0 0
      %4003 = vmatpush1.bf16.msra.mxu0 %v3715
      %4004 = vmatprep.subr.bf16.mxu0 0
      %4005 = vmatpush1.bf16.msra.mxu0 %v3716
      %4006 = vmatprep.subr.bf16.mxu0 0
      %4007 = vmatpush1.bf16.msra.mxu0 %v3717
      %4008 = vmatprep.subr.bf16.mxu0 0
      %4009 = vmatpush1.bf16.msra.mxu0 %v3718
      %4010 = vmatprep.subr.bf16.mxu0 0
      %4011 = vmatpush1.bf16.msra.mxu0 %v3719
      %4012 = vmatprep.subr.bf16.mxu0 0
      %4013 = vmatpush1.bf16.msra.mxu0 %v3720
      %4014 = vmatprep.subr.bf16.mxu0 0
      %4015 = vmatpush1.bf16.msra.mxu0 %v3721
      %4016 = vmatprep.subr.bf16.mxu0 0
      %4017 = vmatpush1.bf16.msra.mxu0 %v3722
      %4018 = vmatprep.subr.bf16.mxu0 0
      %4019 = vmatpush1.bf16.msra.mxu0 %v3723
      %4020 = vmatprep.mubr.bf16.mxu0 %v2904
      %4021 = vmatmul.mubr.bf16.gmra.mrb[0].mxu0 %v2903
      %v4022 = vpop.f32.mrb[0].mxu0
      %v4023 = vadd.f32 %v3983, %v4022
      %v4024 = vpop.f32.mrb[0].mxu0
      %v4025 = vpop.f32.mrb[0].mxu0
      %v4026 = vpop.f32.mrb[0].mxu0
      %4027 = vdwg.mxu0
      %4028 = vmatprep.subr.bf16.mxu0 0
      %4029 = vmatpush1.bf16.msra.mxu0 %v3724
      %4030 = vmatprep.subr.bf16.mxu0 0
      %4031 = vmatpush1.bf16.msra.mxu0 %v3725
      %4032 = vmatprep.subr.bf16.mxu0 0
      %4033 = vmatpush1.bf16.msra.mxu0 %v3726
      %4034 = vmatprep.subr.bf16.mxu0 0
      %4035 = vmatpush1.bf16.msra.mxu0 %v3727
      %4036 = vmatprep.subr.bf16.mxu0 0
      %4037 = vmatpush1.bf16.msra.mxu0 %v3728
      %4038 = vmatprep.subr.bf16.mxu0 0
      %4039 = vmatpush1.bf16.msra.mxu0 %v3729
      %4040 = vmatprep.subr.bf16.mxu0 0
      %4041 = vmatpush1.bf16.msra.mxu0 %v3730
      %4042 = vmatprep.subr.bf16.mxu0 0
      %4043 = vmatpush1.bf16.msra.mxu0 %v3731
      %4044 = vmatprep.subr.bf16.mxu0 0
      %4045 = vmatpush1.bf16.msra.mxu0 %v3732
      %4046 = vmatprep.subr.bf16.mxu0 0
      %4047 = vmatpush1.bf16.msra.mxu0 %v3733
      %4048 = vmatprep.subr.bf16.mxu0 0
      %4049 = vmatpush1.bf16.msra.mxu0 %v3734
      %4050 = vmatprep.subr.bf16.mxu0 0
      %4051 = vmatpush1.bf16.msra.mxu0 %v3735
      %4052 = vmatprep.subr.bf16.mxu0 0
      %4053 = vmatpush1.bf16.msra.mxu0 %v3736
      %4054 = vmatprep.subr.bf16.mxu0 0
      %4055 = vmatpush1.bf16.msra.mxu0 %v3737
      %4056 = vmatprep.subr.bf16.mxu0 0
      %4057 = vmatpush1.bf16.msra.mxu0 %v3738
      %4058 = vmatprep.subr.bf16.mxu0 0
      %4059 = vmatpush1.bf16.msra.mxu0 %v3739
      %4060 = vmatprep.mubr.bf16.mxu0 %v2906
      %4061 = vmatmul.mubr.bf16.gmra.mrb[0].mxu0 %v2905
      %v4062 = vpop.f32.mrb[0].mxu0
      %v4063 = vadd.f32 %v4023, %v4062
      %v4064 = vpop.f32.mrb[0].mxu0
      %v4065 = vpop.f32.mrb[0].mxu0
      %v4066 = vpop.f32.mrb[0].mxu0
      %4067 = vdwg.mxu0
      %4068 = vmatprep.subr.bf16.mxu0 0
      %4069 = vmatpush1.bf16.msra.mxu0 %v3740
      %4070 = vmatprep.subr.bf16.mxu0 0
      %4071 = vmatpush1.bf16.msra.mxu0 %v3741
      %4072 = vmatprep.subr.bf16.mxu0 0
      %4073 = vmatpush1.bf16.msra.mxu0 %v3742
      %4074 = vmatprep.subr.bf16.mxu0 0
      %4075 = vmatpush1.bf16.msra.mxu0 %v3743
      %4076 = vmatprep.subr.bf16.mxu0 0
      %4077 = vmatpush1.bf16.msra.mxu0 %v3744
      %4078 = vmatprep.subr.bf16.mxu0 0
      %4079 = vmatpush1.bf16.msra.mxu0 %v3745
      %4080 = vmatprep.subr.bf16.mxu0 0
      %4081 = vmatpush1.bf16.msra.mxu0 %v3746
      %4082 = vmatprep.subr.bf16.mxu0 0
      %4083 = vmatpush1.bf16.msra.mxu0 %v3747
      %4084 = vmatprep.subr.bf16.mxu0 0
      %4085 = vmatpush1.bf16.msra.mxu0 %v3748
      %4086 = vmatprep.subr.bf16.mxu0 0
      %4087 = vmatpush1.bf16.msra.mxu0 %v3749
      %4088 = vmatprep.subr.bf16.mxu0 0
      %4089 = vmatpush1.bf16.msra.mxu0 %v3750
      %4090 = vmatprep.subr.bf16.mxu0 0
      %4091 = vmatpush1.bf16.msra.mxu0 %v3751
      %4092 = vmatprep.subr.bf16.mxu0 0
      %4093 = vmatpush1.bf16.msra.mxu0 %v3752
      %4094 = vmatprep.subr.bf16.mxu0 0
      %4095 = vmatpush1.bf16.msra.mxu0 %v3753
      %4096 = vmatprep.subr.bf16.mxu0 0
      %4097 = vmatpush1.bf16.msra.mxu0 %v3754
      %4098 = vmatprep.subr.bf16.mxu0 0
      %4099 = vmatpush1.bf16.msra.mxu0 %v3755
      %4100 = vmatprep.mubr.bf16.mxu0 %v2908
      %4101 = vmatmul.mubr.bf16.gmra.mrb[0].mxu0 %v2907
      %v4102 = vpop.f32.mrb[0].mxu0
      %v4103 = vadd.f32 %v4063, %v4102
      %v4104 = vpop.f32.mrb[0].mxu0
      %v4105 = vpop.f32.mrb[0].mxu0
      %v4106 = vpop.f32.mrb[0].mxu0
      %4107 = vdwg.mxu0
      %4108 = vmatprep.subr.bf16.mxu0 0
      %4109 = vmatpush1.bf16.msra.mxu0 %v3756
      %4110 = vmatprep.subr.bf16.mxu0 0
      %4111 = vmatpush1.bf16.msra.mxu0 %v3757
      %4112 = vmatprep.subr.bf16.mxu0 0
      %4113 = vmatpush1.bf16.msra.mxu0 %v3758
      %4114 = vmatprep.subr.bf16.mxu0 0
      %4115 = vmatpush1.bf16.msra.mxu0 %v3759
      %4116 = vmatprep.subr.bf16.mxu0 0
      %4117 = vmatpush1.bf16.msra.mxu0 %v3760
      %4118 = vmatprep.subr.bf16.mxu0 0
      %4119 = vmatpush1.bf16.msra.mxu0 %v3761
      %4120 = vmatprep.subr.bf16.mxu0 0
      %4121 = vmatpush1.bf16.msra.mxu0 %v3762
      %4122 = vmatprep.subr.bf16.mxu0 0
      %4123 = vmatpush1.bf16.msra.mxu0 %v3763
      %4124 = vmatprep.subr.bf16.mxu0 0
      %4125 = vmatpush1.bf16.msra.mxu0 %v3764
      %4126 = vmatprep.subr.bf16.mxu0 0
      %4127 = vmatpush1.bf16.msra.mxu0 %v3765
      %4128 = vmatprep.subr.bf16.mxu0 0
      %4129 = vmatpush1.bf16.msra.mxu0 %v3766
      %4130 = vmatprep.subr.bf16.mxu0 0
      %4131 = vmatpush1.bf16.msra.mxu0 %v3767
      %4132 = vmatprep.subr.bf16.mxu0 0
      %4133 = vmatpush1.bf16.msra.mxu0 %v3768
      %4134 = vmatprep.subr.bf16.mxu0 0
      %4135 = vmatpush1.bf16.msra.mxu0 %v3769
      %4136 = vmatprep.subr.bf16.mxu0 0
      %4137 = vmatpush1.bf16.msra.mxu0 %v3770
      %4138 = vmatprep.subr.bf16.mxu0 0
      %4139 = vmatpush1.bf16.msra.mxu0 %v3771
      %4140 = vmatprep.mubr.bf16.mxu0 %v2910
      %4141 = vmatmul.mubr.bf16.gmra.mrb[0].mxu0 %v2909
      %v4142 = vpop.f32.mrb[0].mxu0
      %v4143 = vadd.f32 %v4103, %v4142
      %v4144 = vpop.f32.mrb[0].mxu0
      %v4145 = vpop.f32.mrb[0].mxu0
      %v4146 = vpop.f32.mrb[0].mxu0
      %4147 = vdwg.mxu0
      %4148 = vmatprep.subr.bf16.mxu0 0
      %4149 = vmatpush1.bf16.msra.mxu0 %v3772
      %4150 = vmatprep.subr.bf16.mxu0 0
      %4151 = vmatpush1.bf16.msra.mxu0 %v3773
      %4152 = vmatprep.subr.bf16.mxu0 0
      %4153 = vmatpush1.bf16.msra.mxu0 %v3774
      %4154 = vmatprep.subr.bf16.mxu0 0
      %4155 = vmatpush1.bf16.msra.mxu0 %v3775
      %4156 = vmatprep.subr.bf16.mxu0 0
      %4157 = vmatpush1.bf16.msra.mxu0 %v3776
      %4158 = vmatprep.subr.bf16.mxu0 0
      %4159 = vmatpush1.bf16.msra.mxu0 %v3777
      %4160 = vmatprep.subr.bf16.mxu0 0
      %4161 = vmatpush1.bf16.msra.mxu0 %v3778
      %4162 = vmatprep.subr.bf16.mxu0 0
      %4163 = vmatpush1.bf16.msra.mxu0 %v3779
      %4164 = vmatprep.subr.bf16.mxu0 0
      %4165 = vmatpush1.bf16.msra.mxu0 %v3780
      %4166 = vmatprep.subr.bf16.mxu0 0
      %4167 = vmatpush1.bf16.msra.mxu0 %v3781
      %4168 = vmatprep.subr.bf16.mxu0 0
      %4169 = vmatpush1.bf16.msra.mxu0 %v3782
      %4170 = vmatprep.subr.bf16.mxu0 0
      %4171 = vmatpush1.bf16.msra.mxu0 %v3783
      %4172 = vmatprep.subr.bf16.mxu0 0
      %4173 = vmatpush1.bf16.msra.mxu0 %v3784
      %4174 = vmatprep.subr.bf16.mxu0 0
      %4175 = vmatpush1.bf16.msra.mxu0 %v3785
      %4176 = vmatprep.subr.bf16.mxu0 0
      %4177 = vmatpush1.bf16.msra.mxu0 %v3786
      %4178 = vmatprep.subr.bf16.mxu0 0
      %4179 = vmatpush1.bf16.msra.mxu0 %v3787
      %4180 = vmatprep.mubr.bf16.mxu0 %v2912
      %4181 = vmatmul.mubr.bf16.gmra.mrb[0].mxu0 %v2911
      %v4182 = vpop.f32.mrb[0].mxu0
      %v4183 = vadd.f32 %v4143, %v4182
      %v4184 = vpop.f32.mrb[0].mxu0
      %v4185 = vpop.f32.mrb[0].mxu0
      %v4186 = vpop.f32.mrb[0].mxu0
      %4187 = vdwg.mxu0
      %4188 = vmatprep.subr.bf16.mxu0 0
      %4189 = vmatpush1.bf16.msra.mxu0 %v3788
      %4190 = vmatprep.subr.bf16.mxu0 0
      %4191 = vmatpush1.bf16.msra.mxu0 %v3789
      %4192 = vmatprep.subr.bf16.mxu0 0
      %4193 = vmatpush1.bf16.msra.mxu0 %v3790
      %4194 = vmatprep.subr.bf16.mxu0 0
      %4195 = vmatpush1.bf16.msra.mxu0 %v3791
      %4196 = vmatprep.subr.bf16.mxu0 0
      %4197 = vmatpush1.bf16.msra.mxu0 %v3792
      %4198 = vmatprep.subr.bf16.mxu0 0
      %4199 = vmatpush1.bf16.msra.mxu0 %v3793
      %4200 = vmatprep.subr.bf16.mxu0 0
      %4201 = vmatpush1.bf16.msra.mxu0 %v3794
      %4202 = vmatprep.subr.bf16.mxu0 0
      %4203 = vmatpush1.bf16.msra.mxu0 %v3795
      %4204 = vmatprep.subr.bf16.mxu0 0
      %4205 = vmatpush1.bf16.msra.mxu0 %v3796
      %4206 = vmatprep.subr.bf16.mxu0 0
      %4207 = vmatpush1.bf16.msra.mxu0 %v3797
      %4208 = vmatprep.subr.bf16.mxu0 0
      %4209 = vmatpush1.bf16.msra.mxu0 %v3798
      %4210 = vmatprep.subr.bf16.mxu0 0
      %4211 = vmatpush1.bf16.msra.mxu0 %v3799
      %4212 = vmatprep.subr.bf16.mxu0 0
      %4213 = vmatpush1.bf16.msra.mxu0 %v3800
      %4214 = vmatprep.subr.bf16.mxu0 0
      %4215 = vmatpush1.bf16.msra.mxu0 %v3801
      %4216 = vmatprep.subr.bf16.mxu0 0
      %4217 = vmatpush1.bf16.msra.mxu0 %v3802
      %4218 = vmatprep.subr.bf16.mxu0 0
      %4219 = vmatpush1.bf16.msra.mxu0 %v3803
      %4220 = vmatprep.mubr.bf16.mxu0 %v2914
      %4221 = vmatmul.mubr.bf16.gmra.mrb[0].mxu0 %v2913
      %v4222 = vpop.f32.mrb[0].mxu0
      %v4223 = vadd.f32 %v4183, %v4222
      %v4224 = vpop.f32.mrb[0].mxu0
      %v4225 = vpop.f32.mrb[0].mxu0
      %v4226 = vpop.f32.mrb[0].mxu0
      %4227 = vdwg.mxu0
      %4228 = vmatprep.subr.bf16.mxu0 0
      %4229 = vmatpush1.bf16.msra.mxu0 %v3804
      %4230 = vmatprep.subr.bf16.mxu0 0
      %4231 = vmatpush1.bf16.msra.mxu0 %v3805
      %4232 = vmatprep.subr.bf16.mxu0 0
      %4233 = vmatpush1.bf16.msra.mxu0 %v3806
      %4234 = vmatprep.subr.bf16.mxu0 0
      %4235 = vmatpush1.bf16.msra.mxu0 %v3807
      %4236 = vmatprep.subr.bf16.mxu0 0
      %4237 = vmatpush1.bf16.msra.mxu0 %v3808
      %4238 = vmatprep.subr.bf16.mxu0 0
      %4239 = vmatpush1.bf16.msra.mxu0 %v3809
      %4240 = vmatprep.subr.bf16.mxu0 0
      %4241 = vmatpush1.bf16.msra.mxu0 %v3810
      %4242 = vmatprep.subr.bf16.mxu0 0
      %4243 = vmatpush1.bf16.msra.mxu0 %v3811
      %4244 = vmatprep.subr.bf16.mxu0 0
      %4245 = vmatpush1.bf16.msra.mxu0 %v3812
      %4246 = vmatprep.subr.bf16.mxu0 0
      %4247 = vmatpush1.bf16.msra.mxu0 %v3813
      %4248 = vmatprep.subr.bf16.mxu0 0
      %4249 = vmatpush1.bf16.msra.mxu0 %v3814
      %4250 = vmatprep.subr.bf16.mxu0 0
      %4251 = vmatpush1.bf16.msra.mxu0 %v3815
      %4252 = vmatprep.subr.bf16.mxu0 0
      %4253 = vmatpush1.bf16.msra.mxu0 %v3816
      %4254 = vmatprep.subr.bf16.mxu0 0
      %4255 = vmatpush1.bf16.msra.mxu0 %v3817
      %4256 = vmatprep.subr.bf16.mxu0 0
      %4257 = vmatpush1.bf16.msra.mxu0 %v3818
      %4258 = vmatprep.subr.bf16.mxu0 0
      %4259 = vmatpush1.bf16.msra.mxu0 %v3819
      %4260 = vmatprep.mubr.bf16.mxu0 %v2916
      %4261 = vmatmul.mubr.bf16.gmra.mrb[0].mxu0 %v2915
      %v4262 = vpop.f32.mrb[0].mxu0
      %v4263 = vadd.f32 %v4223, %v4262
      %v4264 = vpop.f32.mrb[0].mxu0
      %v4265 = vpop.f32.mrb[0].mxu0
      %v4266 = vpop.f32.mrb[0].mxu0
      %4267 = vdwg.mxu0
      %v4268 = vadd.f32 %v2276, %v4263
      %v4269 = vsel %vm462, %v4268, 0.0
      %4270 = vadd.xlane.f32.xlu0 %v4269
      %v4271 = vpop.xlane.xlu0 %4270
      %v4272 = vmul.f32 %v4271, %v2250
      %v4273 = vsub.f32 %v4268, %v4272
      %v4274 = vmul.f32 %v4273, %v4273
      %v4275 = vsel %vm462, %v4274, 0.0
      %4276 = vadd.xlane.f32.xlu0 %v4275
      %v4277 = vpop.xlane.xlu0 %4276
      %v4278 = vmul.f32 %v4277, %v2250
      %v4279 = vadd.f32 %v4278, 1e-05
      %v4280 = vrsqrt.pop %v4279
      %v4281 = vmul.f32 %v4273, %v4280
      %v4282 = vld [vmem:[%s11] sm:$0x1]
      %v4284 = vlaneseq
      %v4285 = vshrl.u32 %v4284, 7
      %v4286 = vsub.s32 0, %v4285
      %v4287 = vrot.slane %v4282, %v4286
      %v4289 = vmul.f32 %v4281, %v4287
      %v4290 = vld [vmem:[%s12] sm:$0x1]
      %v4292 = vlaneseq
      %v4293 = vshrl.u32 %v4292, 7
      %v4294 = vsub.s32 0, %v4293
      %v4295 = vrot.slane %v4290, %v4294
      %v4297 = vadd.f32 %v4289, %v4295
      %4298 = vst.msk [vmem:[%s435] sm:$0xff] %vm462, %v4297
      %p4299 = scmp.lt.s32.totalorder %s24, 1
      %s4300 = scalar_select %p4299, %s24, 1
      %s4301 = smul.addr %s4300, 8
      %s4302 = scalar_lea.vmem %s13, %s4301
      // Predicated region
      $region73: #{forward.5} parent=71 // pred_check
        %p4303 = pneg %p320
      $region74: #{forward.5} parent=71 // pred_check_branch
        %4305 = sbr.rel (%p4303) target = $region76
      $region75: #{forward.5} parent=71 // pred_region
        _
      $region76: #{forward.5} parent=71 // pred_fallthru
        _
    $region72: #{forward.5} parent=5 // pred_fallthru
      _
    %p4306 = scmp.le.s32.totalorder 2, %s19
    // Predicated region
    $region77: #{forward.5} parent=5 // pred_check
      %p4307 = pneg %p4306
    $region78: #{forward.5} parent=5 // pred_check_branch
      %4309 = sbr.rel (%p4307) target = $region80
    $region79: #{forward.5} parent=5 // pred_region
      %s4310 = ssub.s32 %s19, 2
      // Predicated region
      $region81: #{forward.5} parent=79 // pred_check
        %p4311 = pneg %p326
      $region82: #{forward.5} parent=79 // pred_check_branch
        %4313 = sbr.rel (%p4311) target = $region84
      $region83: #{forward.5} parent=79 // pred_region
        %p4314 = scmp.lt.s32.totalorder %s25, 1
        %s4315 = scalar_select %p4314, %s25, 1
        %s4316 = smul.addr %s4315, 8
        %s4317 = scalar_lea.vmem %s13, %s4316
      $region84: #{forward.5} parent=79 // pred_fallthru
        _
    $region80: #{forward.5} parent=5 // pred_fallthru
      _
  $region6: #{forward.5} parent=0 // loop_footer
    %s23 = sadd.s32 1, %s19
  $region7: #{forward.5} parent=0 // loop_footer_branch
    %18 = sbr.rel target = $region3
  $region8: #{forward.5} parent=0 // loop_exit
    _

// kernel: forward.9
$region0: #{forward.9}
  #allocation0 [shape = 'u32[]', space=smem, size = 0x4, offset = 0x4, fixed_abs, tag = 'smem constant byte address 0x4 - core index']
  #allocation1 [shape = 'u32[144,128]{1,0:T(1,128)}', space=vmem, size = 0x12000, scoped, tag = 'internal scratch']
  %s0 = inlined_call_operand.vmem [shape: f32[2,64], index: 0, kind: input, shape index: {}]
  %s1 = inlined_call_operand.vmem [shape: f32[64,5], index: 1, kind: input, shape index: {}]
  %s2 = inlined_call_operand.vmem [shape: f32[1,5], index: 2, kind: input, shape index: {}]
  %s3 = inlined_call_operand.hbm [shape: f32[2,5], index: 3, kind: output, shape index: {}]
  %s4 = sld [smem:[#allocation0]]
  $region22: #{forward.9} parent=0
    _
  %s6 = ssub.s32 1, %s4
  %s7 = scalar_select 0, %s6, %s4
  $region1: #{forward.9} parent=0
    #allocation2 [shape = 'u8[1024]{0}', space=vmem, size = 0x400, scoped, tag = 'output window, operand 0, single buffered']
    #allocation3 [shape = 's32[1]{0}', space=sflag, size = 0x4, scoped, tag = 'scoped memory for forward.9']
    %8 = vsyncpa [#allocation3], 0
    // Predicated region
    $region2: #{forward.9} parent=1 // pred_check
      _
    $region3: #{forward.9} parent=1 // pred_check_branch
      %10 = sbr.rel (0) target = $region5
    $region4: #{forward.9} parent=1 // pred_region
      _
    $region5: #{forward.9} parent=1 // pred_fallthru
      _
    // Predicated region
    $region6: #{forward.9} parent=1 // pred_check
      _
    $region7: #{forward.9} parent=1 // pred_check_branch
      %12 = sbr.rel (0) target = $region9
    $region8: #{forward.9} parent=1 // pred_region
      _
    $region9: #{forward.9} parent=1 // pred_fallthru
      _
    // Predicated region
    $region10: #{forward.9} parent=1 // pred_check
      _
    $region11: #{forward.9} parent=1 // pred_check_branch
      %14 = sbr.rel (0) target = $region13
    $region12: #{forward.9} parent=1 // pred_region
      _
    $region13: #{forward.9} parent=1 // pred_fallthru
      _
    %v15 = vld [vmem:[%s0] sm:$0x3]
    %v16 = vld [vmem:[%s1] sm:$0xff]
    %v17 = vld [vmem:[%s1 + $0x8] sm:$0xff]
    %v18 = vld [vmem:[%s1 + $0x10] sm:$0xff]
    %v19 = vld [vmem:[%s1 + $0x18] sm:$0xff]
    %v20 = vld [vmem:[%s1 + $0x20] sm:$0xff]
    %v21 = vld [vmem:[%s1 + $0x28] sm:$0xff]
    %v22 = vld [vmem:[%s1 + $0x30] sm:$0xff]
    %v23 = vld [vmem:[%s1 + $0x38] sm:$0xff]
    %v24 = vld [vmem:[%s2] sm:$0x1]
    %v26 = vlaneseq
    %v27 = vshrl.u32 %v26, 7
    %v28 = vsub.s32 0, %v27
    %v29 = vrot.slane %v24, %v28
    %vm31 = vcmask 523264
    %v33 = vsel %vm31, %v15, 0
    %35 = vmatprep.subr.mxu0 0.0
    %36 = vmatpush1.msra.mxu0 %v16
    %37 = vmatprep.subr.mxu0 0.0
    %38 = vmatpush1.msra.mxu0 %v17
    %39 = vmatprep.subr.mxu0 0.0
    %40 = vmatpush1.msra.mxu0 %v18
    %41 = vmatprep.subr.mxu0 0.0
    %42 = vmatpush1.msra.mxu0 %v19
    %43 = vmatprep.subr.mxu0 0.0
    %44 = vmatpush1.msra.mxu0 %v20
    %45 = vmatprep.subr.mxu0 0.0
    %46 = vmatpush1.msra.mxu0 %v21
    %47 = vmatprep.subr.mxu0 0.0
    %48 = vmatpush1.msra.mxu0 %v22
    %49 = vmatprep.subr.mxu0 0.0
    %50 = vmatpush1.msra.mxu0 %v23
    %51 = vmatprep.subr.mxu0 0.0
    %52 = vmatpush1.msra.mxu0 0.0
    %53 = vmatprep.subr.mxu0 0.0
    %54 = vmatpush1.msra.mxu0 0.0
    %55 = vmatprep.subr.mxu0 0.0
    %56 = vmatpush1.msra.mxu0 0.0
    %57 = vmatprep.subr.mxu0 0.0
    %58 = vmatpush1.msra.mxu0 0.0
    %59 = vmatprep.subr.mxu0 0.0
    %60 = vmatpush1.msra.mxu0 0.0
    %61 = vmatprep.subr.mxu0 0.0
    %62 = vmatpush1.msra.mxu0 0.0
    %63 = vmatprep.subr.mxu0 0.0
    %64 = vmatpush1.msra.mxu0 0.0
    %65 = vmatprep.subr.mxu0 0.0
    %66 = vmatpush1.msra.mxu0 0.0
    %67 = vmatprep.subr.mxu0 0.0
    %68 = vmatpush1.msra.mxu0 0.0
    %69 = vmatprep.subr.mxu0 0.0
    %70 = vmatpush1.msra.mxu0 0.0
    %71 = vmatprep.subr.mxu0 0.0
    %72 = vmatpush1.msra.mxu0 0.0
    %73 = vmatprep.subr.mxu0 0.0
    %74 = vmatpush1.msra.mxu0 0.0
    %75 = vmatprep.subr.mxu0 0.0
    %76 = vmatpush1.msra.mxu0 0.0
    %77 = vmatprep.subr.mxu0 0.0
    %78 = vmatpush1.msra.mxu0 0.0
    %79 = vmatprep.subr.mxu0 0.0
    %80 = vmatpush1.msra.mxu0 0.0
    %81 = vmatprep.subr.mxu0 0.0
    %82 = vmatpush1.msra.mxu0 0.0
    %83 = vmatprep.subr.mxu0 0.0
    %84 = vmatpush1.msra.mxu0 0.0
    %85 = vmatprep.subr.mxu0 0.0
    %86 = vmatpush1.msra.mxu0 0.0
    %87 = vmatprep.subr.mxu0 0.0
    %88 = vmatpush1.msra.mxu0 0.0
    %89 = vmatprep.subr.mxu0 0.0
    %90 = vmatpush1.msra.mxu0 0.0
    %91 = vmatprep.subr.mxu0 0.0
    %92 = vmatpush1.msra.mxu0 0.0
    %93 = vmatprep.subr.mxu0 0.0
    %94 = vmatpush1.msra.mxu0 0.0
    %95 = vmatprep.subr.mxu0 0.0
    %96 = vmatpush1.msra.mxu0 0.0
    %97 = vmatprep.subr.mxu0 0.0
    %98 = vmatpush1.msra.mxu0 0.0
    %99 = vmatprep.mubr.f32.mxu0 0.0
    %100 = vmatmul.mubr.f32.gmra.mrb[0].mxu0 %v33
    %v101 = vpop.f32.mrb[0].mxu0
    %v102 = vadd.f32 %v29, %v101
    %v103 = vpop.f32.mrb[0].mxu0
    %104 = vdwg.mxu0
    %vm105 = vcmask 33792
    %106 = vst.msk [vmem:[#allocation2] sm:$0x3] %vm105, %v102
    // Predicated region
    $region14: #{forward.9} parent=1 // pred_check
      _
    $region15: #{forward.9} parent=1 // pred_check_branch
      %108 = sbr.rel (0) target = $region17
    $region16: #{forward.9} parent=1 // pred_region
      %s110 = ssub.s32 32, 32
      %111 = vsyncadd [#allocation3], %s110
      %s113 = sshll.u32 [#allocation2], 4
      %s114 = int_to_ptr.vmem [resolvable:$true] %s113
      %116 = dma.vmem_to_hbm [thread:$0]  %s114, 32, %s3, [#allocation3]
    $region17: #{forward.9} parent=1 // pred_fallthru
      _
    // Predicated region
    $region18: #{forward.9} parent=1 // pred_check
      _
    $region19: #{forward.9} parent=1 // pred_check_branch
      %118 = sbr.rel (0) target = $region21
    $region20: #{forward.9} parent=1 // pred_region
      %119 = dma.done [#allocation3], 32
    $region21: #{forward.9} parent=1 // pred_fallthru
      _
    %120 = vsyncpa [#allocation3], 1

</llo_original>
